<compile_context>
chip_gen: v5e
topology: v5e:2x2
jax: 0.10.0
libtpu: 0.0.40
codegen_flags: <defaults>
</compile_context>

<pallas_src>
import jax
import jax.numpy as jnp
from jax.experimental import pallas as pl
from jax.experimental.pallas import tpu as pltpu

NUM_CLASSES = 3
N_POINTS = 512     # MaxPool1d(kernel_size=512) => global max over the point axis
BATCH_BLOCK = 8    # samples per grid step; TB=8 keeps the (TB,N,512) f32 slab +
                   # temporaries inside the 48 MiB scoped-VMEM request on v5e/v6e/v7x.
                   # (On v6e's 128 MiB VMEM this can be raised to 16.)


def tnet_kernel(x_ref, lab_ref,
                wpre_ref, bpre_ref, wpost_ref, wlab_ref, bpost_ref,
                out_ref):
    # ---- per-point affine map 3 -> 512 (w1@w2@w3 folded in the wrapper) ----
    # K=3 contraction as 3 broadcast-FMAs on the VPU (avoids a lane-padded MXU pass).
    x = x_ref[...]                                    # (TB, N, 3)
    wp = wpre_ref[...]                                # (3, 512)
    h = bpre_ref[...][None]                           # (1, 1, 512)
    for c in range(x.shape[-1]):                      # static, unrolled (3 coords)
        h = h + x[:, :, c:c + 1] * wp[c:c + 1][None]  # (TB, N, 512)

    # ---- global max-pool over the point axis ----
    g = jnp.max(h, axis=1)                            # (TB, 512)

    # ---- fc head (fc1/fc2/fc3 folded; concat(g, labels) == split matmul) ----
    f = jnp.dot(g, wpost_ref[...],
                preferred_element_type=jnp.float32)   # (TB, 3)  -- single MXU dot
    lab = lab_ref[...]                                # (TB, K) one-hot
    wl = wlab_ref[...]                                # (K, 3)
    for k in range(lab.shape[-1]):                    # static, unrolled (VPU)
        f = f + lab[:, k:k + 1] * wl[k:k + 1, :]
    out_ref[...] = f + bpost_ref[...]                 # (TB, 3)


def tnet_forward(point_cloud, labels, params, *, batch_block=BATCH_BLOCK):
    B, N, C = point_cloud.shape
    K = labels.shape[-1]
    (w1, b1, w2, b2, w3, b3, w4, b4, w5, b5, w6, b6) = params

    # Fold the activation-free linear chains (exact; only f32 summation order differs).
    w_pre = w1 @ w2 @ w3                              # (3, 512)
    b_pre = (b1 @ w2 + b2) @ w3 + b3                  # (1, 512)
    w4p, w4l = w4[:512], w4[512:]                     # split fc1: no in-kernel concat
    w_post = w4p @ w5 @ w6                            # (512, 3)
    w_lab = w4l @ w5 @ w6                             # (K, 3)
    b_post = (b4 @ w5 + b5) @ w6 + b6                 # (1, 3)
    weights = (w_pre, b_pre, w_post, w_lab, b_post)

    # Block the batch dim: TB samples per grid step (pad B up if needed).
    tb = max(1, min(batch_block, B))
    b_pad = ((B + tb - 1) // tb) * tb
    if b_pad != B:
        point_cloud = jnp.pad(point_cloud, ((0, b_pad - B), (0, 0), (0, 0)))
        labels = jnp.pad(labels, ((0, b_pad - B), (0, 0)))

    def const_spec(a):
        return pl.BlockSpec(a.shape, lambda b, _n=a.ndim: (0,) * _n)

    flops = 2 * b_pad * (N * C * 512 + 512 * 3 + K * 3)
    bytes_accessed = 4 * (int(point_cloud.size) + int(labels.size) + b_pad * 3
                          + sum(int(w.size) for w in weights))

    out = pl.pallas_call(
        tnet_kernel,
        out_shape=jax.ShapeDtypeStruct((b_pad, 3), jnp.float32),
        grid_spec=pltpu.PrefetchScalarGridSpec(
            num_scalar_prefetch=0,
            grid=(b_pad // tb,),
            in_specs=[pl.BlockSpec((tb, N, C), lambda b: (b, 0, 0)),
                      pl.BlockSpec((tb, K), lambda b: (b, 0))]
                     + [const_spec(w) for w in weights],
            out_specs=pl.BlockSpec((tb, 3), lambda b: (b, 0))),
        compiler_params=pltpu.CompilerParams(
            dimension_semantics=("parallel",),        # batch axis independent (v7x 2 TCs)
            vmem_limit_bytes=48 * 1024 * 1024),
        cost_estimate=pl.CostEstimate(flops=flops, transcendentals=0,
                                      bytes_accessed=bytes_accessed),
    )(point_cloud, labels, *weights)
    return out[:B]


def tnet_reference(x, labels, params):
    (w1, b1, w2, b2, w3, b3, w4, b4, w5, b5, w6, b6) = params
    h = x @ w1 + b1
    h = h @ w2 + b2
    h = h @ w3 + b3
    g = jnp.max(h, axis=1)                            # (B, 512)
    f = jnp.concatenate([g, labels], axis=-1)         # (B, 512+K)
    f = f @ w4 + b4
    f = f @ w5 + b5
    f = f @ w6 + b6
    return f


def init_params(key, num_classes):
    # PyTorch nn.Linear default init: U(-1/sqrt(fan_in), 1/sqrt(fan_in)).
    # Weights stored (in_features, out_features), i.e. already W^T.
    dims = [(3, 128), (128, 256), (256, 512),
            (512 + num_classes, 256), (256, 128), (128, 3)]
    params = []
    for fan_in, fan_out in dims:
        key, kw, kb = jax.random.split(key, 3)
        bound = 1.0 / float(fan_in) ** 0.5
        w = jax.random.uniform(kw, (fan_in, fan_out), jnp.float32, -bound, bound)
        b = jax.random.uniform(kb, (1, fan_out), jnp.float32, -bound, bound)
        params += [w, b]
    return params


if __name__ == "__main__":
    key = jax.random.PRNGKey(0)
    key, k_pc, k_lab = jax.random.split(key, 3)

    B = 2
    point_cloud = jax.random.normal(k_pc, (B, N_POINTS, 3), jnp.float32)
    cls = jax.random.randint(k_lab, (B,), 0, NUM_CLASSES)
    labels = jax.nn.one_hot(cls, NUM_CLASSES, dtype=jnp.float32)        # (B, num_classes)

    params = init_params(key, NUM_CLASSES)

    out = tnet_forward(point_cloud, labels, params)
    out = jax.block_until_ready(out)

    ref = tnet_reference(point_cloud, labels, params)
    assert out.shape == (B, 3), out.shape
    # Tolerance allows for the f32 summation-order change from folding the
    # activation-free linear chains (expected diff ~1e-6..1e-5).
    assert jnp.allclose(out, ref, atol=3e-4, rtol=3e-4), (out, ref)

    print("KERNEL_OK")
</pallas_src>

<mosaic_0001>
module attributes {stable_mosaic.version = 11 : i64} {
  func.func @tnet_kernel(%arg0: i32, %arg1: memref<2x512x3xf32, #tpu.memory_space<vmem>>, %arg2: memref<2x3xf32, #tpu.memory_space<vmem>>, %arg3: memref<3x512xf32, #tpu.memory_space<vmem>>, %arg4: memref<1x512xf32, #tpu.memory_space<vmem>>, %arg5: memref<512x3xf32, #tpu.memory_space<vmem>>, %arg6: memref<3x3xf32, #tpu.memory_space<vmem>>, %arg7: memref<1x3xf32, #tpu.memory_space<vmem>>, %arg8: memref<2x3xf32, #tpu.memory_space<vmem>>) attributes {dimension_semantics = [#tpu.dimension_semantics<parallel>], iteration_bounds = array<i64: 1>, scalar_prefetch = 0 : i64, scratch_operands = 0 : i64, tpu.core_type = #tpu.core_type<tc>, window_params = [{transform_indices = @transform_0, window_bounds = array<i64: 2, 512, 3>}, {transform_indices = @transform_1, window_bounds = array<i64: 2, 3>}, {pipeline_mode = #tpu.pipeline_mode<synchronous>, transform_indices = @transform_2, window_bounds = array<i64: 3, 512>}, {pipeline_mode = #tpu.pipeline_mode<synchronous>, transform_indices = @transform_3, window_bounds = array<i64: 1, 512>}, {pipeline_mode = #tpu.pipeline_mode<synchronous>, transform_indices = @transform_4, window_bounds = array<i64: 512, 3>}, {pipeline_mode = #tpu.pipeline_mode<synchronous>, transform_indices = @transform_5, window_bounds = array<i64: 3, 3>}, {pipeline_mode = #tpu.pipeline_mode<synchronous>, transform_indices = @transform_6, window_bounds = array<i64: 1, 3>}, {transform_indices = @transform_7, window_bounds = array<i64: 2, 3>}]} {
    %c0 = arith.constant 0 : index
    %c0_0 = arith.constant 0 : index
    %c0_1 = arith.constant 0 : index
    %0 = vector.load %arg1[%c0, %c0_0, %c0_1] : memref<2x512x3xf32, #tpu.memory_space<vmem>>, vector<2x512x3xf32>
    %c0_2 = arith.constant 0 : index
    %c0_3 = arith.constant 0 : index
    %1 = vector.load %arg3[%c0_2, %c0_3] : memref<3x512xf32, #tpu.memory_space<vmem>>, vector<3x512xf32>
    %c0_4 = arith.constant 0 : index
    %c0_5 = arith.constant 0 : index
    %2 = vector.load %arg4[%c0_4, %c0_5] : memref<1x512xf32, #tpu.memory_space<vmem>>, vector<1x512xf32>
    %3 = vector.shape_cast %2 : vector<1x512xf32> to vector<1x1x512xf32>
    %4 = vector.extract_strided_slice %0 {offsets = [0, 0, 0], sizes = [2, 512, 1], strides = [1, 1, 1]} : vector<2x512x3xf32> to vector<2x512x1xf32>
    %5 = vector.extract_strided_slice %1 {offsets = [0, 0], sizes = [1, 512], strides = [1, 1]} : vector<3x512xf32> to vector<1x512xf32>
    %6 = vector.shape_cast %5 : vector<1x512xf32> to vector<1x1x512xf32>
    %7 = vector.broadcast %4 : vector<2x512x1xf32> to vector<2x512x512xf32>
    %8 = vector.broadcast %6 : vector<1x1x512xf32> to vector<2x512x512xf32>
    %9 = arith.mulf %7, %8 : vector<2x512x512xf32>
    %10 = vector.broadcast %3 : vector<1x1x512xf32> to vector<2x512x512xf32>
    %11 = arith.addf %10, %9 : vector<2x512x512xf32>
    %12 = vector.extract_strided_slice %0 {offsets = [0, 0, 1], sizes = [2, 512, 1], strides = [1, 1, 1]} : vector<2x512x3xf32> to vector<2x512x1xf32>
    %13 = vector.extract_strided_slice %1 {offsets = [1, 0], sizes = [1, 512], strides = [1, 1]} : vector<3x512xf32> to vector<1x512xf32>
    %14 = vector.shape_cast %13 : vector<1x512xf32> to vector<1x1x512xf32>
    %15 = vector.broadcast %12 : vector<2x512x1xf32> to vector<2x512x512xf32>
    %16 = vector.broadcast %14 : vector<1x1x512xf32> to vector<2x512x512xf32>
    %17 = arith.mulf %15, %16 : vector<2x512x512xf32>
    %18 = arith.addf %11, %17 : vector<2x512x512xf32>
    %19 = vector.extract_strided_slice %0 {offsets = [0, 0, 2], sizes = [2, 512, 1], strides = [1, 1, 1]} : vector<2x512x3xf32> to vector<2x512x1xf32>
    %20 = vector.extract_strided_slice %1 {offsets = [2, 0], sizes = [1, 512], strides = [1, 1]} : vector<3x512xf32> to vector<1x512xf32>
    %21 = vector.shape_cast %20 : vector<1x512xf32> to vector<1x1x512xf32>
    %22 = vector.broadcast %19 : vector<2x512x1xf32> to vector<2x512x512xf32>
    %23 = vector.broadcast %21 : vector<1x1x512xf32> to vector<2x512x512xf32>
    %24 = arith.mulf %22, %23 : vector<2x512x512xf32>
    %25 = arith.addf %18, %24 : vector<2x512x512xf32>
    %cst = arith.constant dense<0xFF800000> : vector<2x512xf32>
    %26 = vector.multi_reduction <maximumf>, %25, %cst [1] : vector<2x512x512xf32> to vector<2x512xf32>
    %c0_6 = arith.constant 0 : index
    %c0_7 = arith.constant 0 : index
    %27 = vector.load %arg5[%c0_6, %c0_7] : memref<512x3xf32, #tpu.memory_space<vmem>>, vector<512x3xf32>
    %cst_8 = arith.constant dense<0.000000e+00> : vector<2x3xf32>
    %28 = tpu.matmul %26, %27, %cst_8 {dimension_numbers = #tpu.dot_dimension_numbers<[1], [0], [0], [1], [0, 0, 1, 1], [], []>} : vector<2x512xf32>, vector<512x3xf32>, vector<2x3xf32> -> vector<2x3xf32>
    %c0_9 = arith.constant 0 : index
    %c0_10 = arith.constant 0 : index
    %29 = vector.load %arg2[%c0_9, %c0_10] : memref<2x3xf32, #tpu.memory_space<vmem>>, vector<2x3xf32>
    %c0_11 = arith.constant 0 : index
    %c0_12 = arith.constant 0 : index
    %30 = vector.load %arg6[%c0_11, %c0_12] : memref<3x3xf32, #tpu.memory_space<vmem>>, vector<3x3xf32>
    %31 = vector.extract_strided_slice %29 {offsets = [0, 0], sizes = [2, 1], strides = [1, 1]} : vector<2x3xf32> to vector<2x1xf32>
    %32 = vector.extract_strided_slice %30 {offsets = [0, 0], sizes = [1, 3], strides = [1, 1]} : vector<3x3xf32> to vector<1x3xf32>
    %33 = vector.broadcast %31 : vector<2x1xf32> to vector<2x3xf32>
    %34 = vector.broadcast %32 : vector<1x3xf32> to vector<2x3xf32>
    %35 = arith.mulf %33, %34 : vector<2x3xf32>
    %36 = arith.addf %28, %35 : vector<2x3xf32>
    %37 = vector.extract_strided_slice %29 {offsets = [0, 1], sizes = [2, 1], strides = [1, 1]} : vector<2x3xf32> to vector<2x1xf32>
    %38 = vector.extract_strided_slice %30 {offsets = [1, 0], sizes = [1, 3], strides = [1, 1]} : vector<3x3xf32> to vector<1x3xf32>
    %39 = vector.broadcast %37 : vector<2x1xf32> to vector<2x3xf32>
    %40 = vector.broadcast %38 : vector<1x3xf32> to vector<2x3xf32>
    %41 = arith.mulf %39, %40 : vector<2x3xf32>
    %42 = arith.addf %36, %41 : vector<2x3xf32>
    %43 = vector.extract_strided_slice %29 {offsets = [0, 2], sizes = [2, 1], strides = [1, 1]} : vector<2x3xf32> to vector<2x1xf32>
    %44 = vector.extract_strided_slice %30 {offsets = [2, 0], sizes = [1, 3], strides = [1, 1]} : vector<3x3xf32> to vector<1x3xf32>
    %45 = vector.broadcast %43 : vector<2x1xf32> to vector<2x3xf32>
    %46 = vector.broadcast %44 : vector<1x3xf32> to vector<2x3xf32>
    %47 = arith.mulf %45, %46 : vector<2x3xf32>
    %48 = arith.addf %42, %47 : vector<2x3xf32>
    %c0_13 = arith.constant 0 : index
    %c0_14 = arith.constant 0 : index
    %49 = vector.load %arg7[%c0_13, %c0_14] : memref<1x3xf32, #tpu.memory_space<vmem>>, vector<1x3xf32>
    %50 = vector.broadcast %49 : vector<1x3xf32> to vector<2x3xf32>
    %51 = arith.addf %48, %50 : vector<2x3xf32>
    %c0_15 = arith.constant 0 : index
    %c0_16 = arith.constant 0 : index
    %52 = vector.load %arg8[%c0_15, %c0_16] : memref<2x3xf32, #tpu.memory_space<vmem>>, vector<2x3xf32>
    tpu.vector_store %arg8[%c0_15, %c0_16], %51 {strides = array<i32>} : memref<2x3xf32, #tpu.memory_space<vmem>>, vector<2x3xf32>,
    return
  }
  func.func @transform_0(%arg0: i32) -> (i32, i32, i32) {
    %c0_i32 = arith.constant 0 : i32
    %c0_i32_0 = arith.constant 0 : i32
    %c0_i32_1 = arith.constant 0 : i32
    return %arg0, %c0_i32, %c0_i32_0 : i32, i32, i32
  }
  func.func @transform_1(%arg0: i32) -> (i32, i32) {
    %c0_i32 = arith.constant 0 : i32
    %c0_i32_0 = arith.constant 0 : i32
    return %arg0, %c0_i32 : i32, i32
  }
  func.func @transform_2(%arg0: i32) -> (i32, i32) {
    %c0_i32 = arith.constant 0 : i32
    %c0_i32_0 = arith.constant 0 : i32
    %c0_i32_1 = arith.constant 0 : i32
    return %c0_i32, %c0_i32_0 : i32, i32
  }
  func.func @transform_3(%arg0: i32) -> (i32, i32) {
    %c0_i32 = arith.constant 0 : i32
    %c0_i32_0 = arith.constant 0 : i32
    %c0_i32_1 = arith.constant 0 : i32
    return %c0_i32, %c0_i32_0 : i32, i32
  }
  func.func @transform_4(%arg0: i32) -> (i32, i32) {
    %c0_i32 = arith.constant 0 : i32
    %c0_i32_0 = arith.constant 0 : i32
    %c0_i32_1 = arith.constant 0 : i32
    return %c0_i32, %c0_i32_0 : i32, i32
  }
  func.func @transform_5(%arg0: i32) -> (i32, i32) {
    %c0_i32 = arith.constant 0 : i32
    %c0_i32_0 = arith.constant 0 : i32
    %c0_i32_1 = arith.constant 0 : i32
    return %c0_i32, %c0_i32_0 : i32, i32
  }
  func.func @transform_6(%arg0: i32) -> (i32, i32) {
    %c0_i32 = arith.constant 0 : i32
    %c0_i32_0 = arith.constant 0 : i32
    %c0_i32_1 = arith.constant 0 : i32
    return %c0_i32, %c0_i32_0 : i32, i32
  }
  func.func @transform_7(%arg0: i32) -> (i32, i32) {
    %c0_i32 = arith.constant 0 : i32
    %c0_i32_0 = arith.constant 0 : i32
    return %arg0, %c0_i32 : i32, i32
  }
}

</mosaic_0001>

<llo_original>
// kernel: tpu_custom_call.1
$region0: #{tpu_custom_call.1}
  #allocation0 [shape = 'u32[]', space=smem, size = 0x4, offset = 0x4, fixed_abs, tag = 'smem constant byte address 0x4 - core index']
  #allocation1 [shape = 'u32[72,128]{1,0:T(1,128)}', space=vmem, size = 0x9000, scoped, tag = 'internal scratch']
  %s0 = inlined_call_operand.vmem [shape: f32[2,512,3], index: 0, kind: input, shape index: {}]
  %s1 = inlined_call_operand.vmem [shape: f32[2,3], index: 1, kind: input, shape index: {}]
  %s2 = inlined_call_operand.vmem [shape: f32[3,512], index: 2, kind: input, shape index: {}]
  %s3 = inlined_call_operand.vmem [shape: f32[1,512], index: 3, kind: input, shape index: {}]
  %s4 = inlined_call_operand.vmem [shape: f32[512,3], index: 4, kind: input, shape index: {}]
  %s5 = inlined_call_operand.vmem [shape: f32[3,3], index: 5, kind: input, shape index: {}]
  %s6 = inlined_call_operand.vmem [shape: f32[1,3], index: 6, kind: input, shape index: {}]
  %s7 = inlined_call_operand.hbm [shape: f32[2,3], index: 7, kind: output, shape index: {}]
  %s8 = sld [smem:[#allocation0]]
  $region38: #{tpu_custom_call.1} parent=0
    _
  %s10 = ssub.s32 1, %s8
  %s11 = scalar_select 0, %s10, %s8
  $region1: #{tpu_custom_call.1} parent=0
    #allocation2 [shape = 'u8[1024]{0}', space=vmem, size = 0x400, scoped, tag = 'output window, operand 0, single buffered']
    #allocation3 [shape = 's32[1]{0}', space=sflag, size = 0x4, scoped, tag = 'scoped memory for tpu_custom_call.1']
    %12 = vsyncpa [#allocation3], 0
    // Predicated region
    $region2: #{tpu_custom_call.1} parent=1 // pred_check
      _
    $region3: #{tpu_custom_call.1} parent=1 // pred_check_branch
      %14 = sbr.rel (0) target = $region5
    $region4: #{tpu_custom_call.1} parent=1 // pred_region
      _
    $region5: #{tpu_custom_call.1} parent=1 // pred_fallthru
      _
    // Predicated region
    $region6: #{tpu_custom_call.1} parent=1 // pred_check
      _
    $region7: #{tpu_custom_call.1} parent=1 // pred_check_branch
      %16 = sbr.rel (0) target = $region9
    $region8: #{tpu_custom_call.1} parent=1 // pred_region
      _
    $region9: #{tpu_custom_call.1} parent=1 // pred_fallthru
      _
    // Predicated region
    $region10: #{tpu_custom_call.1} parent=1 // pred_check
      _
    $region11: #{tpu_custom_call.1} parent=1 // pred_check_branch
      %18 = sbr.rel (0) target = $region13
    $region12: #{tpu_custom_call.1} parent=1 // pred_region
      _
    $region13: #{tpu_custom_call.1} parent=1 // pred_fallthru
      _
    // Predicated region
    $region14: #{tpu_custom_call.1} parent=1 // pred_check
      _
    $region15: #{tpu_custom_call.1} parent=1 // pred_check_branch
      %20 = sbr.rel (0) target = $region17
    $region16: #{tpu_custom_call.1} parent=1 // pred_region
      _
    $region17: #{tpu_custom_call.1} parent=1 // pred_fallthru
      _
    // Predicated region
    $region18: #{tpu_custom_call.1} parent=1 // pred_check
      _
    $region19: #{tpu_custom_call.1} parent=1 // pred_check_branch
      %22 = sbr.rel (0) target = $region21
    $region20: #{tpu_custom_call.1} parent=1 // pred_region
      _
    $region21: #{tpu_custom_call.1} parent=1 // pred_fallthru
      _
    // Predicated region
    $region22: #{tpu_custom_call.1} parent=1 // pred_check
      _
    $region23: #{tpu_custom_call.1} parent=1 // pred_check_branch
      %24 = sbr.rel (0) target = $region25
    $region24: #{tpu_custom_call.1} parent=1 // pred_region
      _
    $region25: #{tpu_custom_call.1} parent=1 // pred_fallthru
      _
    // Predicated region
    $region26: #{tpu_custom_call.1} parent=1 // pred_check
      _
    $region27: #{tpu_custom_call.1} parent=1 // pred_check_branch
      %26 = sbr.rel (0) target = $region29
    $region28: #{tpu_custom_call.1} parent=1 // pred_region
      _
    $region29: #{tpu_custom_call.1} parent=1 // pred_fallthru
      _
    %v27 = vld [vmem:[%s0] sm:$0xff]
    %v28 = vld [vmem:[%s0 + $0x8] sm:$0xff]
    %v29 = vld [vmem:[%s0 + $0x10] sm:$0xff]
    %v30 = vld [vmem:[%s0 + $0x18] sm:$0xff]
    %v31 = vld [vmem:[%s0 + $0x20] sm:$0xff]
    %v32 = vld [vmem:[%s0 + $0x28] sm:$0xff]
    %v33 = vld [vmem:[%s0 + $0x30] sm:$0xff]
    %v34 = vld [vmem:[%s0 + $0x38] sm:$0xff]
    %v35 = vld [vmem:[%s0 + $0x40] sm:$0xff]
    %v36 = vld [vmem:[%s0 + $0x48] sm:$0xff]
    %v37 = vld [vmem:[%s0 + $0x50] sm:$0xff]
    %v38 = vld [vmem:[%s0 + $0x58] sm:$0xff]
    %v39 = vld [vmem:[%s0 + $0x60] sm:$0xff]
    %v40 = vld [vmem:[%s0 + $0x68] sm:$0xff]
    %v41 = vld [vmem:[%s0 + $0x70] sm:$0xff]
    %v42 = vld [vmem:[%s0 + $0x78] sm:$0xff]
    %v43 = vld [vmem:[%s0 + $0x80] sm:$0xff]
    %v44 = vld [vmem:[%s0 + $0x88] sm:$0xff]
    %v45 = vld [vmem:[%s0 + $0x90] sm:$0xff]
    %v46 = vld [vmem:[%s0 + $0x98] sm:$0xff]
    %v47 = vld [vmem:[%s0 + $0xa0] sm:$0xff]
    %v48 = vld [vmem:[%s0 + $0xa8] sm:$0xff]
    %v49 = vld [vmem:[%s0 + $0xb0] sm:$0xff]
    %v50 = vld [vmem:[%s0 + $0xb8] sm:$0xff]
    %v51 = vld [vmem:[%s0 + $0xc0] sm:$0xff]
    %v52 = vld [vmem:[%s0 + $0xc8] sm:$0xff]
    %v53 = vld [vmem:[%s0 + $0xd0] sm:$0xff]
    %v54 = vld [vmem:[%s0 + $0xd8] sm:$0xff]
    %v55 = vld [vmem:[%s0 + $0xe0] sm:$0xff]
    %v56 = vld [vmem:[%s0 + $0xe8] sm:$0xff]
    %v57 = vld [vmem:[%s0 + $0xf0] sm:$0xff]
    %v58 = vld [vmem:[%s0 + $0xf8] sm:$0xff]
    %v59 = vld [vmem:[%s0 + $0x100] sm:$0xff]
    %v60 = vld [vmem:[%s0 + $0x108] sm:$0xff]
    %v61 = vld [vmem:[%s0 + $0x110] sm:$0xff]
    %v62 = vld [vmem:[%s0 + $0x118] sm:$0xff]
    %v63 = vld [vmem:[%s0 + $0x120] sm:$0xff]
    %v64 = vld [vmem:[%s0 + $0x128] sm:$0xff]
    %v65 = vld [vmem:[%s0 + $0x130] sm:$0xff]
    %v66 = vld [vmem:[%s0 + $0x138] sm:$0xff]
    %v67 = vld [vmem:[%s0 + $0x140] sm:$0xff]
    %v68 = vld [vmem:[%s0 + $0x148] sm:$0xff]
    %v69 = vld [vmem:[%s0 + $0x150] sm:$0xff]
    %v70 = vld [vmem:[%s0 + $0x158] sm:$0xff]
    %v71 = vld [vmem:[%s0 + $0x160] sm:$0xff]
    %v72 = vld [vmem:[%s0 + $0x168] sm:$0xff]
    %v73 = vld [vmem:[%s0 + $0x170] sm:$0xff]
    %v74 = vld [vmem:[%s0 + $0x178] sm:$0xff]
    %v75 = vld [vmem:[%s0 + $0x180] sm:$0xff]
    %v76 = vld [vmem:[%s0 + $0x188] sm:$0xff]
    %v77 = vld [vmem:[%s0 + $0x190] sm:$0xff]
    %v78 = vld [vmem:[%s0 + $0x198] sm:$0xff]
    %v79 = vld [vmem:[%s0 + $0x1a0] sm:$0xff]
    %v80 = vld [vmem:[%s0 + $0x1a8] sm:$0xff]
    %v81 = vld [vmem:[%s0 + $0x1b0] sm:$0xff]
    %v82 = vld [vmem:[%s0 + $0x1b8] sm:$0xff]
    %v83 = vld [vmem:[%s0 + $0x1c0] sm:$0xff]
    %v84 = vld [vmem:[%s0 + $0x1c8] sm:$0xff]
    %v85 = vld [vmem:[%s0 + $0x1d0] sm:$0xff]
    %v86 = vld [vmem:[%s0 + $0x1d8] sm:$0xff]
    %v87 = vld [vmem:[%s0 + $0x1e0] sm:$0xff]
    %v88 = vld [vmem:[%s0 + $0x1e8] sm:$0xff]
    %v89 = vld [vmem:[%s0 + $0x1f0] sm:$0xff]
    %v90 = vld [vmem:[%s0 + $0x1f8] sm:$0xff]
    %v91 = vld [vmem:[%s0 + $0x200] sm:$0xff]
    %v92 = vld [vmem:[%s0 + $0x208] sm:$0xff]
    %v93 = vld [vmem:[%s0 + $0x210] sm:$0xff]
    %v94 = vld [vmem:[%s0 + $0x218] sm:$0xff]
    %v95 = vld [vmem:[%s0 + $0x220] sm:$0xff]
    %v96 = vld [vmem:[%s0 + $0x228] sm:$0xff]
    %v97 = vld [vmem:[%s0 + $0x230] sm:$0xff]
    %v98 = vld [vmem:[%s0 + $0x238] sm:$0xff]
    %v99 = vld [vmem:[%s0 + $0x240] sm:$0xff]
    %v100 = vld [vmem:[%s0 + $0x248] sm:$0xff]
    %v101 = vld [vmem:[%s0 + $0x250] sm:$0xff]
    %v102 = vld [vmem:[%s0 + $0x258] sm:$0xff]
    %v103 = vld [vmem:[%s0 + $0x260] sm:$0xff]
    %v104 = vld [vmem:[%s0 + $0x268] sm:$0xff]
    %v105 = vld [vmem:[%s0 + $0x270] sm:$0xff]
    %v106 = vld [vmem:[%s0 + $0x278] sm:$0xff]
    %v107 = vld [vmem:[%s0 + $0x280] sm:$0xff]
    %v108 = vld [vmem:[%s0 + $0x288] sm:$0xff]
    %v109 = vld [vmem:[%s0 + $0x290] sm:$0xff]
    %v110 = vld [vmem:[%s0 + $0x298] sm:$0xff]
    %v111 = vld [vmem:[%s0 + $0x2a0] sm:$0xff]
    %v112 = vld [vmem:[%s0 + $0x2a8] sm:$0xff]
    %v113 = vld [vmem:[%s0 + $0x2b0] sm:$0xff]
    %v114 = vld [vmem:[%s0 + $0x2b8] sm:$0xff]
    %v115 = vld [vmem:[%s0 + $0x2c0] sm:$0xff]
    %v116 = vld [vmem:[%s0 + $0x2c8] sm:$0xff]
    %v117 = vld [vmem:[%s0 + $0x2d0] sm:$0xff]
    %v118 = vld [vmem:[%s0 + $0x2d8] sm:$0xff]
    %v119 = vld [vmem:[%s0 + $0x2e0] sm:$0xff]
    %v120 = vld [vmem:[%s0 + $0x2e8] sm:$0xff]
    %v121 = vld [vmem:[%s0 + $0x2f0] sm:$0xff]
    %v122 = vld [vmem:[%s0 + $0x2f8] sm:$0xff]
    %v123 = vld [vmem:[%s0 + $0x300] sm:$0xff]
    %v124 = vld [vmem:[%s0 + $0x308] sm:$0xff]
    %v125 = vld [vmem:[%s0 + $0x310] sm:$0xff]
    %v126 = vld [vmem:[%s0 + $0x318] sm:$0xff]
    %v127 = vld [vmem:[%s0 + $0x320] sm:$0xff]
    %v128 = vld [vmem:[%s0 + $0x328] sm:$0xff]
    %v129 = vld [vmem:[%s0 + $0x330] sm:$0xff]
    %v130 = vld [vmem:[%s0 + $0x338] sm:$0xff]
    %v131 = vld [vmem:[%s0 + $0x340] sm:$0xff]
    %v132 = vld [vmem:[%s0 + $0x348] sm:$0xff]
    %v133 = vld [vmem:[%s0 + $0x350] sm:$0xff]
    %v134 = vld [vmem:[%s0 + $0x358] sm:$0xff]
    %v135 = vld [vmem:[%s0 + $0x360] sm:$0xff]
    %v136 = vld [vmem:[%s0 + $0x368] sm:$0xff]
    %v137 = vld [vmem:[%s0 + $0x370] sm:$0xff]
    %v138 = vld [vmem:[%s0 + $0x378] sm:$0xff]
    %v139 = vld [vmem:[%s0 + $0x380] sm:$0xff]
    %v140 = vld [vmem:[%s0 + $0x388] sm:$0xff]
    %v141 = vld [vmem:[%s0 + $0x390] sm:$0xff]
    %v142 = vld [vmem:[%s0 + $0x398] sm:$0xff]
    %v143 = vld [vmem:[%s0 + $0x3a0] sm:$0xff]
    %v144 = vld [vmem:[%s0 + $0x3a8] sm:$0xff]
    %v145 = vld [vmem:[%s0 + $0x3b0] sm:$0xff]
    %v146 = vld [vmem:[%s0 + $0x3b8] sm:$0xff]
    %v147 = vld [vmem:[%s0 + $0x3c0] sm:$0xff]
    %v148 = vld [vmem:[%s0 + $0x3c8] sm:$0xff]
    %v149 = vld [vmem:[%s0 + $0x3d0] sm:$0xff]
    %v150 = vld [vmem:[%s0 + $0x3d8] sm:$0xff]
    %v151 = vld [vmem:[%s0 + $0x3e0] sm:$0xff]
    %v152 = vld [vmem:[%s0 + $0x3e8] sm:$0xff]
    %v153 = vld [vmem:[%s0 + $0x3f0] sm:$0xff]
    %v154 = vld [vmem:[%s0 + $0x3f8] sm:$0xff]
    %v155 = vld [vmem:[%s2] sm:$0x77]
    %v156 = vld [vmem:[%s2 + $0x8] sm:$0x77]
    %v157 = vld [vmem:[%s3] sm:$0xf]
    %159 = vset.pattern.permute.xlu0 0
    %160 = vperm.xlu0 %159, %v27
    %v161 = vpop.permute.xlu0 %160
    %164 = vset.pattern.permute.xlu0 0
    %165 = vperm.xlu0 %164, %v28
    %v166 = vpop.permute.xlu0 %165
    %169 = vset.pattern.permute.xlu0 0
    %170 = vperm.xlu0 %169, %v29
    %v171 = vpop.permute.xlu0 %170
    %174 = vset.pattern.permute.xlu0 0
    %175 = vperm.xlu0 %174, %v30
    %v176 = vpop.permute.xlu0 %175
    %179 = vset.pattern.permute.xlu0 0
    %180 = vperm.xlu0 %179, %v31
    %v181 = vpop.permute.xlu0 %180
    %184 = vset.pattern.permute.xlu0 0
    %185 = vperm.xlu0 %184, %v32
    %v186 = vpop.permute.xlu0 %185
    %189 = vset.pattern.permute.xlu0 0
    %190 = vperm.xlu0 %189, %v33
    %v191 = vpop.permute.xlu0 %190
    %194 = vset.pattern.permute.xlu0 0
    %195 = vperm.xlu0 %194, %v34
    %v196 = vpop.permute.xlu0 %195
    %199 = vset.pattern.permute.xlu0 0
    %200 = vperm.xlu0 %199, %v35
    %v201 = vpop.permute.xlu0 %200
    %204 = vset.pattern.permute.xlu0 0
    %205 = vperm.xlu0 %204, %v36
    %v206 = vpop.permute.xlu0 %205
    %209 = vset.pattern.permute.xlu0 0
    %210 = vperm.xlu0 %209, %v37
    %v211 = vpop.permute.xlu0 %210
    %214 = vset.pattern.permute.xlu0 0
    %215 = vperm.xlu0 %214, %v38
    %v216 = vpop.permute.xlu0 %215
    %219 = vset.pattern.permute.xlu0 0
    %220 = vperm.xlu0 %219, %v39
    %v221 = vpop.permute.xlu0 %220
    %224 = vset.pattern.permute.xlu0 0
    %225 = vperm.xlu0 %224, %v40
    %v226 = vpop.permute.xlu0 %225
    %229 = vset.pattern.permute.xlu0 0
    %230 = vperm.xlu0 %229, %v41
    %v231 = vpop.permute.xlu0 %230
    %234 = vset.pattern.permute.xlu0 0
    %235 = vperm.xlu0 %234, %v42
    %v236 = vpop.permute.xlu0 %235
    %239 = vset.pattern.permute.xlu0 0
    %240 = vperm.xlu0 %239, %v43
    %v241 = vpop.permute.xlu0 %240
    %244 = vset.pattern.permute.xlu0 0
    %245 = vperm.xlu0 %244, %v44
    %v246 = vpop.permute.xlu0 %245
    %249 = vset.pattern.permute.xlu0 0
    %250 = vperm.xlu0 %249, %v45
    %v251 = vpop.permute.xlu0 %250
    %254 = vset.pattern.permute.xlu0 0
    %255 = vperm.xlu0 %254, %v46
    %v256 = vpop.permute.xlu0 %255
    %259 = vset.pattern.permute.xlu0 0
    %260 = vperm.xlu0 %259, %v47
    %v261 = vpop.permute.xlu0 %260
    %264 = vset.pattern.permute.xlu0 0
    %265 = vperm.xlu0 %264, %v48
    %v266 = vpop.permute.xlu0 %265
    %269 = vset.pattern.permute.xlu0 0
    %270 = vperm.xlu0 %269, %v49
    %v271 = vpop.permute.xlu0 %270
    %274 = vset.pattern.permute.xlu0 0
    %275 = vperm.xlu0 %274, %v50
    %v276 = vpop.permute.xlu0 %275
    %279 = vset.pattern.permute.xlu0 0
    %280 = vperm.xlu0 %279, %v51
    %v281 = vpop.permute.xlu0 %280
    %284 = vset.pattern.permute.xlu0 0
    %285 = vperm.xlu0 %284, %v52
    %v286 = vpop.permute.xlu0 %285
    %289 = vset.pattern.permute.xlu0 0
    %290 = vperm.xlu0 %289, %v53
    %v291 = vpop.permute.xlu0 %290
    %294 = vset.pattern.permute.xlu0 0
    %295 = vperm.xlu0 %294, %v54
    %v296 = vpop.permute.xlu0 %295
    %299 = vset.pattern.permute.xlu0 0
    %300 = vperm.xlu0 %299, %v55
    %v301 = vpop.permute.xlu0 %300
    %304 = vset.pattern.permute.xlu0 0
    %305 = vperm.xlu0 %304, %v56
    %v306 = vpop.permute.xlu0 %305
    %309 = vset.pattern.permute.xlu0 0
    %310 = vperm.xlu0 %309, %v57
    %v311 = vpop.permute.xlu0 %310
    %314 = vset.pattern.permute.xlu0 0
    %315 = vperm.xlu0 %314, %v58
    %v316 = vpop.permute.xlu0 %315
    %319 = vset.pattern.permute.xlu0 0
    %320 = vperm.xlu0 %319, %v59
    %v321 = vpop.permute.xlu0 %320
    %324 = vset.pattern.permute.xlu0 0
    %325 = vperm.xlu0 %324, %v60
    %v326 = vpop.permute.xlu0 %325
    %329 = vset.pattern.permute.xlu0 0
    %330 = vperm.xlu0 %329, %v61
    %v331 = vpop.permute.xlu0 %330
    %334 = vset.pattern.permute.xlu0 0
    %335 = vperm.xlu0 %334, %v62
    %v336 = vpop.permute.xlu0 %335
    %339 = vset.pattern.permute.xlu0 0
    %340 = vperm.xlu0 %339, %v63
    %v341 = vpop.permute.xlu0 %340
    %344 = vset.pattern.permute.xlu0 0
    %345 = vperm.xlu0 %344, %v64
    %v346 = vpop.permute.xlu0 %345
    %349 = vset.pattern.permute.xlu0 0
    %350 = vperm.xlu0 %349, %v65
    %v351 = vpop.permute.xlu0 %350
    %354 = vset.pattern.permute.xlu0 0
    %355 = vperm.xlu0 %354, %v66
    %v356 = vpop.permute.xlu0 %355
    %359 = vset.pattern.permute.xlu0 0
    %360 = vperm.xlu0 %359, %v67
    %v361 = vpop.permute.xlu0 %360
    %364 = vset.pattern.permute.xlu0 0
    %365 = vperm.xlu0 %364, %v68
    %v366 = vpop.permute.xlu0 %365
    %369 = vset.pattern.permute.xlu0 0
    %370 = vperm.xlu0 %369, %v69
    %v371 = vpop.permute.xlu0 %370
    %374 = vset.pattern.permute.xlu0 0
    %375 = vperm.xlu0 %374, %v70
    %v376 = vpop.permute.xlu0 %375
    %379 = vset.pattern.permute.xlu0 0
    %380 = vperm.xlu0 %379, %v71
    %v381 = vpop.permute.xlu0 %380
    %384 = vset.pattern.permute.xlu0 0
    %385 = vperm.xlu0 %384, %v72
    %v386 = vpop.permute.xlu0 %385
    %389 = vset.pattern.permute.xlu0 0
    %390 = vperm.xlu0 %389, %v73
    %v391 = vpop.permute.xlu0 %390
    %394 = vset.pattern.permute.xlu0 0
    %395 = vperm.xlu0 %394, %v74
    %v396 = vpop.permute.xlu0 %395
    %399 = vset.pattern.permute.xlu0 0
    %400 = vperm.xlu0 %399, %v75
    %v401 = vpop.permute.xlu0 %400
    %404 = vset.pattern.permute.xlu0 0
    %405 = vperm.xlu0 %404, %v76
    %v406 = vpop.permute.xlu0 %405
    %409 = vset.pattern.permute.xlu0 0
    %410 = vperm.xlu0 %409, %v77
    %v411 = vpop.permute.xlu0 %410
    %414 = vset.pattern.permute.xlu0 0
    %415 = vperm.xlu0 %414, %v78
    %v416 = vpop.permute.xlu0 %415
    %419 = vset.pattern.permute.xlu0 0
    %420 = vperm.xlu0 %419, %v79
    %v421 = vpop.permute.xlu0 %420
    %424 = vset.pattern.permute.xlu0 0
    %425 = vperm.xlu0 %424, %v80
    %v426 = vpop.permute.xlu0 %425
    %429 = vset.pattern.permute.xlu0 0
    %430 = vperm.xlu0 %429, %v81
    %v431 = vpop.permute.xlu0 %430
    %434 = vset.pattern.permute.xlu0 0
    %435 = vperm.xlu0 %434, %v82
    %v436 = vpop.permute.xlu0 %435
    %439 = vset.pattern.permute.xlu0 0
    %440 = vperm.xlu0 %439, %v83
    %v441 = vpop.permute.xlu0 %440
    %444 = vset.pattern.permute.xlu0 0
    %445 = vperm.xlu0 %444, %v84
    %v446 = vpop.permute.xlu0 %445
    %449 = vset.pattern.permute.xlu0 0
    %450 = vperm.xlu0 %449, %v85
    %v451 = vpop.permute.xlu0 %450
    %454 = vset.pattern.permute.xlu0 0
    %455 = vperm.xlu0 %454, %v86
    %v456 = vpop.permute.xlu0 %455
    %459 = vset.pattern.permute.xlu0 0
    %460 = vperm.xlu0 %459, %v87
    %v461 = vpop.permute.xlu0 %460
    %464 = vset.pattern.permute.xlu0 0
    %465 = vperm.xlu0 %464, %v88
    %v466 = vpop.permute.xlu0 %465
    %469 = vset.pattern.permute.xlu0 0
    %470 = vperm.xlu0 %469, %v89
    %v471 = vpop.permute.xlu0 %470
    %474 = vset.pattern.permute.xlu0 0
    %475 = vperm.xlu0 %474, %v90
    %v476 = vpop.permute.xlu0 %475
    %479 = vset.pattern.permute.xlu0 0
    %480 = vperm.xlu0 %479, %v91
    %v481 = vpop.permute.xlu0 %480
    %484 = vset.pattern.permute.xlu0 0
    %485 = vperm.xlu0 %484, %v92
    %v486 = vpop.permute.xlu0 %485
    %489 = vset.pattern.permute.xlu0 0
    %490 = vperm.xlu0 %489, %v93
    %v491 = vpop.permute.xlu0 %490
    %494 = vset.pattern.permute.xlu0 0
    %495 = vperm.xlu0 %494, %v94
    %v496 = vpop.permute.xlu0 %495
    %499 = vset.pattern.permute.xlu0 0
    %500 = vperm.xlu0 %499, %v95
    %v501 = vpop.permute.xlu0 %500
    %504 = vset.pattern.permute.xlu0 0
    %505 = vperm.xlu0 %504, %v96
    %v506 = vpop.permute.xlu0 %505
    %509 = vset.pattern.permute.xlu0 0
    %510 = vperm.xlu0 %509, %v97
    %v511 = vpop.permute.xlu0 %510
    %514 = vset.pattern.permute.xlu0 0
    %515 = vperm.xlu0 %514, %v98
    %v516 = vpop.permute.xlu0 %515
    %519 = vset.pattern.permute.xlu0 0
    %520 = vperm.xlu0 %519, %v99
    %v521 = vpop.permute.xlu0 %520
    %524 = vset.pattern.permute.xlu0 0
    %525 = vperm.xlu0 %524, %v100
    %v526 = vpop.permute.xlu0 %525
    %529 = vset.pattern.permute.xlu0 0
    %530 = vperm.xlu0 %529, %v101
    %v531 = vpop.permute.xlu0 %530
    %534 = vset.pattern.permute.xlu0 0
    %535 = vperm.xlu0 %534, %v102
    %v536 = vpop.permute.xlu0 %535
    %539 = vset.pattern.permute.xlu0 0
    %540 = vperm.xlu0 %539, %v103
    %v541 = vpop.permute.xlu0 %540
    %544 = vset.pattern.permute.xlu0 0
    %545 = vperm.xlu0 %544, %v104
    %v546 = vpop.permute.xlu0 %545
    %549 = vset.pattern.permute.xlu0 0
    %550 = vperm.xlu0 %549, %v105
    %v551 = vpop.permute.xlu0 %550
    %554 = vset.pattern.permute.xlu0 0
    %555 = vperm.xlu0 %554, %v106
    %v556 = vpop.permute.xlu0 %555
    %559 = vset.pattern.permute.xlu0 0
    %560 = vperm.xlu0 %559, %v107
    %v561 = vpop.permute.xlu0 %560
    %564 = vset.pattern.permute.xlu0 0
    %565 = vperm.xlu0 %564, %v108
    %v566 = vpop.permute.xlu0 %565
    %569 = vset.pattern.permute.xlu0 0
    %570 = vperm.xlu0 %569, %v109
    %v571 = vpop.permute.xlu0 %570
    %574 = vset.pattern.permute.xlu0 0
    %575 = vperm.xlu0 %574, %v110
    %v576 = vpop.permute.xlu0 %575
    %579 = vset.pattern.permute.xlu0 0
    %580 = vperm.xlu0 %579, %v111
    %v581 = vpop.permute.xlu0 %580
    %584 = vset.pattern.permute.xlu0 0
    %585 = vperm.xlu0 %584, %v112
    %v586 = vpop.permute.xlu0 %585
    %589 = vset.pattern.permute.xlu0 0
    %590 = vperm.xlu0 %589, %v113
    %v591 = vpop.permute.xlu0 %590
    %594 = vset.pattern.permute.xlu0 0
    %595 = vperm.xlu0 %594, %v114
    %v596 = vpop.permute.xlu0 %595
    %599 = vset.pattern.permute.xlu0 0
    %600 = vperm.xlu0 %599, %v115
    %v601 = vpop.permute.xlu0 %600
    %604 = vset.pattern.permute.xlu0 0
    %605 = vperm.xlu0 %604, %v116
    %v606 = vpop.permute.xlu0 %605
    %609 = vset.pattern.permute.xlu0 0
    %610 = vperm.xlu0 %609, %v117
    %v611 = vpop.permute.xlu0 %610
    %614 = vset.pattern.permute.xlu0 0
    %615 = vperm.xlu0 %614, %v118
    %v616 = vpop.permute.xlu0 %615
    %619 = vset.pattern.permute.xlu0 0
    %620 = vperm.xlu0 %619, %v119
    %v621 = vpop.permute.xlu0 %620
    %624 = vset.pattern.permute.xlu0 0
    %625 = vperm.xlu0 %624, %v120
    %v626 = vpop.permute.xlu0 %625
    %629 = vset.pattern.permute.xlu0 0
    %630 = vperm.xlu0 %629, %v121
    %v631 = vpop.permute.xlu0 %630
    %634 = vset.pattern.permute.xlu0 0
    %635 = vperm.xlu0 %634, %v122
    %v636 = vpop.permute.xlu0 %635
    %639 = vset.pattern.permute.xlu0 0
    %640 = vperm.xlu0 %639, %v123
    %v641 = vpop.permute.xlu0 %640
    %644 = vset.pattern.permute.xlu0 0
    %645 = vperm.xlu0 %644, %v124
    %v646 = vpop.permute.xlu0 %645
    %649 = vset.pattern.permute.xlu0 0
    %650 = vperm.xlu0 %649, %v125
    %v651 = vpop.permute.xlu0 %650
    %654 = vset.pattern.permute.xlu0 0
    %655 = vperm.xlu0 %654, %v126
    %v656 = vpop.permute.xlu0 %655
    %659 = vset.pattern.permute.xlu0 0
    %660 = vperm.xlu0 %659, %v127
    %v661 = vpop.permute.xlu0 %660
    %664 = vset.pattern.permute.xlu0 0
    %665 = vperm.xlu0 %664, %v128
    %v666 = vpop.permute.xlu0 %665
    %669 = vset.pattern.permute.xlu0 0
    %670 = vperm.xlu0 %669, %v129
    %v671 = vpop.permute.xlu0 %670
    %674 = vset.pattern.permute.xlu0 0
    %675 = vperm.xlu0 %674, %v130
    %v676 = vpop.permute.xlu0 %675
    %679 = vset.pattern.permute.xlu0 0
    %680 = vperm.xlu0 %679, %v131
    %v681 = vpop.permute.xlu0 %680
    %684 = vset.pattern.permute.xlu0 0
    %685 = vperm.xlu0 %684, %v132
    %v686 = vpop.permute.xlu0 %685
    %689 = vset.pattern.permute.xlu0 0
    %690 = vperm.xlu0 %689, %v133
    %v691 = vpop.permute.xlu0 %690
    %694 = vset.pattern.permute.xlu0 0
    %695 = vperm.xlu0 %694, %v134
    %v696 = vpop.permute.xlu0 %695
    %699 = vset.pattern.permute.xlu0 0
    %700 = vperm.xlu0 %699, %v135
    %v701 = vpop.permute.xlu0 %700
    %704 = vset.pattern.permute.xlu0 0
    %705 = vperm.xlu0 %704, %v136
    %v706 = vpop.permute.xlu0 %705
    %709 = vset.pattern.permute.xlu0 0
    %710 = vperm.xlu0 %709, %v137
    %v711 = vpop.permute.xlu0 %710
    %714 = vset.pattern.permute.xlu0 0
    %715 = vperm.xlu0 %714, %v138
    %v716 = vpop.permute.xlu0 %715
    %719 = vset.pattern.permute.xlu0 0
    %720 = vperm.xlu0 %719, %v139
    %v721 = vpop.permute.xlu0 %720
    %724 = vset.pattern.permute.xlu0 0
    %725 = vperm.xlu0 %724, %v140
    %v726 = vpop.permute.xlu0 %725
    %729 = vset.pattern.permute.xlu0 0
    %730 = vperm.xlu0 %729, %v141
    %v731 = vpop.permute.xlu0 %730
    %734 = vset.pattern.permute.xlu0 0
    %735 = vperm.xlu0 %734, %v142
    %v736 = vpop.permute.xlu0 %735
    %739 = vset.pattern.permute.xlu0 0
    %740 = vperm.xlu0 %739, %v143
    %v741 = vpop.permute.xlu0 %740
    %744 = vset.pattern.permute.xlu0 0
    %745 = vperm.xlu0 %744, %v144
    %v746 = vpop.permute.xlu0 %745
    %749 = vset.pattern.permute.xlu0 0
    %750 = vperm.xlu0 %749, %v145
    %v751 = vpop.permute.xlu0 %750
    %754 = vset.pattern.permute.xlu0 0
    %755 = vperm.xlu0 %754, %v146
    %v756 = vpop.permute.xlu0 %755
    %759 = vset.pattern.permute.xlu0 0
    %760 = vperm.xlu0 %759, %v147
    %v761 = vpop.permute.xlu0 %760
    %764 = vset.pattern.permute.xlu0 0
    %765 = vperm.xlu0 %764, %v148
    %v766 = vpop.permute.xlu0 %765
    %769 = vset.pattern.permute.xlu0 0
    %770 = vperm.xlu0 %769, %v149
    %v771 = vpop.permute.xlu0 %770
    %774 = vset.pattern.permute.xlu0 0
    %775 = vperm.xlu0 %774, %v150
    %v776 = vpop.permute.xlu0 %775
    %779 = vset.pattern.permute.xlu0 0
    %780 = vperm.xlu0 %779, %v151
    %v781 = vpop.permute.xlu0 %780
    %784 = vset.pattern.permute.xlu0 0
    %785 = vperm.xlu0 %784, %v152
    %v786 = vpop.permute.xlu0 %785
    %789 = vset.pattern.permute.xlu0 0
    %790 = vperm.xlu0 %789, %v153
    %v791 = vpop.permute.xlu0 %790
    %794 = vset.pattern.permute.xlu0 0
    %795 = vperm.xlu0 %794, %v154
    %v796 = vpop.permute.xlu0 %795
    %v800 = vperm.slane %v155, 0
    %v801 = vperm.slane %v155, 4
    %v802 = vperm.slane %v156, 0
    %v803 = vperm.slane %v156, 4
    %v808 = vperm.slane %v800, 0
    %v809 = vperm.slane %v801, 0
    %v810 = vperm.slane %v802, 0
    %v811 = vperm.slane %v803, 0
    %v812 = vmul.f32 %v161, %v808
    %v813 = vmul.f32 %v161, %v809
    %v814 = vmul.f32 %v161, %v810
    %v815 = vmul.f32 %v161, %v811
    %v816 = vmul.f32 %v166, %v808
    %v817 = vmul.f32 %v166, %v809
    %v818 = vmul.f32 %v166, %v810
    %v819 = vmul.f32 %v166, %v811
    %v820 = vmul.f32 %v171, %v808
    %v821 = vmul.f32 %v171, %v809
    %v822 = vmul.f32 %v171, %v810
    %v823 = vmul.f32 %v171, %v811
    %v824 = vmul.f32 %v176, %v808
    %v825 = vmul.f32 %v176, %v809
    %v826 = vmul.f32 %v176, %v810
    %v827 = vmul.f32 %v176, %v811
    %v828 = vmul.f32 %v181, %v808
    %v829 = vmul.f32 %v181, %v809
    %v830 = vmul.f32 %v181, %v810
    %v831 = vmul.f32 %v181, %v811
    %v832 = vmul.f32 %v186, %v808
    %v833 = vmul.f32 %v186, %v809
    %v834 = vmul.f32 %v186, %v810
    %v835 = vmul.f32 %v186, %v811
    %v836 = vmul.f32 %v191, %v808
    %v837 = vmul.f32 %v191, %v809
    %v838 = vmul.f32 %v191, %v810
    %v839 = vmul.f32 %v191, %v811
    %v840 = vmul.f32 %v196, %v808
    %v841 = vmul.f32 %v196, %v809
    %v842 = vmul.f32 %v196, %v810
    %v843 = vmul.f32 %v196, %v811
    %v844 = vmul.f32 %v201, %v808
    %v845 = vmul.f32 %v201, %v809
    %v846 = vmul.f32 %v201, %v810
    %v847 = vmul.f32 %v201, %v811
    %v848 = vmul.f32 %v206, %v808
    %v849 = vmul.f32 %v206, %v809
    %v850 = vmul.f32 %v206, %v810
    %v851 = vmul.f32 %v206, %v811
    %v852 = vmul.f32 %v211, %v808
    %v853 = vmul.f32 %v211, %v809
    %v854 = vmul.f32 %v211, %v810
    %v855 = vmul.f32 %v211, %v811
    %v856 = vmul.f32 %v216, %v808
    %v857 = vmul.f32 %v216, %v809
    %v858 = vmul.f32 %v216, %v810
    %v859 = vmul.f32 %v216, %v811
    %v860 = vmul.f32 %v221, %v808
    %v861 = vmul.f32 %v221, %v809
    %v862 = vmul.f32 %v221, %v810
    %v863 = vmul.f32 %v221, %v811
    %v864 = vmul.f32 %v226, %v808
    %v865 = vmul.f32 %v226, %v809
    %v866 = vmul.f32 %v226, %v810
    %v867 = vmul.f32 %v226, %v811
    %v868 = vmul.f32 %v231, %v808
    %v869 = vmul.f32 %v231, %v809
    %v870 = vmul.f32 %v231, %v810
    %v871 = vmul.f32 %v231, %v811
    %v872 = vmul.f32 %v236, %v808
    %v873 = vmul.f32 %v236, %v809
    %v874 = vmul.f32 %v236, %v810
    %v875 = vmul.f32 %v236, %v811
    %v876 = vmul.f32 %v241, %v808
    %v877 = vmul.f32 %v241, %v809
    %v878 = vmul.f32 %v241, %v810
    %v879 = vmul.f32 %v241, %v811
    %v880 = vmul.f32 %v246, %v808
    %v881 = vmul.f32 %v246, %v809
    %v882 = vmul.f32 %v246, %v810
    %v883 = vmul.f32 %v246, %v811
    %v884 = vmul.f32 %v251, %v808
    %v885 = vmul.f32 %v251, %v809
    %v886 = vmul.f32 %v251, %v810
    %v887 = vmul.f32 %v251, %v811
    %v888 = vmul.f32 %v256, %v808
    %v889 = vmul.f32 %v256, %v809
    %v890 = vmul.f32 %v256, %v810
    %v891 = vmul.f32 %v256, %v811
    %v892 = vmul.f32 %v261, %v808
    %v893 = vmul.f32 %v261, %v809
    %v894 = vmul.f32 %v261, %v810
    %v895 = vmul.f32 %v261, %v811
    %v896 = vmul.f32 %v266, %v808
    %v897 = vmul.f32 %v266, %v809
    %v898 = vmul.f32 %v266, %v810
    %v899 = vmul.f32 %v266, %v811
    %v900 = vmul.f32 %v271, %v808
    %v901 = vmul.f32 %v271, %v809
    %v902 = vmul.f32 %v271, %v810
    %v903 = vmul.f32 %v271, %v811
    %v904 = vmul.f32 %v276, %v808
    %v905 = vmul.f32 %v276, %v809
    %v906 = vmul.f32 %v276, %v810
    %v907 = vmul.f32 %v276, %v811
    %v908 = vmul.f32 %v281, %v808
    %v909 = vmul.f32 %v281, %v809
    %v910 = vmul.f32 %v281, %v810
    %v911 = vmul.f32 %v281, %v811
    %v912 = vmul.f32 %v286, %v808
    %v913 = vmul.f32 %v286, %v809
    %v914 = vmul.f32 %v286, %v810
    %v915 = vmul.f32 %v286, %v811
    %v916 = vmul.f32 %v291, %v808
    %v917 = vmul.f32 %v291, %v809
    %v918 = vmul.f32 %v291, %v810
    %v919 = vmul.f32 %v291, %v811
    %v920 = vmul.f32 %v296, %v808
    %v921 = vmul.f32 %v296, %v809
    %v922 = vmul.f32 %v296, %v810
    %v923 = vmul.f32 %v296, %v811
    %v924 = vmul.f32 %v301, %v808
    %v925 = vmul.f32 %v301, %v809
    %v926 = vmul.f32 %v301, %v810
    %v927 = vmul.f32 %v301, %v811
    %v928 = vmul.f32 %v306, %v808
    %v929 = vmul.f32 %v306, %v809
    %v930 = vmul.f32 %v306, %v810
    %v931 = vmul.f32 %v306, %v811
    %v932 = vmul.f32 %v311, %v808
    %v933 = vmul.f32 %v311, %v809
    %v934 = vmul.f32 %v311, %v810
    %v935 = vmul.f32 %v311, %v811
    %v936 = vmul.f32 %v316, %v808
    %v937 = vmul.f32 %v316, %v809
    %v938 = vmul.f32 %v316, %v810
    %v939 = vmul.f32 %v316, %v811
    %v940 = vmul.f32 %v321, %v808
    %v941 = vmul.f32 %v321, %v809
    %v942 = vmul.f32 %v321, %v810
    %v943 = vmul.f32 %v321, %v811
    %v944 = vmul.f32 %v326, %v808
    %v945 = vmul.f32 %v326, %v809
    %v946 = vmul.f32 %v326, %v810
    %v947 = vmul.f32 %v326, %v811
    %v948 = vmul.f32 %v331, %v808
    %v949 = vmul.f32 %v331, %v809
    %v950 = vmul.f32 %v331, %v810
    %v951 = vmul.f32 %v331, %v811
    %v952 = vmul.f32 %v336, %v808
    %v953 = vmul.f32 %v336, %v809
    %v954 = vmul.f32 %v336, %v810
    %v955 = vmul.f32 %v336, %v811
    %v956 = vmul.f32 %v341, %v808
    %v957 = vmul.f32 %v341, %v809
    %v958 = vmul.f32 %v341, %v810
    %v959 = vmul.f32 %v341, %v811
    %v960 = vmul.f32 %v346, %v808
    %v961 = vmul.f32 %v346, %v809
    %v962 = vmul.f32 %v346, %v810
    %v963 = vmul.f32 %v346, %v811
    %v964 = vmul.f32 %v351, %v808
    %v965 = vmul.f32 %v351, %v809
    %v966 = vmul.f32 %v351, %v810
    %v967 = vmul.f32 %v351, %v811
    %v968 = vmul.f32 %v356, %v808
    %v969 = vmul.f32 %v356, %v809
    %v970 = vmul.f32 %v356, %v810
    %v971 = vmul.f32 %v356, %v811
    %v972 = vmul.f32 %v361, %v808
    %v973 = vmul.f32 %v361, %v809
    %v974 = vmul.f32 %v361, %v810
    %v975 = vmul.f32 %v361, %v811
    %v976 = vmul.f32 %v366, %v808
    %v977 = vmul.f32 %v366, %v809
    %v978 = vmul.f32 %v366, %v810
    %v979 = vmul.f32 %v366, %v811
    %v980 = vmul.f32 %v371, %v808
    %v981 = vmul.f32 %v371, %v809
    %v982 = vmul.f32 %v371, %v810
    %v983 = vmul.f32 %v371, %v811
    %v984 = vmul.f32 %v376, %v808
    %v985 = vmul.f32 %v376, %v809
    %v986 = vmul.f32 %v376, %v810
    %v987 = vmul.f32 %v376, %v811
    %v988 = vmul.f32 %v381, %v808
    %v989 = vmul.f32 %v381, %v809
    %v990 = vmul.f32 %v381, %v810
    %v991 = vmul.f32 %v381, %v811
    %v992 = vmul.f32 %v386, %v808
    %v993 = vmul.f32 %v386, %v809
    %v994 = vmul.f32 %v386, %v810
    %v995 = vmul.f32 %v386, %v811
    %v996 = vmul.f32 %v391, %v808
    %v997 = vmul.f32 %v391, %v809
    %v998 = vmul.f32 %v391, %v810
    %v999 = vmul.f32 %v391, %v811
    %v1000 = vmul.f32 %v396, %v808
    %v1001 = vmul.f32 %v396, %v809
    %v1002 = vmul.f32 %v396, %v810
    %v1003 = vmul.f32 %v396, %v811
    %v1004 = vmul.f32 %v401, %v808
    %v1005 = vmul.f32 %v401, %v809
    %v1006 = vmul.f32 %v401, %v810
    %v1007 = vmul.f32 %v401, %v811
    %v1008 = vmul.f32 %v406, %v808
    %v1009 = vmul.f32 %v406, %v809
    %v1010 = vmul.f32 %v406, %v810
    %v1011 = vmul.f32 %v406, %v811
    %v1012 = vmul.f32 %v411, %v808
    %v1013 = vmul.f32 %v411, %v809
    %v1014 = vmul.f32 %v411, %v810
    %v1015 = vmul.f32 %v411, %v811
    %v1016 = vmul.f32 %v416, %v808
    %v1017 = vmul.f32 %v416, %v809
    %v1018 = vmul.f32 %v416, %v810
    %v1019 = vmul.f32 %v416, %v811
    %v1020 = vmul.f32 %v421, %v808
    %v1021 = vmul.f32 %v421, %v809
    %v1022 = vmul.f32 %v421, %v810
    %v1023 = vmul.f32 %v421, %v811
    %v1024 = vmul.f32 %v426, %v808
    %v1025 = vmul.f32 %v426, %v809
    %v1026 = vmul.f32 %v426, %v810
    %v1027 = vmul.f32 %v426, %v811
    %v1028 = vmul.f32 %v431, %v808
    %v1029 = vmul.f32 %v431, %v809
    %v1030 = vmul.f32 %v431, %v810
    %v1031 = vmul.f32 %v431, %v811
    %v1032 = vmul.f32 %v436, %v808
    %v1033 = vmul.f32 %v436, %v809
    %v1034 = vmul.f32 %v436, %v810
    %v1035 = vmul.f32 %v436, %v811
    %v1036 = vmul.f32 %v441, %v808
    %v1037 = vmul.f32 %v441, %v809
    %v1038 = vmul.f32 %v441, %v810
    %v1039 = vmul.f32 %v441, %v811
    %v1040 = vmul.f32 %v446, %v808
    %v1041 = vmul.f32 %v446, %v809
    %v1042 = vmul.f32 %v446, %v810
    %v1043 = vmul.f32 %v446, %v811
    %v1044 = vmul.f32 %v451, %v808
    %v1045 = vmul.f32 %v451, %v809
    %v1046 = vmul.f32 %v451, %v810
    %v1047 = vmul.f32 %v451, %v811
    %v1048 = vmul.f32 %v456, %v808
    %v1049 = vmul.f32 %v456, %v809
    %v1050 = vmul.f32 %v456, %v810
    %v1051 = vmul.f32 %v456, %v811
    %v1052 = vmul.f32 %v461, %v808
    %v1053 = vmul.f32 %v461, %v809
    %v1054 = vmul.f32 %v461, %v810
    %v1055 = vmul.f32 %v461, %v811
    %v1056 = vmul.f32 %v466, %v808
    %v1057 = vmul.f32 %v466, %v809
    %v1058 = vmul.f32 %v466, %v810
    %v1059 = vmul.f32 %v466, %v811
    %v1060 = vmul.f32 %v471, %v808
    %v1061 = vmul.f32 %v471, %v809
    %v1062 = vmul.f32 %v471, %v810
    %v1063 = vmul.f32 %v471, %v811
    %v1064 = vmul.f32 %v476, %v808
    %v1065 = vmul.f32 %v476, %v809
    %v1066 = vmul.f32 %v476, %v810
    %v1067 = vmul.f32 %v476, %v811
    %v1068 = vmul.f32 %v481, %v808
    %v1069 = vmul.f32 %v481, %v809
    %v1070 = vmul.f32 %v481, %v810
    %v1071 = vmul.f32 %v481, %v811
    %v1072 = vmul.f32 %v486, %v808
    %v1073 = vmul.f32 %v486, %v809
    %v1074 = vmul.f32 %v486, %v810
    %v1075 = vmul.f32 %v486, %v811
    %v1076 = vmul.f32 %v491, %v808
    %v1077 = vmul.f32 %v491, %v809
    %v1078 = vmul.f32 %v491, %v810
    %v1079 = vmul.f32 %v491, %v811
    %v1080 = vmul.f32 %v496, %v808
    %v1081 = vmul.f32 %v496, %v809
    %v1082 = vmul.f32 %v496, %v810
    %v1083 = vmul.f32 %v496, %v811
    %v1084 = vmul.f32 %v501, %v808
    %v1085 = vmul.f32 %v501, %v809
    %v1086 = vmul.f32 %v501, %v810
    %v1087 = vmul.f32 %v501, %v811
    %v1088 = vmul.f32 %v506, %v808
    %v1089 = vmul.f32 %v506, %v809
    %v1090 = vmul.f32 %v506, %v810
    %v1091 = vmul.f32 %v506, %v811
    %v1092 = vmul.f32 %v511, %v808
    %v1093 = vmul.f32 %v511, %v809
    %v1094 = vmul.f32 %v511, %v810
    %v1095 = vmul.f32 %v511, %v811
    %v1096 = vmul.f32 %v516, %v808
    %v1097 = vmul.f32 %v516, %v809
    %v1098 = vmul.f32 %v516, %v810
    %v1099 = vmul.f32 %v516, %v811
    %v1100 = vmul.f32 %v521, %v808
    %v1101 = vmul.f32 %v521, %v809
    %v1102 = vmul.f32 %v521, %v810
    %v1103 = vmul.f32 %v521, %v811
    %v1104 = vmul.f32 %v526, %v808
    %v1105 = vmul.f32 %v526, %v809
    %v1106 = vmul.f32 %v526, %v810
    %v1107 = vmul.f32 %v526, %v811
    %v1108 = vmul.f32 %v531, %v808
    %v1109 = vmul.f32 %v531, %v809
    %v1110 = vmul.f32 %v531, %v810
    %v1111 = vmul.f32 %v531, %v811
    %v1112 = vmul.f32 %v536, %v808
    %v1113 = vmul.f32 %v536, %v809
    %v1114 = vmul.f32 %v536, %v810
    %v1115 = vmul.f32 %v536, %v811
    %v1116 = vmul.f32 %v541, %v808
    %v1117 = vmul.f32 %v541, %v809
    %v1118 = vmul.f32 %v541, %v810
    %v1119 = vmul.f32 %v541, %v811
    %v1120 = vmul.f32 %v546, %v808
    %v1121 = vmul.f32 %v546, %v809
    %v1122 = vmul.f32 %v546, %v810
    %v1123 = vmul.f32 %v546, %v811
    %v1124 = vmul.f32 %v551, %v808
    %v1125 = vmul.f32 %v551, %v809
    %v1126 = vmul.f32 %v551, %v810
    %v1127 = vmul.f32 %v551, %v811
    %v1128 = vmul.f32 %v556, %v808
    %v1129 = vmul.f32 %v556, %v809
    %v1130 = vmul.f32 %v556, %v810
    %v1131 = vmul.f32 %v556, %v811
    %v1132 = vmul.f32 %v561, %v808
    %v1133 = vmul.f32 %v561, %v809
    %v1134 = vmul.f32 %v561, %v810
    %v1135 = vmul.f32 %v561, %v811
    %v1136 = vmul.f32 %v566, %v808
    %v1137 = vmul.f32 %v566, %v809
    %v1138 = vmul.f32 %v566, %v810
    %v1139 = vmul.f32 %v566, %v811
    %v1140 = vmul.f32 %v571, %v808
    %v1141 = vmul.f32 %v571, %v809
    %v1142 = vmul.f32 %v571, %v810
    %v1143 = vmul.f32 %v571, %v811
    %v1144 = vmul.f32 %v576, %v808
    %v1145 = vmul.f32 %v576, %v809
    %v1146 = vmul.f32 %v576, %v810
    %v1147 = vmul.f32 %v576, %v811
    %v1148 = vmul.f32 %v581, %v808
    %v1149 = vmul.f32 %v581, %v809
    %v1150 = vmul.f32 %v581, %v810
    %v1151 = vmul.f32 %v581, %v811
    %v1152 = vmul.f32 %v586, %v808
    %v1153 = vmul.f32 %v586, %v809
    %v1154 = vmul.f32 %v586, %v810
    %v1155 = vmul.f32 %v586, %v811
    %v1156 = vmul.f32 %v591, %v808
    %v1157 = vmul.f32 %v591, %v809
    %v1158 = vmul.f32 %v591, %v810
    %v1159 = vmul.f32 %v591, %v811
    %v1160 = vmul.f32 %v596, %v808
    %v1161 = vmul.f32 %v596, %v809
    %v1162 = vmul.f32 %v596, %v810
    %v1163 = vmul.f32 %v596, %v811
    %v1164 = vmul.f32 %v601, %v808
    %v1165 = vmul.f32 %v601, %v809
    %v1166 = vmul.f32 %v601, %v810
    %v1167 = vmul.f32 %v601, %v811
    %v1168 = vmul.f32 %v606, %v808
    %v1169 = vmul.f32 %v606, %v809
    %v1170 = vmul.f32 %v606, %v810
    %v1171 = vmul.f32 %v606, %v811
    %v1172 = vmul.f32 %v611, %v808
    %v1173 = vmul.f32 %v611, %v809
    %v1174 = vmul.f32 %v611, %v810
    %v1175 = vmul.f32 %v611, %v811
    %v1176 = vmul.f32 %v616, %v808
    %v1177 = vmul.f32 %v616, %v809
    %v1178 = vmul.f32 %v616, %v810
    %v1179 = vmul.f32 %v616, %v811
    %v1180 = vmul.f32 %v621, %v808
    %v1181 = vmul.f32 %v621, %v809
    %v1182 = vmul.f32 %v621, %v810
    %v1183 = vmul.f32 %v621, %v811
    %v1184 = vmul.f32 %v626, %v808
    %v1185 = vmul.f32 %v626, %v809
    %v1186 = vmul.f32 %v626, %v810
    %v1187 = vmul.f32 %v626, %v811
    %v1188 = vmul.f32 %v631, %v808
    %v1189 = vmul.f32 %v631, %v809
    %v1190 = vmul.f32 %v631, %v810
    %v1191 = vmul.f32 %v631, %v811
    %v1192 = vmul.f32 %v636, %v808
    %v1193 = vmul.f32 %v636, %v809
    %v1194 = vmul.f32 %v636, %v810
    %v1195 = vmul.f32 %v636, %v811
    %v1196 = vmul.f32 %v641, %v808
    %v1197 = vmul.f32 %v641, %v809
    %v1198 = vmul.f32 %v641, %v810
    %v1199 = vmul.f32 %v641, %v811
    %v1200 = vmul.f32 %v646, %v808
    %v1201 = vmul.f32 %v646, %v809
    %v1202 = vmul.f32 %v646, %v810
    %v1203 = vmul.f32 %v646, %v811
    %v1204 = vmul.f32 %v651, %v808
    %v1205 = vmul.f32 %v651, %v809
    %v1206 = vmul.f32 %v651, %v810
    %v1207 = vmul.f32 %v651, %v811
    %v1208 = vmul.f32 %v656, %v808
    %v1209 = vmul.f32 %v656, %v809
    %v1210 = vmul.f32 %v656, %v810
    %v1211 = vmul.f32 %v656, %v811
    %v1212 = vmul.f32 %v661, %v808
    %v1213 = vmul.f32 %v661, %v809
    %v1214 = vmul.f32 %v661, %v810
    %v1215 = vmul.f32 %v661, %v811
    %v1216 = vmul.f32 %v666, %v808
    %v1217 = vmul.f32 %v666, %v809
    %v1218 = vmul.f32 %v666, %v810
    %v1219 = vmul.f32 %v666, %v811
    %v1220 = vmul.f32 %v671, %v808
    %v1221 = vmul.f32 %v671, %v809
    %v1222 = vmul.f32 %v671, %v810
    %v1223 = vmul.f32 %v671, %v811
    %v1224 = vmul.f32 %v676, %v808
    %v1225 = vmul.f32 %v676, %v809
    %v1226 = vmul.f32 %v676, %v810
    %v1227 = vmul.f32 %v676, %v811
    %v1228 = vmul.f32 %v681, %v808
    %v1229 = vmul.f32 %v681, %v809
    %v1230 = vmul.f32 %v681, %v810
    %v1231 = vmul.f32 %v681, %v811
    %v1232 = vmul.f32 %v686, %v808
    %v1233 = vmul.f32 %v686, %v809
    %v1234 = vmul.f32 %v686, %v810
    %v1235 = vmul.f32 %v686, %v811
    %v1236 = vmul.f32 %v691, %v808
    %v1237 = vmul.f32 %v691, %v809
    %v1238 = vmul.f32 %v691, %v810
    %v1239 = vmul.f32 %v691, %v811
    %v1240 = vmul.f32 %v696, %v808
    %v1241 = vmul.f32 %v696, %v809
    %v1242 = vmul.f32 %v696, %v810
    %v1243 = vmul.f32 %v696, %v811
    %v1244 = vmul.f32 %v701, %v808
    %v1245 = vmul.f32 %v701, %v809
    %v1246 = vmul.f32 %v701, %v810
    %v1247 = vmul.f32 %v701, %v811
    %v1248 = vmul.f32 %v706, %v808
    %v1249 = vmul.f32 %v706, %v809
    %v1250 = vmul.f32 %v706, %v810
    %v1251 = vmul.f32 %v706, %v811
    %v1252 = vmul.f32 %v711, %v808
    %v1253 = vmul.f32 %v711, %v809
    %v1254 = vmul.f32 %v711, %v810
    %v1255 = vmul.f32 %v711, %v811
    %v1256 = vmul.f32 %v716, %v808
    %v1257 = vmul.f32 %v716, %v809
    %v1258 = vmul.f32 %v716, %v810
    %v1259 = vmul.f32 %v716, %v811
    %v1260 = vmul.f32 %v721, %v808
    %v1261 = vmul.f32 %v721, %v809
    %v1262 = vmul.f32 %v721, %v810
    %v1263 = vmul.f32 %v721, %v811
    %v1264 = vmul.f32 %v726, %v808
    %v1265 = vmul.f32 %v726, %v809
    %v1266 = vmul.f32 %v726, %v810
    %v1267 = vmul.f32 %v726, %v811
    %v1268 = vmul.f32 %v731, %v808
    %v1269 = vmul.f32 %v731, %v809
    %v1270 = vmul.f32 %v731, %v810
    %v1271 = vmul.f32 %v731, %v811
    %v1272 = vmul.f32 %v736, %v808
    %v1273 = vmul.f32 %v736, %v809
    %v1274 = vmul.f32 %v736, %v810
    %v1275 = vmul.f32 %v736, %v811
    %v1276 = vmul.f32 %v741, %v808
    %v1277 = vmul.f32 %v741, %v809
    %v1278 = vmul.f32 %v741, %v810
    %v1279 = vmul.f32 %v741, %v811
    %v1280 = vmul.f32 %v746, %v808
    %v1281 = vmul.f32 %v746, %v809
    %v1282 = vmul.f32 %v746, %v810
    %v1283 = vmul.f32 %v746, %v811
    %v1284 = vmul.f32 %v751, %v808
    %v1285 = vmul.f32 %v751, %v809
    %v1286 = vmul.f32 %v751, %v810
    %v1287 = vmul.f32 %v751, %v811
    %v1288 = vmul.f32 %v756, %v808
    %v1289 = vmul.f32 %v756, %v809
    %v1290 = vmul.f32 %v756, %v810
    %v1291 = vmul.f32 %v756, %v811
    %v1292 = vmul.f32 %v761, %v808
    %v1293 = vmul.f32 %v761, %v809
    %v1294 = vmul.f32 %v761, %v810
    %v1295 = vmul.f32 %v761, %v811
    %v1296 = vmul.f32 %v766, %v808
    %v1297 = vmul.f32 %v766, %v809
    %v1298 = vmul.f32 %v766, %v810
    %v1299 = vmul.f32 %v766, %v811
    %v1300 = vmul.f32 %v771, %v808
    %v1301 = vmul.f32 %v771, %v809
    %v1302 = vmul.f32 %v771, %v810
    %v1303 = vmul.f32 %v771, %v811
    %v1304 = vmul.f32 %v776, %v808
    %v1305 = vmul.f32 %v776, %v809
    %v1306 = vmul.f32 %v776, %v810
    %v1307 = vmul.f32 %v776, %v811
    %v1308 = vmul.f32 %v781, %v808
    %v1309 = vmul.f32 %v781, %v809
    %v1310 = vmul.f32 %v781, %v810
    %v1311 = vmul.f32 %v781, %v811
    %v1312 = vmul.f32 %v786, %v808
    %v1313 = vmul.f32 %v786, %v809
    %v1314 = vmul.f32 %v786, %v810
    %v1315 = vmul.f32 %v786, %v811
    %v1316 = vmul.f32 %v791, %v808
    %v1317 = vmul.f32 %v791, %v809
    %v1318 = vmul.f32 %v791, %v810
    %v1319 = vmul.f32 %v791, %v811
    %v1320 = vmul.f32 %v796, %v808
    %v1321 = vmul.f32 %v796, %v809
    %v1322 = vmul.f32 %v796, %v810
    %v1323 = vmul.f32 %v796, %v811
    %v1325 = vperm.slane %v157, 0
    %v1326 = vperm.slane %v157, 1
    %v1327 = vperm.slane %v157, 2
    %v1328 = vperm.slane %v157, 3
    %v1333 = vadd.f32 %v1325, %v812
    %v1334 = vadd.f32 %v1326, %v813
    %v1335 = vadd.f32 %v1327, %v814
    %v1336 = vadd.f32 %v1328, %v815
    %v1337 = vadd.f32 %v1325, %v816
    %v1338 = vadd.f32 %v1326, %v817
    %v1339 = vadd.f32 %v1327, %v818
    %v1340 = vadd.f32 %v1328, %v819
    %v1341 = vadd.f32 %v1325, %v820
    %v1342 = vadd.f32 %v1326, %v821
    %v1343 = vadd.f32 %v1327, %v822
    %v1344 = vadd.f32 %v1328, %v823
    %v1345 = vadd.f32 %v1325, %v824
    %v1346 = vadd.f32 %v1326, %v825
    %v1347 = vadd.f32 %v1327, %v826
    %v1348 = vadd.f32 %v1328, %v827
    %v1349 = vadd.f32 %v1325, %v828
    %v1350 = vadd.f32 %v1326, %v829
    %v1351 = vadd.f32 %v1327, %v830
    %v1352 = vadd.f32 %v1328, %v831
    %v1353 = vadd.f32 %v1325, %v832
    %v1354 = vadd.f32 %v1326, %v833
    %v1355 = vadd.f32 %v1327, %v834
    %v1356 = vadd.f32 %v1328, %v835
    %v1357 = vadd.f32 %v1325, %v836
    %v1358 = vadd.f32 %v1326, %v837
    %v1359 = vadd.f32 %v1327, %v838
    %v1360 = vadd.f32 %v1328, %v839
    %v1361 = vadd.f32 %v1325, %v840
    %v1362 = vadd.f32 %v1326, %v841
    %v1363 = vadd.f32 %v1327, %v842
    %v1364 = vadd.f32 %v1328, %v843
    %v1365 = vadd.f32 %v1325, %v844
    %v1366 = vadd.f32 %v1326, %v845
    %v1367 = vadd.f32 %v1327, %v846
    %v1368 = vadd.f32 %v1328, %v847
    %v1369 = vadd.f32 %v1325, %v848
    %v1370 = vadd.f32 %v1326, %v849
    %v1371 = vadd.f32 %v1327, %v850
    %v1372 = vadd.f32 %v1328, %v851
    %v1373 = vadd.f32 %v1325, %v852
    %v1374 = vadd.f32 %v1326, %v853
    %v1375 = vadd.f32 %v1327, %v854
    %v1376 = vadd.f32 %v1328, %v855
    %v1377 = vadd.f32 %v1325, %v856
    %v1378 = vadd.f32 %v1326, %v857
    %v1379 = vadd.f32 %v1327, %v858
    %v1380 = vadd.f32 %v1328, %v859
    %v1381 = vadd.f32 %v1325, %v860
    %v1382 = vadd.f32 %v1326, %v861
    %v1383 = vadd.f32 %v1327, %v862
    %v1384 = vadd.f32 %v1328, %v863
    %v1385 = vadd.f32 %v1325, %v864
    %v1386 = vadd.f32 %v1326, %v865
    %v1387 = vadd.f32 %v1327, %v866
    %v1388 = vadd.f32 %v1328, %v867
    %v1389 = vadd.f32 %v1325, %v868
    %v1390 = vadd.f32 %v1326, %v869
    %v1391 = vadd.f32 %v1327, %v870
    %v1392 = vadd.f32 %v1328, %v871
    %v1393 = vadd.f32 %v1325, %v872
    %v1394 = vadd.f32 %v1326, %v873
    %v1395 = vadd.f32 %v1327, %v874
    %v1396 = vadd.f32 %v1328, %v875
    %v1397 = vadd.f32 %v1325, %v876
    %v1398 = vadd.f32 %v1326, %v877
    %v1399 = vadd.f32 %v1327, %v878
    %v1400 = vadd.f32 %v1328, %v879
    %v1401 = vadd.f32 %v1325, %v880
    %v1402 = vadd.f32 %v1326, %v881
    %v1403 = vadd.f32 %v1327, %v882
    %v1404 = vadd.f32 %v1328, %v883
    %v1405 = vadd.f32 %v1325, %v884
    %v1406 = vadd.f32 %v1326, %v885
    %v1407 = vadd.f32 %v1327, %v886
    %v1408 = vadd.f32 %v1328, %v887
    %v1409 = vadd.f32 %v1325, %v888
    %v1410 = vadd.f32 %v1326, %v889
    %v1411 = vadd.f32 %v1327, %v890
    %v1412 = vadd.f32 %v1328, %v891
    %v1413 = vadd.f32 %v1325, %v892
    %v1414 = vadd.f32 %v1326, %v893
    %v1415 = vadd.f32 %v1327, %v894
    %v1416 = vadd.f32 %v1328, %v895
    %v1417 = vadd.f32 %v1325, %v896
    %v1418 = vadd.f32 %v1326, %v897
    %v1419 = vadd.f32 %v1327, %v898
    %v1420 = vadd.f32 %v1328, %v899
    %v1421 = vadd.f32 %v1325, %v900
    %v1422 = vadd.f32 %v1326, %v901
    %v1423 = vadd.f32 %v1327, %v902
    %v1424 = vadd.f32 %v1328, %v903
    %v1425 = vadd.f32 %v1325, %v904
    %v1426 = vadd.f32 %v1326, %v905
    %v1427 = vadd.f32 %v1327, %v906
    %v1428 = vadd.f32 %v1328, %v907
    %v1429 = vadd.f32 %v1325, %v908
    %v1430 = vadd.f32 %v1326, %v909
    %v1431 = vadd.f32 %v1327, %v910
    %v1432 = vadd.f32 %v1328, %v911
    %v1433 = vadd.f32 %v1325, %v912
    %v1434 = vadd.f32 %v1326, %v913
    %v1435 = vadd.f32 %v1327, %v914
    %v1436 = vadd.f32 %v1328, %v915
    %v1437 = vadd.f32 %v1325, %v916
    %v1438 = vadd.f32 %v1326, %v917
    %v1439 = vadd.f32 %v1327, %v918
    %v1440 = vadd.f32 %v1328, %v919
    %v1441 = vadd.f32 %v1325, %v920
    %v1442 = vadd.f32 %v1326, %v921
    %v1443 = vadd.f32 %v1327, %v922
    %v1444 = vadd.f32 %v1328, %v923
    %v1445 = vadd.f32 %v1325, %v924
    %v1446 = vadd.f32 %v1326, %v925
    %v1447 = vadd.f32 %v1327, %v926
    %v1448 = vadd.f32 %v1328, %v927
    %v1449 = vadd.f32 %v1325, %v928
    %v1450 = vadd.f32 %v1326, %v929
    %v1451 = vadd.f32 %v1327, %v930
    %v1452 = vadd.f32 %v1328, %v931
    %v1453 = vadd.f32 %v1325, %v932
    %v1454 = vadd.f32 %v1326, %v933
    %v1455 = vadd.f32 %v1327, %v934
    %v1456 = vadd.f32 %v1328, %v935
    %v1457 = vadd.f32 %v1325, %v936
    %v1458 = vadd.f32 %v1326, %v937
    %v1459 = vadd.f32 %v1327, %v938
    %v1460 = vadd.f32 %v1328, %v939
    %v1461 = vadd.f32 %v1325, %v940
    %v1462 = vadd.f32 %v1326, %v941
    %v1463 = vadd.f32 %v1327, %v942
    %v1464 = vadd.f32 %v1328, %v943
    %v1465 = vadd.f32 %v1325, %v944
    %v1466 = vadd.f32 %v1326, %v945
    %v1467 = vadd.f32 %v1327, %v946
    %v1468 = vadd.f32 %v1328, %v947
    %v1469 = vadd.f32 %v1325, %v948
    %v1470 = vadd.f32 %v1326, %v949
    %v1471 = vadd.f32 %v1327, %v950
    %v1472 = vadd.f32 %v1328, %v951
    %v1473 = vadd.f32 %v1325, %v952
    %v1474 = vadd.f32 %v1326, %v953
    %v1475 = vadd.f32 %v1327, %v954
    %v1476 = vadd.f32 %v1328, %v955
    %v1477 = vadd.f32 %v1325, %v956
    %v1478 = vadd.f32 %v1326, %v957
    %v1479 = vadd.f32 %v1327, %v958
    %v1480 = vadd.f32 %v1328, %v959
    %v1481 = vadd.f32 %v1325, %v960
    %v1482 = vadd.f32 %v1326, %v961
    %v1483 = vadd.f32 %v1327, %v962
    %v1484 = vadd.f32 %v1328, %v963
    %v1485 = vadd.f32 %v1325, %v964
    %v1486 = vadd.f32 %v1326, %v965
    %v1487 = vadd.f32 %v1327, %v966
    %v1488 = vadd.f32 %v1328, %v967
    %v1489 = vadd.f32 %v1325, %v968
    %v1490 = vadd.f32 %v1326, %v969
    %v1491 = vadd.f32 %v1327, %v970
    %v1492 = vadd.f32 %v1328, %v971
    %v1493 = vadd.f32 %v1325, %v972
    %v1494 = vadd.f32 %v1326, %v973
    %v1495 = vadd.f32 %v1327, %v974
    %v1496 = vadd.f32 %v1328, %v975
    %v1497 = vadd.f32 %v1325, %v976
    %v1498 = vadd.f32 %v1326, %v977
    %v1499 = vadd.f32 %v1327, %v978
    %v1500 = vadd.f32 %v1328, %v979
    %v1501 = vadd.f32 %v1325, %v980
    %v1502 = vadd.f32 %v1326, %v981
    %v1503 = vadd.f32 %v1327, %v982
    %v1504 = vadd.f32 %v1328, %v983
    %v1505 = vadd.f32 %v1325, %v984
    %v1506 = vadd.f32 %v1326, %v985
    %v1507 = vadd.f32 %v1327, %v986
    %v1508 = vadd.f32 %v1328, %v987
    %v1509 = vadd.f32 %v1325, %v988
    %v1510 = vadd.f32 %v1326, %v989
    %v1511 = vadd.f32 %v1327, %v990
    %v1512 = vadd.f32 %v1328, %v991
    %v1513 = vadd.f32 %v1325, %v992
    %v1514 = vadd.f32 %v1326, %v993
    %v1515 = vadd.f32 %v1327, %v994
    %v1516 = vadd.f32 %v1328, %v995
    %v1517 = vadd.f32 %v1325, %v996
    %v1518 = vadd.f32 %v1326, %v997
    %v1519 = vadd.f32 %v1327, %v998
    %v1520 = vadd.f32 %v1328, %v999
    %v1521 = vadd.f32 %v1325, %v1000
    %v1522 = vadd.f32 %v1326, %v1001
    %v1523 = vadd.f32 %v1327, %v1002
    %v1524 = vadd.f32 %v1328, %v1003
    %v1525 = vadd.f32 %v1325, %v1004
    %v1526 = vadd.f32 %v1326, %v1005
    %v1527 = vadd.f32 %v1327, %v1006
    %v1528 = vadd.f32 %v1328, %v1007
    %v1529 = vadd.f32 %v1325, %v1008
    %v1530 = vadd.f32 %v1326, %v1009
    %v1531 = vadd.f32 %v1327, %v1010
    %v1532 = vadd.f32 %v1328, %v1011
    %v1533 = vadd.f32 %v1325, %v1012
    %v1534 = vadd.f32 %v1326, %v1013
    %v1535 = vadd.f32 %v1327, %v1014
    %v1536 = vadd.f32 %v1328, %v1015
    %v1537 = vadd.f32 %v1325, %v1016
    %v1538 = vadd.f32 %v1326, %v1017
    %v1539 = vadd.f32 %v1327, %v1018
    %v1540 = vadd.f32 %v1328, %v1019
    %v1541 = vadd.f32 %v1325, %v1020
    %v1542 = vadd.f32 %v1326, %v1021
    %v1543 = vadd.f32 %v1327, %v1022
    %v1544 = vadd.f32 %v1328, %v1023
    %v1545 = vadd.f32 %v1325, %v1024
    %v1546 = vadd.f32 %v1326, %v1025
    %v1547 = vadd.f32 %v1327, %v1026
    %v1548 = vadd.f32 %v1328, %v1027
    %v1549 = vadd.f32 %v1325, %v1028
    %v1550 = vadd.f32 %v1326, %v1029
    %v1551 = vadd.f32 %v1327, %v1030
    %v1552 = vadd.f32 %v1328, %v1031
    %v1553 = vadd.f32 %v1325, %v1032
    %v1554 = vadd.f32 %v1326, %v1033
    %v1555 = vadd.f32 %v1327, %v1034
    %v1556 = vadd.f32 %v1328, %v1035
    %v1557 = vadd.f32 %v1325, %v1036
    %v1558 = vadd.f32 %v1326, %v1037
    %v1559 = vadd.f32 %v1327, %v1038
    %v1560 = vadd.f32 %v1328, %v1039
    %v1561 = vadd.f32 %v1325, %v1040
    %v1562 = vadd.f32 %v1326, %v1041
    %v1563 = vadd.f32 %v1327, %v1042
    %v1564 = vadd.f32 %v1328, %v1043
    %v1565 = vadd.f32 %v1325, %v1044
    %v1566 = vadd.f32 %v1326, %v1045
    %v1567 = vadd.f32 %v1327, %v1046
    %v1568 = vadd.f32 %v1328, %v1047
    %v1569 = vadd.f32 %v1325, %v1048
    %v1570 = vadd.f32 %v1326, %v1049
    %v1571 = vadd.f32 %v1327, %v1050
    %v1572 = vadd.f32 %v1328, %v1051
    %v1573 = vadd.f32 %v1325, %v1052
    %v1574 = vadd.f32 %v1326, %v1053
    %v1575 = vadd.f32 %v1327, %v1054
    %v1576 = vadd.f32 %v1328, %v1055
    %v1577 = vadd.f32 %v1325, %v1056
    %v1578 = vadd.f32 %v1326, %v1057
    %v1579 = vadd.f32 %v1327, %v1058
    %v1580 = vadd.f32 %v1328, %v1059
    %v1581 = vadd.f32 %v1325, %v1060
    %v1582 = vadd.f32 %v1326, %v1061
    %v1583 = vadd.f32 %v1327, %v1062
    %v1584 = vadd.f32 %v1328, %v1063
    %v1585 = vadd.f32 %v1325, %v1064
    %v1586 = vadd.f32 %v1326, %v1065
    %v1587 = vadd.f32 %v1327, %v1066
    %v1588 = vadd.f32 %v1328, %v1067
    %v1589 = vadd.f32 %v1325, %v1068
    %v1590 = vadd.f32 %v1326, %v1069
    %v1591 = vadd.f32 %v1327, %v1070
    %v1592 = vadd.f32 %v1328, %v1071
    %v1593 = vadd.f32 %v1325, %v1072
    %v1594 = vadd.f32 %v1326, %v1073
    %v1595 = vadd.f32 %v1327, %v1074
    %v1596 = vadd.f32 %v1328, %v1075
    %v1597 = vadd.f32 %v1325, %v1076
    %v1598 = vadd.f32 %v1326, %v1077
    %v1599 = vadd.f32 %v1327, %v1078
    %v1600 = vadd.f32 %v1328, %v1079
    %v1601 = vadd.f32 %v1325, %v1080
    %v1602 = vadd.f32 %v1326, %v1081
    %v1603 = vadd.f32 %v1327, %v1082
    %v1604 = vadd.f32 %v1328, %v1083
    %v1605 = vadd.f32 %v1325, %v1084
    %v1606 = vadd.f32 %v1326, %v1085
    %v1607 = vadd.f32 %v1327, %v1086
    %v1608 = vadd.f32 %v1328, %v1087
    %v1609 = vadd.f32 %v1325, %v1088
    %v1610 = vadd.f32 %v1326, %v1089
    %v1611 = vadd.f32 %v1327, %v1090
    %v1612 = vadd.f32 %v1328, %v1091
    %v1613 = vadd.f32 %v1325, %v1092
    %v1614 = vadd.f32 %v1326, %v1093
    %v1615 = vadd.f32 %v1327, %v1094
    %v1616 = vadd.f32 %v1328, %v1095
    %v1617 = vadd.f32 %v1325, %v1096
    %v1618 = vadd.f32 %v1326, %v1097
    %v1619 = vadd.f32 %v1327, %v1098
    %v1620 = vadd.f32 %v1328, %v1099
    %v1621 = vadd.f32 %v1325, %v1100
    %v1622 = vadd.f32 %v1326, %v1101
    %v1623 = vadd.f32 %v1327, %v1102
    %v1624 = vadd.f32 %v1328, %v1103
    %v1625 = vadd.f32 %v1325, %v1104
    %v1626 = vadd.f32 %v1326, %v1105
    %v1627 = vadd.f32 %v1327, %v1106
    %v1628 = vadd.f32 %v1328, %v1107
    %v1629 = vadd.f32 %v1325, %v1108
    %v1630 = vadd.f32 %v1326, %v1109
    %v1631 = vadd.f32 %v1327, %v1110
    %v1632 = vadd.f32 %v1328, %v1111
    %v1633 = vadd.f32 %v1325, %v1112
    %v1634 = vadd.f32 %v1326, %v1113
    %v1635 = vadd.f32 %v1327, %v1114
    %v1636 = vadd.f32 %v1328, %v1115
    %v1637 = vadd.f32 %v1325, %v1116
    %v1638 = vadd.f32 %v1326, %v1117
    %v1639 = vadd.f32 %v1327, %v1118
    %v1640 = vadd.f32 %v1328, %v1119
    %v1641 = vadd.f32 %v1325, %v1120
    %v1642 = vadd.f32 %v1326, %v1121
    %v1643 = vadd.f32 %v1327, %v1122
    %v1644 = vadd.f32 %v1328, %v1123
    %v1645 = vadd.f32 %v1325, %v1124
    %v1646 = vadd.f32 %v1326, %v1125
    %v1647 = vadd.f32 %v1327, %v1126
    %v1648 = vadd.f32 %v1328, %v1127
    %v1649 = vadd.f32 %v1325, %v1128
    %v1650 = vadd.f32 %v1326, %v1129
    %v1651 = vadd.f32 %v1327, %v1130
    %v1652 = vadd.f32 %v1328, %v1131
    %v1653 = vadd.f32 %v1325, %v1132
    %v1654 = vadd.f32 %v1326, %v1133
    %v1655 = vadd.f32 %v1327, %v1134
    %v1656 = vadd.f32 %v1328, %v1135
    %v1657 = vadd.f32 %v1325, %v1136
    %v1658 = vadd.f32 %v1326, %v1137
    %v1659 = vadd.f32 %v1327, %v1138
    %v1660 = vadd.f32 %v1328, %v1139
    %v1661 = vadd.f32 %v1325, %v1140
    %v1662 = vadd.f32 %v1326, %v1141
    %v1663 = vadd.f32 %v1327, %v1142
    %v1664 = vadd.f32 %v1328, %v1143
    %v1665 = vadd.f32 %v1325, %v1144
    %v1666 = vadd.f32 %v1326, %v1145
    %v1667 = vadd.f32 %v1327, %v1146
    %v1668 = vadd.f32 %v1328, %v1147
    %v1669 = vadd.f32 %v1325, %v1148
    %v1670 = vadd.f32 %v1326, %v1149
    %v1671 = vadd.f32 %v1327, %v1150
    %v1672 = vadd.f32 %v1328, %v1151
    %v1673 = vadd.f32 %v1325, %v1152
    %v1674 = vadd.f32 %v1326, %v1153
    %v1675 = vadd.f32 %v1327, %v1154
    %v1676 = vadd.f32 %v1328, %v1155
    %v1677 = vadd.f32 %v1325, %v1156
    %v1678 = vadd.f32 %v1326, %v1157
    %v1679 = vadd.f32 %v1327, %v1158
    %v1680 = vadd.f32 %v1328, %v1159
    %v1681 = vadd.f32 %v1325, %v1160
    %v1682 = vadd.f32 %v1326, %v1161
    %v1683 = vadd.f32 %v1327, %v1162
    %v1684 = vadd.f32 %v1328, %v1163
    %v1685 = vadd.f32 %v1325, %v1164
    %v1686 = vadd.f32 %v1326, %v1165
    %v1687 = vadd.f32 %v1327, %v1166
    %v1688 = vadd.f32 %v1328, %v1167
    %v1689 = vadd.f32 %v1325, %v1168
    %v1690 = vadd.f32 %v1326, %v1169
    %v1691 = vadd.f32 %v1327, %v1170
    %v1692 = vadd.f32 %v1328, %v1171
    %v1693 = vadd.f32 %v1325, %v1172
    %v1694 = vadd.f32 %v1326, %v1173
    %v1695 = vadd.f32 %v1327, %v1174
    %v1696 = vadd.f32 %v1328, %v1175
    %v1697 = vadd.f32 %v1325, %v1176
    %v1698 = vadd.f32 %v1326, %v1177
    %v1699 = vadd.f32 %v1327, %v1178
    %v1700 = vadd.f32 %v1328, %v1179
    %v1701 = vadd.f32 %v1325, %v1180
    %v1702 = vadd.f32 %v1326, %v1181
    %v1703 = vadd.f32 %v1327, %v1182
    %v1704 = vadd.f32 %v1328, %v1183
    %v1705 = vadd.f32 %v1325, %v1184
    %v1706 = vadd.f32 %v1326, %v1185
    %v1707 = vadd.f32 %v1327, %v1186
    %v1708 = vadd.f32 %v1328, %v1187
    %v1709 = vadd.f32 %v1325, %v1188
    %v1710 = vadd.f32 %v1326, %v1189
    %v1711 = vadd.f32 %v1327, %v1190
    %v1712 = vadd.f32 %v1328, %v1191
    %v1713 = vadd.f32 %v1325, %v1192
    %v1714 = vadd.f32 %v1326, %v1193
    %v1715 = vadd.f32 %v1327, %v1194
    %v1716 = vadd.f32 %v1328, %v1195
    %v1717 = vadd.f32 %v1325, %v1196
    %v1718 = vadd.f32 %v1326, %v1197
    %v1719 = vadd.f32 %v1327, %v1198
    %v1720 = vadd.f32 %v1328, %v1199
    %v1721 = vadd.f32 %v1325, %v1200
    %v1722 = vadd.f32 %v1326, %v1201
    %v1723 = vadd.f32 %v1327, %v1202
    %v1724 = vadd.f32 %v1328, %v1203
    %v1725 = vadd.f32 %v1325, %v1204
    %v1726 = vadd.f32 %v1326, %v1205
    %v1727 = vadd.f32 %v1327, %v1206
    %v1728 = vadd.f32 %v1328, %v1207
    %v1729 = vadd.f32 %v1325, %v1208
    %v1730 = vadd.f32 %v1326, %v1209
    %v1731 = vadd.f32 %v1327, %v1210
    %v1732 = vadd.f32 %v1328, %v1211
    %v1733 = vadd.f32 %v1325, %v1212
    %v1734 = vadd.f32 %v1326, %v1213
    %v1735 = vadd.f32 %v1327, %v1214
    %v1736 = vadd.f32 %v1328, %v1215
    %v1737 = vadd.f32 %v1325, %v1216
    %v1738 = vadd.f32 %v1326, %v1217
    %v1739 = vadd.f32 %v1327, %v1218
    %v1740 = vadd.f32 %v1328, %v1219
    %v1741 = vadd.f32 %v1325, %v1220
    %v1742 = vadd.f32 %v1326, %v1221
    %v1743 = vadd.f32 %v1327, %v1222
    %v1744 = vadd.f32 %v1328, %v1223
    %v1745 = vadd.f32 %v1325, %v1224
    %v1746 = vadd.f32 %v1326, %v1225
    %v1747 = vadd.f32 %v1327, %v1226
    %v1748 = vadd.f32 %v1328, %v1227
    %v1749 = vadd.f32 %v1325, %v1228
    %v1750 = vadd.f32 %v1326, %v1229
    %v1751 = vadd.f32 %v1327, %v1230
    %v1752 = vadd.f32 %v1328, %v1231
    %v1753 = vadd.f32 %v1325, %v1232
    %v1754 = vadd.f32 %v1326, %v1233
    %v1755 = vadd.f32 %v1327, %v1234
    %v1756 = vadd.f32 %v1328, %v1235
    %v1757 = vadd.f32 %v1325, %v1236
    %v1758 = vadd.f32 %v1326, %v1237
    %v1759 = vadd.f32 %v1327, %v1238
    %v1760 = vadd.f32 %v1328, %v1239
    %v1761 = vadd.f32 %v1325, %v1240
    %v1762 = vadd.f32 %v1326, %v1241
    %v1763 = vadd.f32 %v1327, %v1242
    %v1764 = vadd.f32 %v1328, %v1243
    %v1765 = vadd.f32 %v1325, %v1244
    %v1766 = vadd.f32 %v1326, %v1245
    %v1767 = vadd.f32 %v1327, %v1246
    %v1768 = vadd.f32 %v1328, %v1247
    %v1769 = vadd.f32 %v1325, %v1248
    %v1770 = vadd.f32 %v1326, %v1249
    %v1771 = vadd.f32 %v1327, %v1250
    %v1772 = vadd.f32 %v1328, %v1251
    %v1773 = vadd.f32 %v1325, %v1252
    %v1774 = vadd.f32 %v1326, %v1253
    %v1775 = vadd.f32 %v1327, %v1254
    %v1776 = vadd.f32 %v1328, %v1255
    %v1777 = vadd.f32 %v1325, %v1256
    %v1778 = vadd.f32 %v1326, %v1257
    %v1779 = vadd.f32 %v1327, %v1258
    %v1780 = vadd.f32 %v1328, %v1259
    %v1781 = vadd.f32 %v1325, %v1260
    %v1782 = vadd.f32 %v1326, %v1261
    %v1783 = vadd.f32 %v1327, %v1262
    %v1784 = vadd.f32 %v1328, %v1263
    %v1785 = vadd.f32 %v1325, %v1264
    %v1786 = vadd.f32 %v1326, %v1265
    %v1787 = vadd.f32 %v1327, %v1266
    %v1788 = vadd.f32 %v1328, %v1267
    %v1789 = vadd.f32 %v1325, %v1268
    %v1790 = vadd.f32 %v1326, %v1269
    %v1791 = vadd.f32 %v1327, %v1270
    %v1792 = vadd.f32 %v1328, %v1271
    %v1793 = vadd.f32 %v1325, %v1272
    %v1794 = vadd.f32 %v1326, %v1273
    %v1795 = vadd.f32 %v1327, %v1274
    %v1796 = vadd.f32 %v1328, %v1275
    %v1797 = vadd.f32 %v1325, %v1276
    %v1798 = vadd.f32 %v1326, %v1277
    %v1799 = vadd.f32 %v1327, %v1278
    %v1800 = vadd.f32 %v1328, %v1279
    %v1801 = vadd.f32 %v1325, %v1280
    %v1802 = vadd.f32 %v1326, %v1281
    %v1803 = vadd.f32 %v1327, %v1282
    %v1804 = vadd.f32 %v1328, %v1283
    %v1805 = vadd.f32 %v1325, %v1284
    %v1806 = vadd.f32 %v1326, %v1285
    %v1807 = vadd.f32 %v1327, %v1286
    %v1808 = vadd.f32 %v1328, %v1287
    %v1809 = vadd.f32 %v1325, %v1288
    %v1810 = vadd.f32 %v1326, %v1289
    %v1811 = vadd.f32 %v1327, %v1290
    %v1812 = vadd.f32 %v1328, %v1291
    %v1813 = vadd.f32 %v1325, %v1292
    %v1814 = vadd.f32 %v1326, %v1293
    %v1815 = vadd.f32 %v1327, %v1294
    %v1816 = vadd.f32 %v1328, %v1295
    %v1817 = vadd.f32 %v1325, %v1296
    %v1818 = vadd.f32 %v1326, %v1297
    %v1819 = vadd.f32 %v1327, %v1298
    %v1820 = vadd.f32 %v1328, %v1299
    %v1821 = vadd.f32 %v1325, %v1300
    %v1822 = vadd.f32 %v1326, %v1301
    %v1823 = vadd.f32 %v1327, %v1302
    %v1824 = vadd.f32 %v1328, %v1303
    %v1825 = vadd.f32 %v1325, %v1304
    %v1826 = vadd.f32 %v1326, %v1305
    %v1827 = vadd.f32 %v1327, %v1306
    %v1828 = vadd.f32 %v1328, %v1307
    %v1829 = vadd.f32 %v1325, %v1308
    %v1830 = vadd.f32 %v1326, %v1309
    %v1831 = vadd.f32 %v1327, %v1310
    %v1832 = vadd.f32 %v1328, %v1311
    %v1833 = vadd.f32 %v1325, %v1312
    %v1834 = vadd.f32 %v1326, %v1313
    %v1835 = vadd.f32 %v1327, %v1314
    %v1836 = vadd.f32 %v1328, %v1315
    %v1837 = vadd.f32 %v1325, %v1316
    %v1838 = vadd.f32 %v1326, %v1317
    %v1839 = vadd.f32 %v1327, %v1318
    %v1840 = vadd.f32 %v1328, %v1319
    %v1841 = vadd.f32 %v1325, %v1320
    %v1842 = vadd.f32 %v1326, %v1321
    %v1843 = vadd.f32 %v1327, %v1322
    %v1844 = vadd.f32 %v1328, %v1323
    %1845 = vset.pattern.permute.xlu0 1
    %1846 = vperm.xlu0 %1845, %v27
    %v1847 = vpop.permute.xlu0 %1846
    %1849 = vset.pattern.permute.xlu0 1
    %1850 = vperm.xlu0 %1849, %v28
    %v1851 = vpop.permute.xlu0 %1850
    %1853 = vset.pattern.permute.xlu0 1
    %1854 = vperm.xlu0 %1853, %v29
    %v1855 = vpop.permute.xlu0 %1854
    %1857 = vset.pattern.permute.xlu0 1
    %1858 = vperm.xlu0 %1857, %v30
    %v1859 = vpop.permute.xlu0 %1858
    %1861 = vset.pattern.permute.xlu0 1
    %1862 = vperm.xlu0 %1861, %v31
    %v1863 = vpop.permute.xlu0 %1862
    %1865 = vset.pattern.permute.xlu0 1
    %1866 = vperm.xlu0 %1865, %v32
    %v1867 = vpop.permute.xlu0 %1866
    %1869 = vset.pattern.permute.xlu0 1
    %1870 = vperm.xlu0 %1869, %v33
    %v1871 = vpop.permute.xlu0 %1870
    %1873 = vset.pattern.permute.xlu0 1
    %1874 = vperm.xlu0 %1873, %v34
    %v1875 = vpop.permute.xlu0 %1874
    %1877 = vset.pattern.permute.xlu0 1
    %1878 = vperm.xlu0 %1877, %v35
    %v1879 = vpop.permute.xlu0 %1878
    %1881 = vset.pattern.permute.xlu0 1
    %1882 = vperm.xlu0 %1881, %v36
    %v1883 = vpop.permute.xlu0 %1882
    %1885 = vset.pattern.permute.xlu0 1
    %1886 = vperm.xlu0 %1885, %v37
    %v1887 = vpop.permute.xlu0 %1886
    %1889 = vset.pattern.permute.xlu0 1
    %1890 = vperm.xlu0 %1889, %v38
    %v1891 = vpop.permute.xlu0 %1890
    %1893 = vset.pattern.permute.xlu0 1
    %1894 = vperm.xlu0 %1893, %v39
    %v1895 = vpop.permute.xlu0 %1894
    %1897 = vset.pattern.permute.xlu0 1
    %1898 = vperm.xlu0 %1897, %v40
    %v1899 = vpop.permute.xlu0 %1898
    %1901 = vset.pattern.permute.xlu0 1
    %1902 = vperm.xlu0 %1901, %v41
    %v1903 = vpop.permute.xlu0 %1902
    %1905 = vset.pattern.permute.xlu0 1
    %1906 = vperm.xlu0 %1905, %v42
    %v1907 = vpop.permute.xlu0 %1906
    %1909 = vset.pattern.permute.xlu0 1
    %1910 = vperm.xlu0 %1909, %v43
    %v1911 = vpop.permute.xlu0 %1910
    %1913 = vset.pattern.permute.xlu0 1
    %1914 = vperm.xlu0 %1913, %v44
    %v1915 = vpop.permute.xlu0 %1914
    %1917 = vset.pattern.permute.xlu0 1
    %1918 = vperm.xlu0 %1917, %v45
    %v1919 = vpop.permute.xlu0 %1918
    %1921 = vset.pattern.permute.xlu0 1
    %1922 = vperm.xlu0 %1921, %v46
    %v1923 = vpop.permute.xlu0 %1922
    %1925 = vset.pattern.permute.xlu0 1
    %1926 = vperm.xlu0 %1925, %v47
    %v1927 = vpop.permute.xlu0 %1926
    %1929 = vset.pattern.permute.xlu0 1
    %1930 = vperm.xlu0 %1929, %v48
    %v1931 = vpop.permute.xlu0 %1930
    %1933 = vset.pattern.permute.xlu0 1
    %1934 = vperm.xlu0 %1933, %v49
    %v1935 = vpop.permute.xlu0 %1934
    %1937 = vset.pattern.permute.xlu0 1
    %1938 = vperm.xlu0 %1937, %v50
    %v1939 = vpop.permute.xlu0 %1938
    %1941 = vset.pattern.permute.xlu0 1
    %1942 = vperm.xlu0 %1941, %v51
    %v1943 = vpop.permute.xlu0 %1942
    %1945 = vset.pattern.permute.xlu0 1
    %1946 = vperm.xlu0 %1945, %v52
    %v1947 = vpop.permute.xlu0 %1946
    %1949 = vset.pattern.permute.xlu0 1
    %1950 = vperm.xlu0 %1949, %v53
    %v1951 = vpop.permute.xlu0 %1950
    %1953 = vset.pattern.permute.xlu0 1
    %1954 = vperm.xlu0 %1953, %v54
    %v1955 = vpop.permute.xlu0 %1954
    %1957 = vset.pattern.permute.xlu0 1
    %1958 = vperm.xlu0 %1957, %v55
    %v1959 = vpop.permute.xlu0 %1958
    %1961 = vset.pattern.permute.xlu0 1
    %1962 = vperm.xlu0 %1961, %v56
    %v1963 = vpop.permute.xlu0 %1962
    %1965 = vset.pattern.permute.xlu0 1
    %1966 = vperm.xlu0 %1965, %v57
    %v1967 = vpop.permute.xlu0 %1966
    %1969 = vset.pattern.permute.xlu0 1
    %1970 = vperm.xlu0 %1969, %v58
    %v1971 = vpop.permute.xlu0 %1970
    %1973 = vset.pattern.permute.xlu0 1
    %1974 = vperm.xlu0 %1973, %v59
    %v1975 = vpop.permute.xlu0 %1974
    %1977 = vset.pattern.permute.xlu0 1
    %1978 = vperm.xlu0 %1977, %v60
    %v1979 = vpop.permute.xlu0 %1978
    %1981 = vset.pattern.permute.xlu0 1
    %1982 = vperm.xlu0 %1981, %v61
    %v1983 = vpop.permute.xlu0 %1982
    %1985 = vset.pattern.permute.xlu0 1
    %1986 = vperm.xlu0 %1985, %v62
    %v1987 = vpop.permute.xlu0 %1986
    %1989 = vset.pattern.permute.xlu0 1
    %1990 = vperm.xlu0 %1989, %v63
    %v1991 = vpop.permute.xlu0 %1990
    %1993 = vset.pattern.permute.xlu0 1
    %1994 = vperm.xlu0 %1993, %v64
    %v1995 = vpop.permute.xlu0 %1994
    %1997 = vset.pattern.permute.xlu0 1
    %1998 = vperm.xlu0 %1997, %v65
    %v1999 = vpop.permute.xlu0 %1998
    %2001 = vset.pattern.permute.xlu0 1
    %2002 = vperm.xlu0 %2001, %v66
    %v2003 = vpop.permute.xlu0 %2002
    %2005 = vset.pattern.permute.xlu0 1
    %2006 = vperm.xlu0 %2005, %v67
    %v2007 = vpop.permute.xlu0 %2006
    %2009 = vset.pattern.permute.xlu0 1
    %2010 = vperm.xlu0 %2009, %v68
    %v2011 = vpop.permute.xlu0 %2010
    %2013 = vset.pattern.permute.xlu0 1
    %2014 = vperm.xlu0 %2013, %v69
    %v2015 = vpop.permute.xlu0 %2014
    %2017 = vset.pattern.permute.xlu0 1
    %2018 = vperm.xlu0 %2017, %v70
    %v2019 = vpop.permute.xlu0 %2018
    %2021 = vset.pattern.permute.xlu0 1
    %2022 = vperm.xlu0 %2021, %v71
    %v2023 = vpop.permute.xlu0 %2022
    %2025 = vset.pattern.permute.xlu0 1
    %2026 = vperm.xlu0 %2025, %v72
    %v2027 = vpop.permute.xlu0 %2026
    %2029 = vset.pattern.permute.xlu0 1
    %2030 = vperm.xlu0 %2029, %v73
    %v2031 = vpop.permute.xlu0 %2030
    %2033 = vset.pattern.permute.xlu0 1
    %2034 = vperm.xlu0 %2033, %v74
    %v2035 = vpop.permute.xlu0 %2034
    %2037 = vset.pattern.permute.xlu0 1
    %2038 = vperm.xlu0 %2037, %v75
    %v2039 = vpop.permute.xlu0 %2038
    %2041 = vset.pattern.permute.xlu0 1
    %2042 = vperm.xlu0 %2041, %v76
    %v2043 = vpop.permute.xlu0 %2042
    %2045 = vset.pattern.permute.xlu0 1
    %2046 = vperm.xlu0 %2045, %v77
    %v2047 = vpop.permute.xlu0 %2046
    %2049 = vset.pattern.permute.xlu0 1
    %2050 = vperm.xlu0 %2049, %v78
    %v2051 = vpop.permute.xlu0 %2050
    %2053 = vset.pattern.permute.xlu0 1
    %2054 = vperm.xlu0 %2053, %v79
    %v2055 = vpop.permute.xlu0 %2054
    %2057 = vset.pattern.permute.xlu0 1
    %2058 = vperm.xlu0 %2057, %v80
    %v2059 = vpop.permute.xlu0 %2058
    %2061 = vset.pattern.permute.xlu0 1
    %2062 = vperm.xlu0 %2061, %v81
    %v2063 = vpop.permute.xlu0 %2062
    %2065 = vset.pattern.permute.xlu0 1
    %2066 = vperm.xlu0 %2065, %v82
    %v2067 = vpop.permute.xlu0 %2066
    %2069 = vset.pattern.permute.xlu0 1
    %2070 = vperm.xlu0 %2069, %v83
    %v2071 = vpop.permute.xlu0 %2070
    %2073 = vset.pattern.permute.xlu0 1
    %2074 = vperm.xlu0 %2073, %v84
    %v2075 = vpop.permute.xlu0 %2074
    %2077 = vset.pattern.permute.xlu0 1
    %2078 = vperm.xlu0 %2077, %v85
    %v2079 = vpop.permute.xlu0 %2078
    %2081 = vset.pattern.permute.xlu0 1
    %2082 = vperm.xlu0 %2081, %v86
    %v2083 = vpop.permute.xlu0 %2082
    %2085 = vset.pattern.permute.xlu0 1
    %2086 = vperm.xlu0 %2085, %v87
    %v2087 = vpop.permute.xlu0 %2086
    %2089 = vset.pattern.permute.xlu0 1
    %2090 = vperm.xlu0 %2089, %v88
    %v2091 = vpop.permute.xlu0 %2090
    %2093 = vset.pattern.permute.xlu0 1
    %2094 = vperm.xlu0 %2093, %v89
    %v2095 = vpop.permute.xlu0 %2094
    %2097 = vset.pattern.permute.xlu0 1
    %2098 = vperm.xlu0 %2097, %v90
    %v2099 = vpop.permute.xlu0 %2098
    %2101 = vset.pattern.permute.xlu0 1
    %2102 = vperm.xlu0 %2101, %v91
    %v2103 = vpop.permute.xlu0 %2102
    %2105 = vset.pattern.permute.xlu0 1
    %2106 = vperm.xlu0 %2105, %v92
    %v2107 = vpop.permute.xlu0 %2106
    %2109 = vset.pattern.permute.xlu0 1
    %2110 = vperm.xlu0 %2109, %v93
    %v2111 = vpop.permute.xlu0 %2110
    %2113 = vset.pattern.permute.xlu0 1
    %2114 = vperm.xlu0 %2113, %v94
    %v2115 = vpop.permute.xlu0 %2114
    %2117 = vset.pattern.permute.xlu0 1
    %2118 = vperm.xlu0 %2117, %v95
    %v2119 = vpop.permute.xlu0 %2118
    %2121 = vset.pattern.permute.xlu0 1
    %2122 = vperm.xlu0 %2121, %v96
    %v2123 = vpop.permute.xlu0 %2122
    %2125 = vset.pattern.permute.xlu0 1
    %2126 = vperm.xlu0 %2125, %v97
    %v2127 = vpop.permute.xlu0 %2126
    %2129 = vset.pattern.permute.xlu0 1
    %2130 = vperm.xlu0 %2129, %v98
    %v2131 = vpop.permute.xlu0 %2130
    %2133 = vset.pattern.permute.xlu0 1
    %2134 = vperm.xlu0 %2133, %v99
    %v2135 = vpop.permute.xlu0 %2134
    %2137 = vset.pattern.permute.xlu0 1
    %2138 = vperm.xlu0 %2137, %v100
    %v2139 = vpop.permute.xlu0 %2138
    %2141 = vset.pattern.permute.xlu0 1
    %2142 = vperm.xlu0 %2141, %v101
    %v2143 = vpop.permute.xlu0 %2142
    %2145 = vset.pattern.permute.xlu0 1
    %2146 = vperm.xlu0 %2145, %v102
    %v2147 = vpop.permute.xlu0 %2146
    %2149 = vset.pattern.permute.xlu0 1
    %2150 = vperm.xlu0 %2149, %v103
    %v2151 = vpop.permute.xlu0 %2150
    %2153 = vset.pattern.permute.xlu0 1
    %2154 = vperm.xlu0 %2153, %v104
    %v2155 = vpop.permute.xlu0 %2154
    %2157 = vset.pattern.permute.xlu0 1
    %2158 = vperm.xlu0 %2157, %v105
    %v2159 = vpop.permute.xlu0 %2158
    %2161 = vset.pattern.permute.xlu0 1
    %2162 = vperm.xlu0 %2161, %v106
    %v2163 = vpop.permute.xlu0 %2162
    %2165 = vset.pattern.permute.xlu0 1
    %2166 = vperm.xlu0 %2165, %v107
    %v2167 = vpop.permute.xlu0 %2166
    %2169 = vset.pattern.permute.xlu0 1
    %2170 = vperm.xlu0 %2169, %v108
    %v2171 = vpop.permute.xlu0 %2170
    %2173 = vset.pattern.permute.xlu0 1
    %2174 = vperm.xlu0 %2173, %v109
    %v2175 = vpop.permute.xlu0 %2174
    %2177 = vset.pattern.permute.xlu0 1
    %2178 = vperm.xlu0 %2177, %v110
    %v2179 = vpop.permute.xlu0 %2178
    %2181 = vset.pattern.permute.xlu0 1
    %2182 = vperm.xlu0 %2181, %v111
    %v2183 = vpop.permute.xlu0 %2182
    %2185 = vset.pattern.permute.xlu0 1
    %2186 = vperm.xlu0 %2185, %v112
    %v2187 = vpop.permute.xlu0 %2186
    %2189 = vset.pattern.permute.xlu0 1
    %2190 = vperm.xlu0 %2189, %v113
    %v2191 = vpop.permute.xlu0 %2190
    %2193 = vset.pattern.permute.xlu0 1
    %2194 = vperm.xlu0 %2193, %v114
    %v2195 = vpop.permute.xlu0 %2194
    %2197 = vset.pattern.permute.xlu0 1
    %2198 = vperm.xlu0 %2197, %v115
    %v2199 = vpop.permute.xlu0 %2198
    %2201 = vset.pattern.permute.xlu0 1
    %2202 = vperm.xlu0 %2201, %v116
    %v2203 = vpop.permute.xlu0 %2202
    %2205 = vset.pattern.permute.xlu0 1
    %2206 = vperm.xlu0 %2205, %v117
    %v2207 = vpop.permute.xlu0 %2206
    %2209 = vset.pattern.permute.xlu0 1
    %2210 = vperm.xlu0 %2209, %v118
    %v2211 = vpop.permute.xlu0 %2210
    %2213 = vset.pattern.permute.xlu0 1
    %2214 = vperm.xlu0 %2213, %v119
    %v2215 = vpop.permute.xlu0 %2214
    %2217 = vset.pattern.permute.xlu0 1
    %2218 = vperm.xlu0 %2217, %v120
    %v2219 = vpop.permute.xlu0 %2218
    %2221 = vset.pattern.permute.xlu0 1
    %2222 = vperm.xlu0 %2221, %v121
    %v2223 = vpop.permute.xlu0 %2222
    %2225 = vset.pattern.permute.xlu0 1
    %2226 = vperm.xlu0 %2225, %v122
    %v2227 = vpop.permute.xlu0 %2226
    %2229 = vset.pattern.permute.xlu0 1
    %2230 = vperm.xlu0 %2229, %v123
    %v2231 = vpop.permute.xlu0 %2230
    %2233 = vset.pattern.permute.xlu0 1
    %2234 = vperm.xlu0 %2233, %v124
    %v2235 = vpop.permute.xlu0 %2234
    %2237 = vset.pattern.permute.xlu0 1
    %2238 = vperm.xlu0 %2237, %v125
    %v2239 = vpop.permute.xlu0 %2238
    %2241 = vset.pattern.permute.xlu0 1
    %2242 = vperm.xlu0 %2241, %v126
    %v2243 = vpop.permute.xlu0 %2242
    %2245 = vset.pattern.permute.xlu0 1
    %2246 = vperm.xlu0 %2245, %v127
    %v2247 = vpop.permute.xlu0 %2246
    %2249 = vset.pattern.permute.xlu0 1
    %2250 = vperm.xlu0 %2249, %v128
    %v2251 = vpop.permute.xlu0 %2250
    %2253 = vset.pattern.permute.xlu0 1
    %2254 = vperm.xlu0 %2253, %v129
    %v2255 = vpop.permute.xlu0 %2254
    %2257 = vset.pattern.permute.xlu0 1
    %2258 = vperm.xlu0 %2257, %v130
    %v2259 = vpop.permute.xlu0 %2258
    %2261 = vset.pattern.permute.xlu0 1
    %2262 = vperm.xlu0 %2261, %v131
    %v2263 = vpop.permute.xlu0 %2262
    %2265 = vset.pattern.permute.xlu0 1
    %2266 = vperm.xlu0 %2265, %v132
    %v2267 = vpop.permute.xlu0 %2266
    %2269 = vset.pattern.permute.xlu0 1
    %2270 = vperm.xlu0 %2269, %v133
    %v2271 = vpop.permute.xlu0 %2270
    %2273 = vset.pattern.permute.xlu0 1
    %2274 = vperm.xlu0 %2273, %v134
    %v2275 = vpop.permute.xlu0 %2274
    %2277 = vset.pattern.permute.xlu0 1
    %2278 = vperm.xlu0 %2277, %v135
    %v2279 = vpop.permute.xlu0 %2278
    %2281 = vset.pattern.permute.xlu0 1
    %2282 = vperm.xlu0 %2281, %v136
    %v2283 = vpop.permute.xlu0 %2282
    %2285 = vset.pattern.permute.xlu0 1
    %2286 = vperm.xlu0 %2285, %v137
    %v2287 = vpop.permute.xlu0 %2286
    %2289 = vset.pattern.permute.xlu0 1
    %2290 = vperm.xlu0 %2289, %v138
    %v2291 = vpop.permute.xlu0 %2290
    %2293 = vset.pattern.permute.xlu0 1
    %2294 = vperm.xlu0 %2293, %v139
    %v2295 = vpop.permute.xlu0 %2294
    %2297 = vset.pattern.permute.xlu0 1
    %2298 = vperm.xlu0 %2297, %v140
    %v2299 = vpop.permute.xlu0 %2298
    %2301 = vset.pattern.permute.xlu0 1
    %2302 = vperm.xlu0 %2301, %v141
    %v2303 = vpop.permute.xlu0 %2302
    %2305 = vset.pattern.permute.xlu0 1
    %2306 = vperm.xlu0 %2305, %v142
    %v2307 = vpop.permute.xlu0 %2306
    %2309 = vset.pattern.permute.xlu0 1
    %2310 = vperm.xlu0 %2309, %v143
    %v2311 = vpop.permute.xlu0 %2310
    %2313 = vset.pattern.permute.xlu0 1
    %2314 = vperm.xlu0 %2313, %v144
    %v2315 = vpop.permute.xlu0 %2314
    %2317 = vset.pattern.permute.xlu0 1
    %2318 = vperm.xlu0 %2317, %v145
    %v2319 = vpop.permute.xlu0 %2318
    %2321 = vset.pattern.permute.xlu0 1
    %2322 = vperm.xlu0 %2321, %v146
    %v2323 = vpop.permute.xlu0 %2322
    %2325 = vset.pattern.permute.xlu0 1
    %2326 = vperm.xlu0 %2325, %v147
    %v2327 = vpop.permute.xlu0 %2326
    %2329 = vset.pattern.permute.xlu0 1
    %2330 = vperm.xlu0 %2329, %v148
    %v2331 = vpop.permute.xlu0 %2330
    %2333 = vset.pattern.permute.xlu0 1
    %2334 = vperm.xlu0 %2333, %v149
    %v2335 = vpop.permute.xlu0 %2334
    %2337 = vset.pattern.permute.xlu0 1
    %2338 = vperm.xlu0 %2337, %v150
    %v2339 = vpop.permute.xlu0 %2338
    %2341 = vset.pattern.permute.xlu0 1
    %2342 = vperm.xlu0 %2341, %v151
    %v2343 = vpop.permute.xlu0 %2342
    %2345 = vset.pattern.permute.xlu0 1
    %2346 = vperm.xlu0 %2345, %v152
    %v2347 = vpop.permute.xlu0 %2346
    %2349 = vset.pattern.permute.xlu0 1
    %2350 = vperm.xlu0 %2349, %v153
    %v2351 = vpop.permute.xlu0 %2350
    %2353 = vset.pattern.permute.xlu0 1
    %2354 = vperm.xlu0 %2353, %v154
    %v2355 = vpop.permute.xlu0 %2354
    %v2357 = vperm.slane %v155, 1
    %v2358 = vperm.slane %v155, 5
    %v2359 = vperm.slane %v156, 1
    %v2360 = vperm.slane %v156, 5
    %v2365 = vperm.slane %v2357, 1
    %v2366 = vperm.slane %v2358, 1
    %v2367 = vperm.slane %v2359, 1
    %v2368 = vperm.slane %v2360, 1
    %v2369 = vmul.f32 %v1847, %v2365
    %v2370 = vmul.f32 %v1847, %v2366
    %v2371 = vmul.f32 %v1847, %v2367
    %v2372 = vmul.f32 %v1847, %v2368
    %v2373 = vmul.f32 %v1851, %v2365
    %v2374 = vmul.f32 %v1851, %v2366
    %v2375 = vmul.f32 %v1851, %v2367
    %v2376 = vmul.f32 %v1851, %v2368
    %v2377 = vmul.f32 %v1855, %v2365
    %v2378 = vmul.f32 %v1855, %v2366
    %v2379 = vmul.f32 %v1855, %v2367
    %v2380 = vmul.f32 %v1855, %v2368
    %v2381 = vmul.f32 %v1859, %v2365
    %v2382 = vmul.f32 %v1859, %v2366
    %v2383 = vmul.f32 %v1859, %v2367
    %v2384 = vmul.f32 %v1859, %v2368
    %v2385 = vmul.f32 %v1863, %v2365
    %v2386 = vmul.f32 %v1863, %v2366
    %v2387 = vmul.f32 %v1863, %v2367
    %v2388 = vmul.f32 %v1863, %v2368
    %v2389 = vmul.f32 %v1867, %v2365
    %v2390 = vmul.f32 %v1867, %v2366
    %v2391 = vmul.f32 %v1867, %v2367
    %v2392 = vmul.f32 %v1867, %v2368
    %v2393 = vmul.f32 %v1871, %v2365
    %v2394 = vmul.f32 %v1871, %v2366
    %v2395 = vmul.f32 %v1871, %v2367
    %v2396 = vmul.f32 %v1871, %v2368
    %v2397 = vmul.f32 %v1875, %v2365
    %v2398 = vmul.f32 %v1875, %v2366
    %v2399 = vmul.f32 %v1875, %v2367
    %v2400 = vmul.f32 %v1875, %v2368
    %v2401 = vmul.f32 %v1879, %v2365
    %v2402 = vmul.f32 %v1879, %v2366
    %v2403 = vmul.f32 %v1879, %v2367
    %v2404 = vmul.f32 %v1879, %v2368
    %v2405 = vmul.f32 %v1883, %v2365
    %v2406 = vmul.f32 %v1883, %v2366
    %v2407 = vmul.f32 %v1883, %v2367
    %v2408 = vmul.f32 %v1883, %v2368
    %v2409 = vmul.f32 %v1887, %v2365
    %v2410 = vmul.f32 %v1887, %v2366
    %v2411 = vmul.f32 %v1887, %v2367
    %v2412 = vmul.f32 %v1887, %v2368
    %v2413 = vmul.f32 %v1891, %v2365
    %v2414 = vmul.f32 %v1891, %v2366
    %v2415 = vmul.f32 %v1891, %v2367
    %v2416 = vmul.f32 %v1891, %v2368
    %v2417 = vmul.f32 %v1895, %v2365
    %v2418 = vmul.f32 %v1895, %v2366
    %v2419 = vmul.f32 %v1895, %v2367
    %v2420 = vmul.f32 %v1895, %v2368
    %v2421 = vmul.f32 %v1899, %v2365
    %v2422 = vmul.f32 %v1899, %v2366
    %v2423 = vmul.f32 %v1899, %v2367
    %v2424 = vmul.f32 %v1899, %v2368
    %v2425 = vmul.f32 %v1903, %v2365
    %v2426 = vmul.f32 %v1903, %v2366
    %v2427 = vmul.f32 %v1903, %v2367
    %v2428 = vmul.f32 %v1903, %v2368
    %v2429 = vmul.f32 %v1907, %v2365
    %v2430 = vmul.f32 %v1907, %v2366
    %v2431 = vmul.f32 %v1907, %v2367
    %v2432 = vmul.f32 %v1907, %v2368
    %v2433 = vmul.f32 %v1911, %v2365
    %v2434 = vmul.f32 %v1911, %v2366
    %v2435 = vmul.f32 %v1911, %v2367
    %v2436 = vmul.f32 %v1911, %v2368
    %v2437 = vmul.f32 %v1915, %v2365
    %v2438 = vmul.f32 %v1915, %v2366
    %v2439 = vmul.f32 %v1915, %v2367
    %v2440 = vmul.f32 %v1915, %v2368
    %v2441 = vmul.f32 %v1919, %v2365
    %v2442 = vmul.f32 %v1919, %v2366
    %v2443 = vmul.f32 %v1919, %v2367
    %v2444 = vmul.f32 %v1919, %v2368
    %v2445 = vmul.f32 %v1923, %v2365
    %v2446 = vmul.f32 %v1923, %v2366
    %v2447 = vmul.f32 %v1923, %v2367
    %v2448 = vmul.f32 %v1923, %v2368
    %v2449 = vmul.f32 %v1927, %v2365
    %v2450 = vmul.f32 %v1927, %v2366
    %v2451 = vmul.f32 %v1927, %v2367
    %v2452 = vmul.f32 %v1927, %v2368
    %v2453 = vmul.f32 %v1931, %v2365
    %v2454 = vmul.f32 %v1931, %v2366
    %v2455 = vmul.f32 %v1931, %v2367
    %v2456 = vmul.f32 %v1931, %v2368
    %v2457 = vmul.f32 %v1935, %v2365
    %v2458 = vmul.f32 %v1935, %v2366
    %v2459 = vmul.f32 %v1935, %v2367
    %v2460 = vmul.f32 %v1935, %v2368
    %v2461 = vmul.f32 %v1939, %v2365
    %v2462 = vmul.f32 %v1939, %v2366
    %v2463 = vmul.f32 %v1939, %v2367
    %v2464 = vmul.f32 %v1939, %v2368
    %v2465 = vmul.f32 %v1943, %v2365
    %v2466 = vmul.f32 %v1943, %v2366
    %v2467 = vmul.f32 %v1943, %v2367
    %v2468 = vmul.f32 %v1943, %v2368
    %v2469 = vmul.f32 %v1947, %v2365
    %v2470 = vmul.f32 %v1947, %v2366
    %v2471 = vmul.f32 %v1947, %v2367
    %v2472 = vmul.f32 %v1947, %v2368
    %v2473 = vmul.f32 %v1951, %v2365
    %v2474 = vmul.f32 %v1951, %v2366
    %v2475 = vmul.f32 %v1951, %v2367
    %v2476 = vmul.f32 %v1951, %v2368
    %v2477 = vmul.f32 %v1955, %v2365
    %v2478 = vmul.f32 %v1955, %v2366
    %v2479 = vmul.f32 %v1955, %v2367
    %v2480 = vmul.f32 %v1955, %v2368
    %v2481 = vmul.f32 %v1959, %v2365
    %v2482 = vmul.f32 %v1959, %v2366
    %v2483 = vmul.f32 %v1959, %v2367
    %v2484 = vmul.f32 %v1959, %v2368
    %v2485 = vmul.f32 %v1963, %v2365
    %v2486 = vmul.f32 %v1963, %v2366
    %v2487 = vmul.f32 %v1963, %v2367
    %v2488 = vmul.f32 %v1963, %v2368
    %v2489 = vmul.f32 %v1967, %v2365
    %v2490 = vmul.f32 %v1967, %v2366
    %v2491 = vmul.f32 %v1967, %v2367
    %v2492 = vmul.f32 %v1967, %v2368
    %v2493 = vmul.f32 %v1971, %v2365
    %v2494 = vmul.f32 %v1971, %v2366
    %v2495 = vmul.f32 %v1971, %v2367
    %v2496 = vmul.f32 %v1971, %v2368
    %v2497 = vmul.f32 %v1975, %v2365
    %v2498 = vmul.f32 %v1975, %v2366
    %v2499 = vmul.f32 %v1975, %v2367
    %v2500 = vmul.f32 %v1975, %v2368
    %v2501 = vmul.f32 %v1979, %v2365
    %v2502 = vmul.f32 %v1979, %v2366
    %v2503 = vmul.f32 %v1979, %v2367
    %v2504 = vmul.f32 %v1979, %v2368
    %v2505 = vmul.f32 %v1983, %v2365
    %v2506 = vmul.f32 %v1983, %v2366
    %v2507 = vmul.f32 %v1983, %v2367
    %v2508 = vmul.f32 %v1983, %v2368
    %v2509 = vmul.f32 %v1987, %v2365
    %v2510 = vmul.f32 %v1987, %v2366
    %v2511 = vmul.f32 %v1987, %v2367
    %v2512 = vmul.f32 %v1987, %v2368
    %v2513 = vmul.f32 %v1991, %v2365
    %v2514 = vmul.f32 %v1991, %v2366
    %v2515 = vmul.f32 %v1991, %v2367
    %v2516 = vmul.f32 %v1991, %v2368
    %v2517 = vmul.f32 %v1995, %v2365
    %v2518 = vmul.f32 %v1995, %v2366
    %v2519 = vmul.f32 %v1995, %v2367
    %v2520 = vmul.f32 %v1995, %v2368
    %v2521 = vmul.f32 %v1999, %v2365
    %v2522 = vmul.f32 %v1999, %v2366
    %v2523 = vmul.f32 %v1999, %v2367
    %v2524 = vmul.f32 %v1999, %v2368
    %v2525 = vmul.f32 %v2003, %v2365
    %v2526 = vmul.f32 %v2003, %v2366
    %v2527 = vmul.f32 %v2003, %v2367
    %v2528 = vmul.f32 %v2003, %v2368
    %v2529 = vmul.f32 %v2007, %v2365
    %v2530 = vmul.f32 %v2007, %v2366
    %v2531 = vmul.f32 %v2007, %v2367
    %v2532 = vmul.f32 %v2007, %v2368
    %v2533 = vmul.f32 %v2011, %v2365
    %v2534 = vmul.f32 %v2011, %v2366
    %v2535 = vmul.f32 %v2011, %v2367
    %v2536 = vmul.f32 %v2011, %v2368
    %v2537 = vmul.f32 %v2015, %v2365
    %v2538 = vmul.f32 %v2015, %v2366
    %v2539 = vmul.f32 %v2015, %v2367
    %v2540 = vmul.f32 %v2015, %v2368
    %v2541 = vmul.f32 %v2019, %v2365
    %v2542 = vmul.f32 %v2019, %v2366
    %v2543 = vmul.f32 %v2019, %v2367
    %v2544 = vmul.f32 %v2019, %v2368
    %v2545 = vmul.f32 %v2023, %v2365
    %v2546 = vmul.f32 %v2023, %v2366
    %v2547 = vmul.f32 %v2023, %v2367
    %v2548 = vmul.f32 %v2023, %v2368
    %v2549 = vmul.f32 %v2027, %v2365
    %v2550 = vmul.f32 %v2027, %v2366
    %v2551 = vmul.f32 %v2027, %v2367
    %v2552 = vmul.f32 %v2027, %v2368
    %v2553 = vmul.f32 %v2031, %v2365
    %v2554 = vmul.f32 %v2031, %v2366
    %v2555 = vmul.f32 %v2031, %v2367
    %v2556 = vmul.f32 %v2031, %v2368
    %v2557 = vmul.f32 %v2035, %v2365
    %v2558 = vmul.f32 %v2035, %v2366
    %v2559 = vmul.f32 %v2035, %v2367
    %v2560 = vmul.f32 %v2035, %v2368
    %v2561 = vmul.f32 %v2039, %v2365
    %v2562 = vmul.f32 %v2039, %v2366
    %v2563 = vmul.f32 %v2039, %v2367
    %v2564 = vmul.f32 %v2039, %v2368
    %v2565 = vmul.f32 %v2043, %v2365
    %v2566 = vmul.f32 %v2043, %v2366
    %v2567 = vmul.f32 %v2043, %v2367
    %v2568 = vmul.f32 %v2043, %v2368
    %v2569 = vmul.f32 %v2047, %v2365
    %v2570 = vmul.f32 %v2047, %v2366
    %v2571 = vmul.f32 %v2047, %v2367
    %v2572 = vmul.f32 %v2047, %v2368
    %v2573 = vmul.f32 %v2051, %v2365
    %v2574 = vmul.f32 %v2051, %v2366
    %v2575 = vmul.f32 %v2051, %v2367
    %v2576 = vmul.f32 %v2051, %v2368
    %v2577 = vmul.f32 %v2055, %v2365
    %v2578 = vmul.f32 %v2055, %v2366
    %v2579 = vmul.f32 %v2055, %v2367
    %v2580 = vmul.f32 %v2055, %v2368
    %v2581 = vmul.f32 %v2059, %v2365
    %v2582 = vmul.f32 %v2059, %v2366
    %v2583 = vmul.f32 %v2059, %v2367
    %v2584 = vmul.f32 %v2059, %v2368
    %v2585 = vmul.f32 %v2063, %v2365
    %v2586 = vmul.f32 %v2063, %v2366
    %v2587 = vmul.f32 %v2063, %v2367
    %v2588 = vmul.f32 %v2063, %v2368
    %v2589 = vmul.f32 %v2067, %v2365
    %v2590 = vmul.f32 %v2067, %v2366
    %v2591 = vmul.f32 %v2067, %v2367
    %v2592 = vmul.f32 %v2067, %v2368
    %v2593 = vmul.f32 %v2071, %v2365
    %v2594 = vmul.f32 %v2071, %v2366
    %v2595 = vmul.f32 %v2071, %v2367
    %v2596 = vmul.f32 %v2071, %v2368
    %v2597 = vmul.f32 %v2075, %v2365
    %v2598 = vmul.f32 %v2075, %v2366
    %v2599 = vmul.f32 %v2075, %v2367
    %v2600 = vmul.f32 %v2075, %v2368
    %v2601 = vmul.f32 %v2079, %v2365
    %v2602 = vmul.f32 %v2079, %v2366
    %v2603 = vmul.f32 %v2079, %v2367
    %v2604 = vmul.f32 %v2079, %v2368
    %v2605 = vmul.f32 %v2083, %v2365
    %v2606 = vmul.f32 %v2083, %v2366
    %v2607 = vmul.f32 %v2083, %v2367
    %v2608 = vmul.f32 %v2083, %v2368
    %v2609 = vmul.f32 %v2087, %v2365
    %v2610 = vmul.f32 %v2087, %v2366
    %v2611 = vmul.f32 %v2087, %v2367
    %v2612 = vmul.f32 %v2087, %v2368
    %v2613 = vmul.f32 %v2091, %v2365
    %v2614 = vmul.f32 %v2091, %v2366
    %v2615 = vmul.f32 %v2091, %v2367
    %v2616 = vmul.f32 %v2091, %v2368
    %v2617 = vmul.f32 %v2095, %v2365
    %v2618 = vmul.f32 %v2095, %v2366
    %v2619 = vmul.f32 %v2095, %v2367
    %v2620 = vmul.f32 %v2095, %v2368
    %v2621 = vmul.f32 %v2099, %v2365
    %v2622 = vmul.f32 %v2099, %v2366
    %v2623 = vmul.f32 %v2099, %v2367
    %v2624 = vmul.f32 %v2099, %v2368
    %v2625 = vmul.f32 %v2103, %v2365
    %v2626 = vmul.f32 %v2103, %v2366
    %v2627 = vmul.f32 %v2103, %v2367
    %v2628 = vmul.f32 %v2103, %v2368
    %v2629 = vmul.f32 %v2107, %v2365
    %v2630 = vmul.f32 %v2107, %v2366
    %v2631 = vmul.f32 %v2107, %v2367
    %v2632 = vmul.f32 %v2107, %v2368
    %v2633 = vmul.f32 %v2111, %v2365
    %v2634 = vmul.f32 %v2111, %v2366
    %v2635 = vmul.f32 %v2111, %v2367
    %v2636 = vmul.f32 %v2111, %v2368
    %v2637 = vmul.f32 %v2115, %v2365
    %v2638 = vmul.f32 %v2115, %v2366
    %v2639 = vmul.f32 %v2115, %v2367
    %v2640 = vmul.f32 %v2115, %v2368
    %v2641 = vmul.f32 %v2119, %v2365
    %v2642 = vmul.f32 %v2119, %v2366
    %v2643 = vmul.f32 %v2119, %v2367
    %v2644 = vmul.f32 %v2119, %v2368
    %v2645 = vmul.f32 %v2123, %v2365
    %v2646 = vmul.f32 %v2123, %v2366
    %v2647 = vmul.f32 %v2123, %v2367
    %v2648 = vmul.f32 %v2123, %v2368
    %v2649 = vmul.f32 %v2127, %v2365
    %v2650 = vmul.f32 %v2127, %v2366
    %v2651 = vmul.f32 %v2127, %v2367
    %v2652 = vmul.f32 %v2127, %v2368
    %v2653 = vmul.f32 %v2131, %v2365
    %v2654 = vmul.f32 %v2131, %v2366
    %v2655 = vmul.f32 %v2131, %v2367
    %v2656 = vmul.f32 %v2131, %v2368
    %v2657 = vmul.f32 %v2135, %v2365
    %v2658 = vmul.f32 %v2135, %v2366
    %v2659 = vmul.f32 %v2135, %v2367
    %v2660 = vmul.f32 %v2135, %v2368
    %v2661 = vmul.f32 %v2139, %v2365
    %v2662 = vmul.f32 %v2139, %v2366
    %v2663 = vmul.f32 %v2139, %v2367
    %v2664 = vmul.f32 %v2139, %v2368
    %v2665 = vmul.f32 %v2143, %v2365
    %v2666 = vmul.f32 %v2143, %v2366
    %v2667 = vmul.f32 %v2143, %v2367
    %v2668 = vmul.f32 %v2143, %v2368
    %v2669 = vmul.f32 %v2147, %v2365
    %v2670 = vmul.f32 %v2147, %v2366
    %v2671 = vmul.f32 %v2147, %v2367
    %v2672 = vmul.f32 %v2147, %v2368
    %v2673 = vmul.f32 %v2151, %v2365
    %v2674 = vmul.f32 %v2151, %v2366
    %v2675 = vmul.f32 %v2151, %v2367
    %v2676 = vmul.f32 %v2151, %v2368
    %v2677 = vmul.f32 %v2155, %v2365
    %v2678 = vmul.f32 %v2155, %v2366
    %v2679 = vmul.f32 %v2155, %v2367
    %v2680 = vmul.f32 %v2155, %v2368
    %v2681 = vmul.f32 %v2159, %v2365
    %v2682 = vmul.f32 %v2159, %v2366
    %v2683 = vmul.f32 %v2159, %v2367
    %v2684 = vmul.f32 %v2159, %v2368
    %v2685 = vmul.f32 %v2163, %v2365
    %v2686 = vmul.f32 %v2163, %v2366
    %v2687 = vmul.f32 %v2163, %v2367
    %v2688 = vmul.f32 %v2163, %v2368
    %v2689 = vmul.f32 %v2167, %v2365
    %v2690 = vmul.f32 %v2167, %v2366
    %v2691 = vmul.f32 %v2167, %v2367
    %v2692 = vmul.f32 %v2167, %v2368
    %v2693 = vmul.f32 %v2171, %v2365
    %v2694 = vmul.f32 %v2171, %v2366
    %v2695 = vmul.f32 %v2171, %v2367
    %v2696 = vmul.f32 %v2171, %v2368
    %v2697 = vmul.f32 %v2175, %v2365
    %v2698 = vmul.f32 %v2175, %v2366
    %v2699 = vmul.f32 %v2175, %v2367
    %v2700 = vmul.f32 %v2175, %v2368
    %v2701 = vmul.f32 %v2179, %v2365
    %v2702 = vmul.f32 %v2179, %v2366
    %v2703 = vmul.f32 %v2179, %v2367
    %v2704 = vmul.f32 %v2179, %v2368
    %v2705 = vmul.f32 %v2183, %v2365
    %v2706 = vmul.f32 %v2183, %v2366
    %v2707 = vmul.f32 %v2183, %v2367
    %v2708 = vmul.f32 %v2183, %v2368
    %v2709 = vmul.f32 %v2187, %v2365
    %v2710 = vmul.f32 %v2187, %v2366
    %v2711 = vmul.f32 %v2187, %v2367
    %v2712 = vmul.f32 %v2187, %v2368
    %v2713 = vmul.f32 %v2191, %v2365
    %v2714 = vmul.f32 %v2191, %v2366
    %v2715 = vmul.f32 %v2191, %v2367
    %v2716 = vmul.f32 %v2191, %v2368
    %v2717 = vmul.f32 %v2195, %v2365
    %v2718 = vmul.f32 %v2195, %v2366
    %v2719 = vmul.f32 %v2195, %v2367
    %v2720 = vmul.f32 %v2195, %v2368
    %v2721 = vmul.f32 %v2199, %v2365
    %v2722 = vmul.f32 %v2199, %v2366
    %v2723 = vmul.f32 %v2199, %v2367
    %v2724 = vmul.f32 %v2199, %v2368
    %v2725 = vmul.f32 %v2203, %v2365
    %v2726 = vmul.f32 %v2203, %v2366
    %v2727 = vmul.f32 %v2203, %v2367
    %v2728 = vmul.f32 %v2203, %v2368
    %v2729 = vmul.f32 %v2207, %v2365
    %v2730 = vmul.f32 %v2207, %v2366
    %v2731 = vmul.f32 %v2207, %v2367
    %v2732 = vmul.f32 %v2207, %v2368
    %v2733 = vmul.f32 %v2211, %v2365
    %v2734 = vmul.f32 %v2211, %v2366
    %v2735 = vmul.f32 %v2211, %v2367
    %v2736 = vmul.f32 %v2211, %v2368
    %v2737 = vmul.f32 %v2215, %v2365
    %v2738 = vmul.f32 %v2215, %v2366
    %v2739 = vmul.f32 %v2215, %v2367
    %v2740 = vmul.f32 %v2215, %v2368
    %v2741 = vmul.f32 %v2219, %v2365
    %v2742 = vmul.f32 %v2219, %v2366
    %v2743 = vmul.f32 %v2219, %v2367
    %v2744 = vmul.f32 %v2219, %v2368
    %v2745 = vmul.f32 %v2223, %v2365
    %v2746 = vmul.f32 %v2223, %v2366
    %v2747 = vmul.f32 %v2223, %v2367
    %v2748 = vmul.f32 %v2223, %v2368
    %v2749 = vmul.f32 %v2227, %v2365
    %v2750 = vmul.f32 %v2227, %v2366
    %v2751 = vmul.f32 %v2227, %v2367
    %v2752 = vmul.f32 %v2227, %v2368
    %v2753 = vmul.f32 %v2231, %v2365
    %v2754 = vmul.f32 %v2231, %v2366
    %v2755 = vmul.f32 %v2231, %v2367
    %v2756 = vmul.f32 %v2231, %v2368
    %v2757 = vmul.f32 %v2235, %v2365
    %v2758 = vmul.f32 %v2235, %v2366
    %v2759 = vmul.f32 %v2235, %v2367
    %v2760 = vmul.f32 %v2235, %v2368
    %v2761 = vmul.f32 %v2239, %v2365
    %v2762 = vmul.f32 %v2239, %v2366
    %v2763 = vmul.f32 %v2239, %v2367
    %v2764 = vmul.f32 %v2239, %v2368
    %v2765 = vmul.f32 %v2243, %v2365
    %v2766 = vmul.f32 %v2243, %v2366
    %v2767 = vmul.f32 %v2243, %v2367
    %v2768 = vmul.f32 %v2243, %v2368
    %v2769 = vmul.f32 %v2247, %v2365
    %v2770 = vmul.f32 %v2247, %v2366
    %v2771 = vmul.f32 %v2247, %v2367
    %v2772 = vmul.f32 %v2247, %v2368
    %v2773 = vmul.f32 %v2251, %v2365
    %v2774 = vmul.f32 %v2251, %v2366
    %v2775 = vmul.f32 %v2251, %v2367
    %v2776 = vmul.f32 %v2251, %v2368
    %v2777 = vmul.f32 %v2255, %v2365
    %v2778 = vmul.f32 %v2255, %v2366
    %v2779 = vmul.f32 %v2255, %v2367
    %v2780 = vmul.f32 %v2255, %v2368
    %v2781 = vmul.f32 %v2259, %v2365
    %v2782 = vmul.f32 %v2259, %v2366
    %v2783 = vmul.f32 %v2259, %v2367
    %v2784 = vmul.f32 %v2259, %v2368
    %v2785 = vmul.f32 %v2263, %v2365
    %v2786 = vmul.f32 %v2263, %v2366
    %v2787 = vmul.f32 %v2263, %v2367
    %v2788 = vmul.f32 %v2263, %v2368
    %v2789 = vmul.f32 %v2267, %v2365
    %v2790 = vmul.f32 %v2267, %v2366
    %v2791 = vmul.f32 %v2267, %v2367
    %v2792 = vmul.f32 %v2267, %v2368
    %v2793 = vmul.f32 %v2271, %v2365
    %v2794 = vmul.f32 %v2271, %v2366
    %v2795 = vmul.f32 %v2271, %v2367
    %v2796 = vmul.f32 %v2271, %v2368
    %v2797 = vmul.f32 %v2275, %v2365
    %v2798 = vmul.f32 %v2275, %v2366
    %v2799 = vmul.f32 %v2275, %v2367
    %v2800 = vmul.f32 %v2275, %v2368
    %v2801 = vmul.f32 %v2279, %v2365
    %v2802 = vmul.f32 %v2279, %v2366
    %v2803 = vmul.f32 %v2279, %v2367
    %v2804 = vmul.f32 %v2279, %v2368
    %v2805 = vmul.f32 %v2283, %v2365
    %v2806 = vmul.f32 %v2283, %v2366
    %v2807 = vmul.f32 %v2283, %v2367
    %v2808 = vmul.f32 %v2283, %v2368
    %v2809 = vmul.f32 %v2287, %v2365
    %v2810 = vmul.f32 %v2287, %v2366
    %v2811 = vmul.f32 %v2287, %v2367
    %v2812 = vmul.f32 %v2287, %v2368
    %v2813 = vmul.f32 %v2291, %v2365
    %v2814 = vmul.f32 %v2291, %v2366
    %v2815 = vmul.f32 %v2291, %v2367
    %v2816 = vmul.f32 %v2291, %v2368
    %v2817 = vmul.f32 %v2295, %v2365
    %v2818 = vmul.f32 %v2295, %v2366
    %v2819 = vmul.f32 %v2295, %v2367
    %v2820 = vmul.f32 %v2295, %v2368
    %v2821 = vmul.f32 %v2299, %v2365
    %v2822 = vmul.f32 %v2299, %v2366
    %v2823 = vmul.f32 %v2299, %v2367
    %v2824 = vmul.f32 %v2299, %v2368
    %v2825 = vmul.f32 %v2303, %v2365
    %v2826 = vmul.f32 %v2303, %v2366
    %v2827 = vmul.f32 %v2303, %v2367
    %v2828 = vmul.f32 %v2303, %v2368
    %v2829 = vmul.f32 %v2307, %v2365
    %v2830 = vmul.f32 %v2307, %v2366
    %v2831 = vmul.f32 %v2307, %v2367
    %v2832 = vmul.f32 %v2307, %v2368
    %v2833 = vmul.f32 %v2311, %v2365
    %v2834 = vmul.f32 %v2311, %v2366
    %v2835 = vmul.f32 %v2311, %v2367
    %v2836 = vmul.f32 %v2311, %v2368
    %v2837 = vmul.f32 %v2315, %v2365
    %v2838 = vmul.f32 %v2315, %v2366
    %v2839 = vmul.f32 %v2315, %v2367
    %v2840 = vmul.f32 %v2315, %v2368
    %v2841 = vmul.f32 %v2319, %v2365
    %v2842 = vmul.f32 %v2319, %v2366
    %v2843 = vmul.f32 %v2319, %v2367
    %v2844 = vmul.f32 %v2319, %v2368
    %v2845 = vmul.f32 %v2323, %v2365
    %v2846 = vmul.f32 %v2323, %v2366
    %v2847 = vmul.f32 %v2323, %v2367
    %v2848 = vmul.f32 %v2323, %v2368
    %v2849 = vmul.f32 %v2327, %v2365
    %v2850 = vmul.f32 %v2327, %v2366
    %v2851 = vmul.f32 %v2327, %v2367
    %v2852 = vmul.f32 %v2327, %v2368
    %v2853 = vmul.f32 %v2331, %v2365
    %v2854 = vmul.f32 %v2331, %v2366
    %v2855 = vmul.f32 %v2331, %v2367
    %v2856 = vmul.f32 %v2331, %v2368
    %v2857 = vmul.f32 %v2335, %v2365
    %v2858 = vmul.f32 %v2335, %v2366
    %v2859 = vmul.f32 %v2335, %v2367
    %v2860 = vmul.f32 %v2335, %v2368
    %v2861 = vmul.f32 %v2339, %v2365
    %v2862 = vmul.f32 %v2339, %v2366
    %v2863 = vmul.f32 %v2339, %v2367
    %v2864 = vmul.f32 %v2339, %v2368
    %v2865 = vmul.f32 %v2343, %v2365
    %v2866 = vmul.f32 %v2343, %v2366
    %v2867 = vmul.f32 %v2343, %v2367
    %v2868 = vmul.f32 %v2343, %v2368
    %v2869 = vmul.f32 %v2347, %v2365
    %v2870 = vmul.f32 %v2347, %v2366
    %v2871 = vmul.f32 %v2347, %v2367
    %v2872 = vmul.f32 %v2347, %v2368
    %v2873 = vmul.f32 %v2351, %v2365
    %v2874 = vmul.f32 %v2351, %v2366
    %v2875 = vmul.f32 %v2351, %v2367
    %v2876 = vmul.f32 %v2351, %v2368
    %v2877 = vmul.f32 %v2355, %v2365
    %v2878 = vmul.f32 %v2355, %v2366
    %v2879 = vmul.f32 %v2355, %v2367
    %v2880 = vmul.f32 %v2355, %v2368
    %v2881 = vadd.f32 %v1333, %v2369
    %v2882 = vadd.f32 %v1334, %v2370
    %v2883 = vadd.f32 %v1335, %v2371
    %v2884 = vadd.f32 %v1336, %v2372
    %v2885 = vadd.f32 %v1337, %v2373
    %v2886 = vadd.f32 %v1338, %v2374
    %v2887 = vadd.f32 %v1339, %v2375
    %v2888 = vadd.f32 %v1340, %v2376
    %v2889 = vadd.f32 %v1341, %v2377
    %v2890 = vadd.f32 %v1342, %v2378
    %v2891 = vadd.f32 %v1343, %v2379
    %v2892 = vadd.f32 %v1344, %v2380
    %v2893 = vadd.f32 %v1345, %v2381
    %v2894 = vadd.f32 %v1346, %v2382
    %v2895 = vadd.f32 %v1347, %v2383
    %v2896 = vadd.f32 %v1348, %v2384
    %v2897 = vadd.f32 %v1349, %v2385
    %v2898 = vadd.f32 %v1350, %v2386
    %v2899 = vadd.f32 %v1351, %v2387
    %v2900 = vadd.f32 %v1352, %v2388
    %v2901 = vadd.f32 %v1353, %v2389
    %v2902 = vadd.f32 %v1354, %v2390
    %v2903 = vadd.f32 %v1355, %v2391
    %v2904 = vadd.f32 %v1356, %v2392
    %v2905 = vadd.f32 %v1357, %v2393
    %v2906 = vadd.f32 %v1358, %v2394
    %v2907 = vadd.f32 %v1359, %v2395
    %v2908 = vadd.f32 %v1360, %v2396
    %v2909 = vadd.f32 %v1361, %v2397
    %v2910 = vadd.f32 %v1362, %v2398
    %v2911 = vadd.f32 %v1363, %v2399
    %v2912 = vadd.f32 %v1364, %v2400
    %v2913 = vadd.f32 %v1365, %v2401
    %v2914 = vadd.f32 %v1366, %v2402
    %v2915 = vadd.f32 %v1367, %v2403
    %v2916 = vadd.f32 %v1368, %v2404
    %v2917 = vadd.f32 %v1369, %v2405
    %v2918 = vadd.f32 %v1370, %v2406
    %v2919 = vadd.f32 %v1371, %v2407
    %v2920 = vadd.f32 %v1372, %v2408
    %v2921 = vadd.f32 %v1373, %v2409
    %v2922 = vadd.f32 %v1374, %v2410
    %v2923 = vadd.f32 %v1375, %v2411
    %v2924 = vadd.f32 %v1376, %v2412
    %v2925 = vadd.f32 %v1377, %v2413
    %v2926 = vadd.f32 %v1378, %v2414
    %v2927 = vadd.f32 %v1379, %v2415
    %v2928 = vadd.f32 %v1380, %v2416
    %v2929 = vadd.f32 %v1381, %v2417
    %v2930 = vadd.f32 %v1382, %v2418
    %v2931 = vadd.f32 %v1383, %v2419
    %v2932 = vadd.f32 %v1384, %v2420
    %v2933 = vadd.f32 %v1385, %v2421
    %v2934 = vadd.f32 %v1386, %v2422
    %v2935 = vadd.f32 %v1387, %v2423
    %v2936 = vadd.f32 %v1388, %v2424
    %v2937 = vadd.f32 %v1389, %v2425
    %v2938 = vadd.f32 %v1390, %v2426
    %v2939 = vadd.f32 %v1391, %v2427
    %v2940 = vadd.f32 %v1392, %v2428
    %v2941 = vadd.f32 %v1393, %v2429
    %v2942 = vadd.f32 %v1394, %v2430
    %v2943 = vadd.f32 %v1395, %v2431
    %v2944 = vadd.f32 %v1396, %v2432
    %v2945 = vadd.f32 %v1397, %v2433
    %v2946 = vadd.f32 %v1398, %v2434
    %v2947 = vadd.f32 %v1399, %v2435
    %v2948 = vadd.f32 %v1400, %v2436
    %v2949 = vadd.f32 %v1401, %v2437
    %v2950 = vadd.f32 %v1402, %v2438
    %v2951 = vadd.f32 %v1403, %v2439
    %v2952 = vadd.f32 %v1404, %v2440
    %v2953 = vadd.f32 %v1405, %v2441
    %v2954 = vadd.f32 %v1406, %v2442
    %v2955 = vadd.f32 %v1407, %v2443
    %v2956 = vadd.f32 %v1408, %v2444
    %v2957 = vadd.f32 %v1409, %v2445
    %v2958 = vadd.f32 %v1410, %v2446
    %v2959 = vadd.f32 %v1411, %v2447
    %v2960 = vadd.f32 %v1412, %v2448
    %v2961 = vadd.f32 %v1413, %v2449
    %v2962 = vadd.f32 %v1414, %v2450
    %v2963 = vadd.f32 %v1415, %v2451
    %v2964 = vadd.f32 %v1416, %v2452
    %v2965 = vadd.f32 %v1417, %v2453
    %v2966 = vadd.f32 %v1418, %v2454
    %v2967 = vadd.f32 %v1419, %v2455
    %v2968 = vadd.f32 %v1420, %v2456
    %v2969 = vadd.f32 %v1421, %v2457
    %v2970 = vadd.f32 %v1422, %v2458
    %v2971 = vadd.f32 %v1423, %v2459
    %v2972 = vadd.f32 %v1424, %v2460
    %v2973 = vadd.f32 %v1425, %v2461
    %v2974 = vadd.f32 %v1426, %v2462
    %v2975 = vadd.f32 %v1427, %v2463
    %v2976 = vadd.f32 %v1428, %v2464
    %v2977 = vadd.f32 %v1429, %v2465
    %v2978 = vadd.f32 %v1430, %v2466
    %v2979 = vadd.f32 %v1431, %v2467
    %v2980 = vadd.f32 %v1432, %v2468
    %v2981 = vadd.f32 %v1433, %v2469
    %v2982 = vadd.f32 %v1434, %v2470
    %v2983 = vadd.f32 %v1435, %v2471
    %v2984 = vadd.f32 %v1436, %v2472
    %v2985 = vadd.f32 %v1437, %v2473
    %v2986 = vadd.f32 %v1438, %v2474
    %v2987 = vadd.f32 %v1439, %v2475
    %v2988 = vadd.f32 %v1440, %v2476
    %v2989 = vadd.f32 %v1441, %v2477
    %v2990 = vadd.f32 %v1442, %v2478
    %v2991 = vadd.f32 %v1443, %v2479
    %v2992 = vadd.f32 %v1444, %v2480
    %v2993 = vadd.f32 %v1445, %v2481
    %v2994 = vadd.f32 %v1446, %v2482
    %v2995 = vadd.f32 %v1447, %v2483
    %v2996 = vadd.f32 %v1448, %v2484
    %v2997 = vadd.f32 %v1449, %v2485
    %v2998 = vadd.f32 %v1450, %v2486
    %v2999 = vadd.f32 %v1451, %v2487
    %v3000 = vadd.f32 %v1452, %v2488
    %v3001 = vadd.f32 %v1453, %v2489
    %v3002 = vadd.f32 %v1454, %v2490
    %v3003 = vadd.f32 %v1455, %v2491
    %v3004 = vadd.f32 %v1456, %v2492
    %v3005 = vadd.f32 %v1457, %v2493
    %v3006 = vadd.f32 %v1458, %v2494
    %v3007 = vadd.f32 %v1459, %v2495
    %v3008 = vadd.f32 %v1460, %v2496
    %v3009 = vadd.f32 %v1461, %v2497
    %v3010 = vadd.f32 %v1462, %v2498
    %v3011 = vadd.f32 %v1463, %v2499
    %v3012 = vadd.f32 %v1464, %v2500
    %v3013 = vadd.f32 %v1465, %v2501
    %v3014 = vadd.f32 %v1466, %v2502
    %v3015 = vadd.f32 %v1467, %v2503
    %v3016 = vadd.f32 %v1468, %v2504
    %v3017 = vadd.f32 %v1469, %v2505
    %v3018 = vadd.f32 %v1470, %v2506
    %v3019 = vadd.f32 %v1471, %v2507
    %v3020 = vadd.f32 %v1472, %v2508
    %v3021 = vadd.f32 %v1473, %v2509
    %v3022 = vadd.f32 %v1474, %v2510
    %v3023 = vadd.f32 %v1475, %v2511
    %v3024 = vadd.f32 %v1476, %v2512
    %v3025 = vadd.f32 %v1477, %v2513
    %v3026 = vadd.f32 %v1478, %v2514
    %v3027 = vadd.f32 %v1479, %v2515
    %v3028 = vadd.f32 %v1480, %v2516
    %v3029 = vadd.f32 %v1481, %v2517
    %v3030 = vadd.f32 %v1482, %v2518
    %v3031 = vadd.f32 %v1483, %v2519
    %v3032 = vadd.f32 %v1484, %v2520
    %v3033 = vadd.f32 %v1485, %v2521
    %v3034 = vadd.f32 %v1486, %v2522
    %v3035 = vadd.f32 %v1487, %v2523
    %v3036 = vadd.f32 %v1488, %v2524
    %v3037 = vadd.f32 %v1489, %v2525
    %v3038 = vadd.f32 %v1490, %v2526
    %v3039 = vadd.f32 %v1491, %v2527
    %v3040 = vadd.f32 %v1492, %v2528
    %v3041 = vadd.f32 %v1493, %v2529
    %v3042 = vadd.f32 %v1494, %v2530
    %v3043 = vadd.f32 %v1495, %v2531
    %v3044 = vadd.f32 %v1496, %v2532
    %v3045 = vadd.f32 %v1497, %v2533
    %v3046 = vadd.f32 %v1498, %v2534
    %v3047 = vadd.f32 %v1499, %v2535
    %v3048 = vadd.f32 %v1500, %v2536
    %v3049 = vadd.f32 %v1501, %v2537
    %v3050 = vadd.f32 %v1502, %v2538
    %v3051 = vadd.f32 %v1503, %v2539
    %v3052 = vadd.f32 %v1504, %v2540
    %v3053 = vadd.f32 %v1505, %v2541
    %v3054 = vadd.f32 %v1506, %v2542
    %v3055 = vadd.f32 %v1507, %v2543
    %v3056 = vadd.f32 %v1508, %v2544
    %v3057 = vadd.f32 %v1509, %v2545
    %v3058 = vadd.f32 %v1510, %v2546
    %v3059 = vadd.f32 %v1511, %v2547
    %v3060 = vadd.f32 %v1512, %v2548
    %v3061 = vadd.f32 %v1513, %v2549
    %v3062 = vadd.f32 %v1514, %v2550
    %v3063 = vadd.f32 %v1515, %v2551
    %v3064 = vadd.f32 %v1516, %v2552
    %v3065 = vadd.f32 %v1517, %v2553
    %v3066 = vadd.f32 %v1518, %v2554
    %v3067 = vadd.f32 %v1519, %v2555
    %v3068 = vadd.f32 %v1520, %v2556
    %v3069 = vadd.f32 %v1521, %v2557
    %v3070 = vadd.f32 %v1522, %v2558
    %v3071 = vadd.f32 %v1523, %v2559
    %v3072 = vadd.f32 %v1524, %v2560
    %v3073 = vadd.f32 %v1525, %v2561
    %v3074 = vadd.f32 %v1526, %v2562
    %v3075 = vadd.f32 %v1527, %v2563
    %v3076 = vadd.f32 %v1528, %v2564
    %v3077 = vadd.f32 %v1529, %v2565
    %v3078 = vadd.f32 %v1530, %v2566
    %v3079 = vadd.f32 %v1531, %v2567
    %v3080 = vadd.f32 %v1532, %v2568
    %v3081 = vadd.f32 %v1533, %v2569
    %v3082 = vadd.f32 %v1534, %v2570
    %v3083 = vadd.f32 %v1535, %v2571
    %v3084 = vadd.f32 %v1536, %v2572
    %v3085 = vadd.f32 %v1537, %v2573
    %v3086 = vadd.f32 %v1538, %v2574
    %v3087 = vadd.f32 %v1539, %v2575
    %v3088 = vadd.f32 %v1540, %v2576
    %v3089 = vadd.f32 %v1541, %v2577
    %v3090 = vadd.f32 %v1542, %v2578
    %v3091 = vadd.f32 %v1543, %v2579
    %v3092 = vadd.f32 %v1544, %v2580
    %v3093 = vadd.f32 %v1545, %v2581
    %v3094 = vadd.f32 %v1546, %v2582
    %v3095 = vadd.f32 %v1547, %v2583
    %v3096 = vadd.f32 %v1548, %v2584
    %v3097 = vadd.f32 %v1549, %v2585
    %v3098 = vadd.f32 %v1550, %v2586
    %v3099 = vadd.f32 %v1551, %v2587
    %v3100 = vadd.f32 %v1552, %v2588
    %v3101 = vadd.f32 %v1553, %v2589
    %v3102 = vadd.f32 %v1554, %v2590
    %v3103 = vadd.f32 %v1555, %v2591
    %v3104 = vadd.f32 %v1556, %v2592
    %v3105 = vadd.f32 %v1557, %v2593
    %v3106 = vadd.f32 %v1558, %v2594
    %v3107 = vadd.f32 %v1559, %v2595
    %v3108 = vadd.f32 %v1560, %v2596
    %v3109 = vadd.f32 %v1561, %v2597
    %v3110 = vadd.f32 %v1562, %v2598
    %v3111 = vadd.f32 %v1563, %v2599
    %v3112 = vadd.f32 %v1564, %v2600
    %v3113 = vadd.f32 %v1565, %v2601
    %v3114 = vadd.f32 %v1566, %v2602
    %v3115 = vadd.f32 %v1567, %v2603
    %v3116 = vadd.f32 %v1568, %v2604
    %v3117 = vadd.f32 %v1569, %v2605
    %v3118 = vadd.f32 %v1570, %v2606
    %v3119 = vadd.f32 %v1571, %v2607
    %v3120 = vadd.f32 %v1572, %v2608
    %v3121 = vadd.f32 %v1573, %v2609
    %v3122 = vadd.f32 %v1574, %v2610
    %v3123 = vadd.f32 %v1575, %v2611
    %v3124 = vadd.f32 %v1576, %v2612
    %v3125 = vadd.f32 %v1577, %v2613
    %v3126 = vadd.f32 %v1578, %v2614
    %v3127 = vadd.f32 %v1579, %v2615
    %v3128 = vadd.f32 %v1580, %v2616
    %v3129 = vadd.f32 %v1581, %v2617
    %v3130 = vadd.f32 %v1582, %v2618
    %v3131 = vadd.f32 %v1583, %v2619
    %v3132 = vadd.f32 %v1584, %v2620
    %v3133 = vadd.f32 %v1585, %v2621
    %v3134 = vadd.f32 %v1586, %v2622
    %v3135 = vadd.f32 %v1587, %v2623
    %v3136 = vadd.f32 %v1588, %v2624
    %v3137 = vadd.f32 %v1589, %v2625
    %v3138 = vadd.f32 %v1590, %v2626
    %v3139 = vadd.f32 %v1591, %v2627
    %v3140 = vadd.f32 %v1592, %v2628
    %v3141 = vadd.f32 %v1593, %v2629
    %v3142 = vadd.f32 %v1594, %v2630
    %v3143 = vadd.f32 %v1595, %v2631
    %v3144 = vadd.f32 %v1596, %v2632
    %v3145 = vadd.f32 %v1597, %v2633
    %v3146 = vadd.f32 %v1598, %v2634
    %v3147 = vadd.f32 %v1599, %v2635
    %v3148 = vadd.f32 %v1600, %v2636
    %v3149 = vadd.f32 %v1601, %v2637
    %v3150 = vadd.f32 %v1602, %v2638
    %v3151 = vadd.f32 %v1603, %v2639
    %v3152 = vadd.f32 %v1604, %v2640
    %v3153 = vadd.f32 %v1605, %v2641
    %v3154 = vadd.f32 %v1606, %v2642
    %v3155 = vadd.f32 %v1607, %v2643
    %v3156 = vadd.f32 %v1608, %v2644
    %v3157 = vadd.f32 %v1609, %v2645
    %v3158 = vadd.f32 %v1610, %v2646
    %v3159 = vadd.f32 %v1611, %v2647
    %v3160 = vadd.f32 %v1612, %v2648
    %v3161 = vadd.f32 %v1613, %v2649
    %v3162 = vadd.f32 %v1614, %v2650
    %v3163 = vadd.f32 %v1615, %v2651
    %v3164 = vadd.f32 %v1616, %v2652
    %v3165 = vadd.f32 %v1617, %v2653
    %v3166 = vadd.f32 %v1618, %v2654
    %v3167 = vadd.f32 %v1619, %v2655
    %v3168 = vadd.f32 %v1620, %v2656
    %v3169 = vadd.f32 %v1621, %v2657
    %v3170 = vadd.f32 %v1622, %v2658
    %v3171 = vadd.f32 %v1623, %v2659
    %v3172 = vadd.f32 %v1624, %v2660
    %v3173 = vadd.f32 %v1625, %v2661
    %v3174 = vadd.f32 %v1626, %v2662
    %v3175 = vadd.f32 %v1627, %v2663
    %v3176 = vadd.f32 %v1628, %v2664
    %v3177 = vadd.f32 %v1629, %v2665
    %v3178 = vadd.f32 %v1630, %v2666
    %v3179 = vadd.f32 %v1631, %v2667
    %v3180 = vadd.f32 %v1632, %v2668
    %v3181 = vadd.f32 %v1633, %v2669
    %v3182 = vadd.f32 %v1634, %v2670
    %v3183 = vadd.f32 %v1635, %v2671
    %v3184 = vadd.f32 %v1636, %v2672
    %v3185 = vadd.f32 %v1637, %v2673
    %v3186 = vadd.f32 %v1638, %v2674
    %v3187 = vadd.f32 %v1639, %v2675
    %v3188 = vadd.f32 %v1640, %v2676
    %v3189 = vadd.f32 %v1641, %v2677
    %v3190 = vadd.f32 %v1642, %v2678
    %v3191 = vadd.f32 %v1643, %v2679
    %v3192 = vadd.f32 %v1644, %v2680
    %v3193 = vadd.f32 %v1645, %v2681
    %v3194 = vadd.f32 %v1646, %v2682
    %v3195 = vadd.f32 %v1647, %v2683
    %v3196 = vadd.f32 %v1648, %v2684
    %v3197 = vadd.f32 %v1649, %v2685
    %v3198 = vadd.f32 %v1650, %v2686
    %v3199 = vadd.f32 %v1651, %v2687
    %v3200 = vadd.f32 %v1652, %v2688
    %v3201 = vadd.f32 %v1653, %v2689
    %v3202 = vadd.f32 %v1654, %v2690
    %v3203 = vadd.f32 %v1655, %v2691
    %v3204 = vadd.f32 %v1656, %v2692
    %v3205 = vadd.f32 %v1657, %v2693
    %v3206 = vadd.f32 %v1658, %v2694
    %v3207 = vadd.f32 %v1659, %v2695
    %v3208 = vadd.f32 %v1660, %v2696
    %v3209 = vadd.f32 %v1661, %v2697
    %v3210 = vadd.f32 %v1662, %v2698
    %v3211 = vadd.f32 %v1663, %v2699
    %v3212 = vadd.f32 %v1664, %v2700
    %v3213 = vadd.f32 %v1665, %v2701
    %v3214 = vadd.f32 %v1666, %v2702
    %v3215 = vadd.f32 %v1667, %v2703
    %v3216 = vadd.f32 %v1668, %v2704
    %v3217 = vadd.f32 %v1669, %v2705
    %v3218 = vadd.f32 %v1670, %v2706
    %v3219 = vadd.f32 %v1671, %v2707
    %v3220 = vadd.f32 %v1672, %v2708
    %v3221 = vadd.f32 %v1673, %v2709
    %v3222 = vadd.f32 %v1674, %v2710
    %v3223 = vadd.f32 %v1675, %v2711
    %v3224 = vadd.f32 %v1676, %v2712
    %v3225 = vadd.f32 %v1677, %v2713
    %v3226 = vadd.f32 %v1678, %v2714
    %v3227 = vadd.f32 %v1679, %v2715
    %v3228 = vadd.f32 %v1680, %v2716
    %v3229 = vadd.f32 %v1681, %v2717
    %v3230 = vadd.f32 %v1682, %v2718
    %v3231 = vadd.f32 %v1683, %v2719
    %v3232 = vadd.f32 %v1684, %v2720
    %v3233 = vadd.f32 %v1685, %v2721
    %v3234 = vadd.f32 %v1686, %v2722
    %v3235 = vadd.f32 %v1687, %v2723
    %v3236 = vadd.f32 %v1688, %v2724
    %v3237 = vadd.f32 %v1689, %v2725
    %v3238 = vadd.f32 %v1690, %v2726
    %v3239 = vadd.f32 %v1691, %v2727
    %v3240 = vadd.f32 %v1692, %v2728
    %v3241 = vadd.f32 %v1693, %v2729
    %v3242 = vadd.f32 %v1694, %v2730
    %v3243 = vadd.f32 %v1695, %v2731
    %v3244 = vadd.f32 %v1696, %v2732
    %v3245 = vadd.f32 %v1697, %v2733
    %v3246 = vadd.f32 %v1698, %v2734
    %v3247 = vadd.f32 %v1699, %v2735
    %v3248 = vadd.f32 %v1700, %v2736
    %v3249 = vadd.f32 %v1701, %v2737
    %v3250 = vadd.f32 %v1702, %v2738
    %v3251 = vadd.f32 %v1703, %v2739
    %v3252 = vadd.f32 %v1704, %v2740
    %v3253 = vadd.f32 %v1705, %v2741
    %v3254 = vadd.f32 %v1706, %v2742
    %v3255 = vadd.f32 %v1707, %v2743
    %v3256 = vadd.f32 %v1708, %v2744
    %v3257 = vadd.f32 %v1709, %v2745
    %v3258 = vadd.f32 %v1710, %v2746
    %v3259 = vadd.f32 %v1711, %v2747
    %v3260 = vadd.f32 %v1712, %v2748
    %v3261 = vadd.f32 %v1713, %v2749
    %v3262 = vadd.f32 %v1714, %v2750
    %v3263 = vadd.f32 %v1715, %v2751
    %v3264 = vadd.f32 %v1716, %v2752
    %v3265 = vadd.f32 %v1717, %v2753
    %v3266 = vadd.f32 %v1718, %v2754
    %v3267 = vadd.f32 %v1719, %v2755
    %v3268 = vadd.f32 %v1720, %v2756
    %v3269 = vadd.f32 %v1721, %v2757
    %v3270 = vadd.f32 %v1722, %v2758
    %v3271 = vadd.f32 %v1723, %v2759
    %v3272 = vadd.f32 %v1724, %v2760
    %v3273 = vadd.f32 %v1725, %v2761
    %v3274 = vadd.f32 %v1726, %v2762
    %v3275 = vadd.f32 %v1727, %v2763
    %v3276 = vadd.f32 %v1728, %v2764
    %v3277 = vadd.f32 %v1729, %v2765
    %v3278 = vadd.f32 %v1730, %v2766
    %v3279 = vadd.f32 %v1731, %v2767
    %v3280 = vadd.f32 %v1732, %v2768
    %v3281 = vadd.f32 %v1733, %v2769
    %v3282 = vadd.f32 %v1734, %v2770
    %v3283 = vadd.f32 %v1735, %v2771
    %v3284 = vadd.f32 %v1736, %v2772
    %v3285 = vadd.f32 %v1737, %v2773
    %v3286 = vadd.f32 %v1738, %v2774
    %v3287 = vadd.f32 %v1739, %v2775
    %v3288 = vadd.f32 %v1740, %v2776
    %v3289 = vadd.f32 %v1741, %v2777
    %v3290 = vadd.f32 %v1742, %v2778
    %v3291 = vadd.f32 %v1743, %v2779
    %v3292 = vadd.f32 %v1744, %v2780
    %v3293 = vadd.f32 %v1745, %v2781
    %v3294 = vadd.f32 %v1746, %v2782
    %v3295 = vadd.f32 %v1747, %v2783
    %v3296 = vadd.f32 %v1748, %v2784
    %v3297 = vadd.f32 %v1749, %v2785
    %v3298 = vadd.f32 %v1750, %v2786
    %v3299 = vadd.f32 %v1751, %v2787
    %v3300 = vadd.f32 %v1752, %v2788
    %v3301 = vadd.f32 %v1753, %v2789
    %v3302 = vadd.f32 %v1754, %v2790
    %v3303 = vadd.f32 %v1755, %v2791
    %v3304 = vadd.f32 %v1756, %v2792
    %v3305 = vadd.f32 %v1757, %v2793
    %v3306 = vadd.f32 %v1758, %v2794
    %v3307 = vadd.f32 %v1759, %v2795
    %v3308 = vadd.f32 %v1760, %v2796
    %v3309 = vadd.f32 %v1761, %v2797
    %v3310 = vadd.f32 %v1762, %v2798
    %v3311 = vadd.f32 %v1763, %v2799
    %v3312 = vadd.f32 %v1764, %v2800
    %v3313 = vadd.f32 %v1765, %v2801
    %v3314 = vadd.f32 %v1766, %v2802
    %v3315 = vadd.f32 %v1767, %v2803
    %v3316 = vadd.f32 %v1768, %v2804
    %v3317 = vadd.f32 %v1769, %v2805
    %v3318 = vadd.f32 %v1770, %v2806
    %v3319 = vadd.f32 %v1771, %v2807
    %v3320 = vadd.f32 %v1772, %v2808
    %v3321 = vadd.f32 %v1773, %v2809
    %v3322 = vadd.f32 %v1774, %v2810
    %v3323 = vadd.f32 %v1775, %v2811
    %v3324 = vadd.f32 %v1776, %v2812
    %v3325 = vadd.f32 %v1777, %v2813
    %v3326 = vadd.f32 %v1778, %v2814
    %v3327 = vadd.f32 %v1779, %v2815
    %v3328 = vadd.f32 %v1780, %v2816
    %v3329 = vadd.f32 %v1781, %v2817
    %v3330 = vadd.f32 %v1782, %v2818
    %v3331 = vadd.f32 %v1783, %v2819
    %v3332 = vadd.f32 %v1784, %v2820
    %v3333 = vadd.f32 %v1785, %v2821
    %v3334 = vadd.f32 %v1786, %v2822
    %v3335 = vadd.f32 %v1787, %v2823
    %v3336 = vadd.f32 %v1788, %v2824
    %v3337 = vadd.f32 %v1789, %v2825
    %v3338 = vadd.f32 %v1790, %v2826
    %v3339 = vadd.f32 %v1791, %v2827
    %v3340 = vadd.f32 %v1792, %v2828
    %v3341 = vadd.f32 %v1793, %v2829
    %v3342 = vadd.f32 %v1794, %v2830
    %v3343 = vadd.f32 %v1795, %v2831
    %v3344 = vadd.f32 %v1796, %v2832
    %v3345 = vadd.f32 %v1797, %v2833
    %v3346 = vadd.f32 %v1798, %v2834
    %v3347 = vadd.f32 %v1799, %v2835
    %v3348 = vadd.f32 %v1800, %v2836
    %v3349 = vadd.f32 %v1801, %v2837
    %v3350 = vadd.f32 %v1802, %v2838
    %v3351 = vadd.f32 %v1803, %v2839
    %v3352 = vadd.f32 %v1804, %v2840
    %v3353 = vadd.f32 %v1805, %v2841
    %v3354 = vadd.f32 %v1806, %v2842
    %v3355 = vadd.f32 %v1807, %v2843
    %v3356 = vadd.f32 %v1808, %v2844
    %v3357 = vadd.f32 %v1809, %v2845
    %v3358 = vadd.f32 %v1810, %v2846
    %v3359 = vadd.f32 %v1811, %v2847
    %v3360 = vadd.f32 %v1812, %v2848
    %v3361 = vadd.f32 %v1813, %v2849
    %v3362 = vadd.f32 %v1814, %v2850
    %v3363 = vadd.f32 %v1815, %v2851
    %v3364 = vadd.f32 %v1816, %v2852
    %v3365 = vadd.f32 %v1817, %v2853
    %v3366 = vadd.f32 %v1818, %v2854
    %v3367 = vadd.f32 %v1819, %v2855
    %v3368 = vadd.f32 %v1820, %v2856
    %v3369 = vadd.f32 %v1821, %v2857
    %v3370 = vadd.f32 %v1822, %v2858
    %v3371 = vadd.f32 %v1823, %v2859
    %v3372 = vadd.f32 %v1824, %v2860
    %v3373 = vadd.f32 %v1825, %v2861
    %v3374 = vadd.f32 %v1826, %v2862
    %v3375 = vadd.f32 %v1827, %v2863
    %v3376 = vadd.f32 %v1828, %v2864
    %v3377 = vadd.f32 %v1829, %v2865
    %v3378 = vadd.f32 %v1830, %v2866
    %v3379 = vadd.f32 %v1831, %v2867
    %v3380 = vadd.f32 %v1832, %v2868
    %v3381 = vadd.f32 %v1833, %v2869
    %v3382 = vadd.f32 %v1834, %v2870
    %v3383 = vadd.f32 %v1835, %v2871
    %v3384 = vadd.f32 %v1836, %v2872
    %v3385 = vadd.f32 %v1837, %v2873
    %v3386 = vadd.f32 %v1838, %v2874
    %v3387 = vadd.f32 %v1839, %v2875
    %v3388 = vadd.f32 %v1840, %v2876
    %v3389 = vadd.f32 %v1841, %v2877
    %v3390 = vadd.f32 %v1842, %v2878
    %v3391 = vadd.f32 %v1843, %v2879
    %v3392 = vadd.f32 %v1844, %v2880
    %3393 = vset.pattern.permute.xlu0 2
    %3394 = vperm.xlu0 %3393, %v27
    %v3395 = vpop.permute.xlu0 %3394
    %3397 = vset.pattern.permute.xlu0 2
    %3398 = vperm.xlu0 %3397, %v28
    %v3399 = vpop.permute.xlu0 %3398
    %3401 = vset.pattern.permute.xlu0 2
    %3402 = vperm.xlu0 %3401, %v29
    %v3403 = vpop.permute.xlu0 %3402
    %3405 = vset.pattern.permute.xlu0 2
    %3406 = vperm.xlu0 %3405, %v30
    %v3407 = vpop.permute.xlu0 %3406
    %3409 = vset.pattern.permute.xlu0 2
    %3410 = vperm.xlu0 %3409, %v31
    %v3411 = vpop.permute.xlu0 %3410
    %3413 = vset.pattern.permute.xlu0 2
    %3414 = vperm.xlu0 %3413, %v32
    %v3415 = vpop.permute.xlu0 %3414
    %3417 = vset.pattern.permute.xlu0 2
    %3418 = vperm.xlu0 %3417, %v33
    %v3419 = vpop.permute.xlu0 %3418
    %3421 = vset.pattern.permute.xlu0 2
    %3422 = vperm.xlu0 %3421, %v34
    %v3423 = vpop.permute.xlu0 %3422
    %3425 = vset.pattern.permute.xlu0 2
    %3426 = vperm.xlu0 %3425, %v35
    %v3427 = vpop.permute.xlu0 %3426
    %3429 = vset.pattern.permute.xlu0 2
    %3430 = vperm.xlu0 %3429, %v36
    %v3431 = vpop.permute.xlu0 %3430
    %3433 = vset.pattern.permute.xlu0 2
    %3434 = vperm.xlu0 %3433, %v37
    %v3435 = vpop.permute.xlu0 %3434
    %3437 = vset.pattern.permute.xlu0 2
    %3438 = vperm.xlu0 %3437, %v38
    %v3439 = vpop.permute.xlu0 %3438
    %3441 = vset.pattern.permute.xlu0 2
    %3442 = vperm.xlu0 %3441, %v39
    %v3443 = vpop.permute.xlu0 %3442
    %3445 = vset.pattern.permute.xlu0 2
    %3446 = vperm.xlu0 %3445, %v40
    %v3447 = vpop.permute.xlu0 %3446
    %3449 = vset.pattern.permute.xlu0 2
    %3450 = vperm.xlu0 %3449, %v41
    %v3451 = vpop.permute.xlu0 %3450
    %3453 = vset.pattern.permute.xlu0 2
    %3454 = vperm.xlu0 %3453, %v42
    %v3455 = vpop.permute.xlu0 %3454
    %3457 = vset.pattern.permute.xlu0 2
    %3458 = vperm.xlu0 %3457, %v43
    %v3459 = vpop.permute.xlu0 %3458
    %3461 = vset.pattern.permute.xlu0 2
    %3462 = vperm.xlu0 %3461, %v44
    %v3463 = vpop.permute.xlu0 %3462
    %3465 = vset.pattern.permute.xlu0 2
    %3466 = vperm.xlu0 %3465, %v45
    %v3467 = vpop.permute.xlu0 %3466
    %3469 = vset.pattern.permute.xlu0 2
    %3470 = vperm.xlu0 %3469, %v46
    %v3471 = vpop.permute.xlu0 %3470
    %3473 = vset.pattern.permute.xlu0 2
    %3474 = vperm.xlu0 %3473, %v47
    %v3475 = vpop.permute.xlu0 %3474
    %3477 = vset.pattern.permute.xlu0 2
    %3478 = vperm.xlu0 %3477, %v48
    %v3479 = vpop.permute.xlu0 %3478
    %3481 = vset.pattern.permute.xlu0 2
    %3482 = vperm.xlu0 %3481, %v49
    %v3483 = vpop.permute.xlu0 %3482
    %3485 = vset.pattern.permute.xlu0 2
    %3486 = vperm.xlu0 %3485, %v50
    %v3487 = vpop.permute.xlu0 %3486
    %3489 = vset.pattern.permute.xlu0 2
    %3490 = vperm.xlu0 %3489, %v51
    %v3491 = vpop.permute.xlu0 %3490
    %3493 = vset.pattern.permute.xlu0 2
    %3494 = vperm.xlu0 %3493, %v52
    %v3495 = vpop.permute.xlu0 %3494
    %3497 = vset.pattern.permute.xlu0 2
    %3498 = vperm.xlu0 %3497, %v53
    %v3499 = vpop.permute.xlu0 %3498
    %3501 = vset.pattern.permute.xlu0 2
    %3502 = vperm.xlu0 %3501, %v54
    %v3503 = vpop.permute.xlu0 %3502
    %3505 = vset.pattern.permute.xlu0 2
    %3506 = vperm.xlu0 %3505, %v55
    %v3507 = vpop.permute.xlu0 %3506
    %3509 = vset.pattern.permute.xlu0 2
    %3510 = vperm.xlu0 %3509, %v56
    %v3511 = vpop.permute.xlu0 %3510
    %3513 = vset.pattern.permute.xlu0 2
    %3514 = vperm.xlu0 %3513, %v57
    %v3515 = vpop.permute.xlu0 %3514
    %3517 = vset.pattern.permute.xlu0 2
    %3518 = vperm.xlu0 %3517, %v58
    %v3519 = vpop.permute.xlu0 %3518
    %3521 = vset.pattern.permute.xlu0 2
    %3522 = vperm.xlu0 %3521, %v59
    %v3523 = vpop.permute.xlu0 %3522
    %3525 = vset.pattern.permute.xlu0 2
    %3526 = vperm.xlu0 %3525, %v60
    %v3527 = vpop.permute.xlu0 %3526
    %3529 = vset.pattern.permute.xlu0 2
    %3530 = vperm.xlu0 %3529, %v61
    %v3531 = vpop.permute.xlu0 %3530
    %3533 = vset.pattern.permute.xlu0 2
    %3534 = vperm.xlu0 %3533, %v62
    %v3535 = vpop.permute.xlu0 %3534
    %3537 = vset.pattern.permute.xlu0 2
    %3538 = vperm.xlu0 %3537, %v63
    %v3539 = vpop.permute.xlu0 %3538
    %3541 = vset.pattern.permute.xlu0 2
    %3542 = vperm.xlu0 %3541, %v64
    %v3543 = vpop.permute.xlu0 %3542
    %3545 = vset.pattern.permute.xlu0 2
    %3546 = vperm.xlu0 %3545, %v65
    %v3547 = vpop.permute.xlu0 %3546
    %3549 = vset.pattern.permute.xlu0 2
    %3550 = vperm.xlu0 %3549, %v66
    %v3551 = vpop.permute.xlu0 %3550
    %3553 = vset.pattern.permute.xlu0 2
    %3554 = vperm.xlu0 %3553, %v67
    %v3555 = vpop.permute.xlu0 %3554
    %3557 = vset.pattern.permute.xlu0 2
    %3558 = vperm.xlu0 %3557, %v68
    %v3559 = vpop.permute.xlu0 %3558
    %3561 = vset.pattern.permute.xlu0 2
    %3562 = vperm.xlu0 %3561, %v69
    %v3563 = vpop.permute.xlu0 %3562
    %3565 = vset.pattern.permute.xlu0 2
    %3566 = vperm.xlu0 %3565, %v70
    %v3567 = vpop.permute.xlu0 %3566
    %3569 = vset.pattern.permute.xlu0 2
    %3570 = vperm.xlu0 %3569, %v71
    %v3571 = vpop.permute.xlu0 %3570
    %3573 = vset.pattern.permute.xlu0 2
    %3574 = vperm.xlu0 %3573, %v72
    %v3575 = vpop.permute.xlu0 %3574
    %3577 = vset.pattern.permute.xlu0 2
    %3578 = vperm.xlu0 %3577, %v73
    %v3579 = vpop.permute.xlu0 %3578
    %3581 = vset.pattern.permute.xlu0 2
    %3582 = vperm.xlu0 %3581, %v74
    %v3583 = vpop.permute.xlu0 %3582
    %3585 = vset.pattern.permute.xlu0 2
    %3586 = vperm.xlu0 %3585, %v75
    %v3587 = vpop.permute.xlu0 %3586
    %3589 = vset.pattern.permute.xlu0 2
    %3590 = vperm.xlu0 %3589, %v76
    %v3591 = vpop.permute.xlu0 %3590
    %3593 = vset.pattern.permute.xlu0 2
    %3594 = vperm.xlu0 %3593, %v77
    %v3595 = vpop.permute.xlu0 %3594
    %3597 = vset.pattern.permute.xlu0 2
    %3598 = vperm.xlu0 %3597, %v78
    %v3599 = vpop.permute.xlu0 %3598
    %3601 = vset.pattern.permute.xlu0 2
    %3602 = vperm.xlu0 %3601, %v79
    %v3603 = vpop.permute.xlu0 %3602
    %3605 = vset.pattern.permute.xlu0 2
    %3606 = vperm.xlu0 %3605, %v80
    %v3607 = vpop.permute.xlu0 %3606
    %3609 = vset.pattern.permute.xlu0 2
    %3610 = vperm.xlu0 %3609, %v81
    %v3611 = vpop.permute.xlu0 %3610
    %3613 = vset.pattern.permute.xlu0 2
    %3614 = vperm.xlu0 %3613, %v82
    %v3615 = vpop.permute.xlu0 %3614
    %3617 = vset.pattern.permute.xlu0 2
    %3618 = vperm.xlu0 %3617, %v83
    %v3619 = vpop.permute.xlu0 %3618
    %3621 = vset.pattern.permute.xlu0 2
    %3622 = vperm.xlu0 %3621, %v84
    %v3623 = vpop.permute.xlu0 %3622
    %3625 = vset.pattern.permute.xlu0 2
    %3626 = vperm.xlu0 %3625, %v85
    %v3627 = vpop.permute.xlu0 %3626
    %3629 = vset.pattern.permute.xlu0 2
    %3630 = vperm.xlu0 %3629, %v86
    %v3631 = vpop.permute.xlu0 %3630
    %3633 = vset.pattern.permute.xlu0 2
    %3634 = vperm.xlu0 %3633, %v87
    %v3635 = vpop.permute.xlu0 %3634
    %3637 = vset.pattern.permute.xlu0 2
    %3638 = vperm.xlu0 %3637, %v88
    %v3639 = vpop.permute.xlu0 %3638
    %3641 = vset.pattern.permute.xlu0 2
    %3642 = vperm.xlu0 %3641, %v89
    %v3643 = vpop.permute.xlu0 %3642
    %3645 = vset.pattern.permute.xlu0 2
    %3646 = vperm.xlu0 %3645, %v90
    %v3647 = vpop.permute.xlu0 %3646
    %3649 = vset.pattern.permute.xlu0 2
    %3650 = vperm.xlu0 %3649, %v91
    %v3651 = vpop.permute.xlu0 %3650
    %3653 = vset.pattern.permute.xlu0 2
    %3654 = vperm.xlu0 %3653, %v92
    %v3655 = vpop.permute.xlu0 %3654
    %3657 = vset.pattern.permute.xlu0 2
    %3658 = vperm.xlu0 %3657, %v93
    %v3659 = vpop.permute.xlu0 %3658
    %3661 = vset.pattern.permute.xlu0 2
    %3662 = vperm.xlu0 %3661, %v94
    %v3663 = vpop.permute.xlu0 %3662
    %3665 = vset.pattern.permute.xlu0 2
    %3666 = vperm.xlu0 %3665, %v95
    %v3667 = vpop.permute.xlu0 %3666
    %3669 = vset.pattern.permute.xlu0 2
    %3670 = vperm.xlu0 %3669, %v96
    %v3671 = vpop.permute.xlu0 %3670
    %3673 = vset.pattern.permute.xlu0 2
    %3674 = vperm.xlu0 %3673, %v97
    %v3675 = vpop.permute.xlu0 %3674
    %3677 = vset.pattern.permute.xlu0 2
    %3678 = vperm.xlu0 %3677, %v98
    %v3679 = vpop.permute.xlu0 %3678
    %3681 = vset.pattern.permute.xlu0 2
    %3682 = vperm.xlu0 %3681, %v99
    %v3683 = vpop.permute.xlu0 %3682
    %3685 = vset.pattern.permute.xlu0 2
    %3686 = vperm.xlu0 %3685, %v100
    %v3687 = vpop.permute.xlu0 %3686
    %3689 = vset.pattern.permute.xlu0 2
    %3690 = vperm.xlu0 %3689, %v101
    %v3691 = vpop.permute.xlu0 %3690
    %3693 = vset.pattern.permute.xlu0 2
    %3694 = vperm.xlu0 %3693, %v102
    %v3695 = vpop.permute.xlu0 %3694
    %3697 = vset.pattern.permute.xlu0 2
    %3698 = vperm.xlu0 %3697, %v103
    %v3699 = vpop.permute.xlu0 %3698
    %3701 = vset.pattern.permute.xlu0 2
    %3702 = vperm.xlu0 %3701, %v104
    %v3703 = vpop.permute.xlu0 %3702
    %3705 = vset.pattern.permute.xlu0 2
    %3706 = vperm.xlu0 %3705, %v105
    %v3707 = vpop.permute.xlu0 %3706
    %3709 = vset.pattern.permute.xlu0 2
    %3710 = vperm.xlu0 %3709, %v106
    %v3711 = vpop.permute.xlu0 %3710
    %3713 = vset.pattern.permute.xlu0 2
    %3714 = vperm.xlu0 %3713, %v107
    %v3715 = vpop.permute.xlu0 %3714
    %3717 = vset.pattern.permute.xlu0 2
    %3718 = vperm.xlu0 %3717, %v108
    %v3719 = vpop.permute.xlu0 %3718
    %3721 = vset.pattern.permute.xlu0 2
    %3722 = vperm.xlu0 %3721, %v109
    %v3723 = vpop.permute.xlu0 %3722
    %3725 = vset.pattern.permute.xlu0 2
    %3726 = vperm.xlu0 %3725, %v110
    %v3727 = vpop.permute.xlu0 %3726
    %3729 = vset.pattern.permute.xlu0 2
    %3730 = vperm.xlu0 %3729, %v111
    %v3731 = vpop.permute.xlu0 %3730
    %3733 = vset.pattern.permute.xlu0 2
    %3734 = vperm.xlu0 %3733, %v112
    %v3735 = vpop.permute.xlu0 %3734
    %3737 = vset.pattern.permute.xlu0 2
    %3738 = vperm.xlu0 %3737, %v113
    %v3739 = vpop.permute.xlu0 %3738
    %3741 = vset.pattern.permute.xlu0 2
    %3742 = vperm.xlu0 %3741, %v114
    %v3743 = vpop.permute.xlu0 %3742
    %3745 = vset.pattern.permute.xlu0 2
    %3746 = vperm.xlu0 %3745, %v115
    %v3747 = vpop.permute.xlu0 %3746
    %3749 = vset.pattern.permute.xlu0 2
    %3750 = vperm.xlu0 %3749, %v116
    %v3751 = vpop.permute.xlu0 %3750
    %3753 = vset.pattern.permute.xlu0 2
    %3754 = vperm.xlu0 %3753, %v117
    %v3755 = vpop.permute.xlu0 %3754
    %3757 = vset.pattern.permute.xlu0 2
    %3758 = vperm.xlu0 %3757, %v118
    %v3759 = vpop.permute.xlu0 %3758
    %3761 = vset.pattern.permute.xlu0 2
    %3762 = vperm.xlu0 %3761, %v119
    %v3763 = vpop.permute.xlu0 %3762
    %3765 = vset.pattern.permute.xlu0 2
    %3766 = vperm.xlu0 %3765, %v120
    %v3767 = vpop.permute.xlu0 %3766
    %3769 = vset.pattern.permute.xlu0 2
    %3770 = vperm.xlu0 %3769, %v121
    %v3771 = vpop.permute.xlu0 %3770
    %3773 = vset.pattern.permute.xlu0 2
    %3774 = vperm.xlu0 %3773, %v122
    %v3775 = vpop.permute.xlu0 %3774
    %3777 = vset.pattern.permute.xlu0 2
    %3778 = vperm.xlu0 %3777, %v123
    %v3779 = vpop.permute.xlu0 %3778
    %3781 = vset.pattern.permute.xlu0 2
    %3782 = vperm.xlu0 %3781, %v124
    %v3783 = vpop.permute.xlu0 %3782
    %3785 = vset.pattern.permute.xlu0 2
    %3786 = vperm.xlu0 %3785, %v125
    %v3787 = vpop.permute.xlu0 %3786
    %3789 = vset.pattern.permute.xlu0 2
    %3790 = vperm.xlu0 %3789, %v126
    %v3791 = vpop.permute.xlu0 %3790
    %3793 = vset.pattern.permute.xlu0 2
    %3794 = vperm.xlu0 %3793, %v127
    %v3795 = vpop.permute.xlu0 %3794
    %3797 = vset.pattern.permute.xlu0 2
    %3798 = vperm.xlu0 %3797, %v128
    %v3799 = vpop.permute.xlu0 %3798
    %3801 = vset.pattern.permute.xlu0 2
    %3802 = vperm.xlu0 %3801, %v129
    %v3803 = vpop.permute.xlu0 %3802
    %3805 = vset.pattern.permute.xlu0 2
    %3806 = vperm.xlu0 %3805, %v130
    %v3807 = vpop.permute.xlu0 %3806
    %3809 = vset.pattern.permute.xlu0 2
    %3810 = vperm.xlu0 %3809, %v131
    %v3811 = vpop.permute.xlu0 %3810
    %3813 = vset.pattern.permute.xlu0 2
    %3814 = vperm.xlu0 %3813, %v132
    %v3815 = vpop.permute.xlu0 %3814
    %3817 = vset.pattern.permute.xlu0 2
    %3818 = vperm.xlu0 %3817, %v133
    %v3819 = vpop.permute.xlu0 %3818
    %3821 = vset.pattern.permute.xlu0 2
    %3822 = vperm.xlu0 %3821, %v134
    %v3823 = vpop.permute.xlu0 %3822
    %3825 = vset.pattern.permute.xlu0 2
    %3826 = vperm.xlu0 %3825, %v135
    %v3827 = vpop.permute.xlu0 %3826
    %3829 = vset.pattern.permute.xlu0 2
    %3830 = vperm.xlu0 %3829, %v136
    %v3831 = vpop.permute.xlu0 %3830
    %3833 = vset.pattern.permute.xlu0 2
    %3834 = vperm.xlu0 %3833, %v137
    %v3835 = vpop.permute.xlu0 %3834
    %3837 = vset.pattern.permute.xlu0 2
    %3838 = vperm.xlu0 %3837, %v138
    %v3839 = vpop.permute.xlu0 %3838
    %3841 = vset.pattern.permute.xlu0 2
    %3842 = vperm.xlu0 %3841, %v139
    %v3843 = vpop.permute.xlu0 %3842
    %3845 = vset.pattern.permute.xlu0 2
    %3846 = vperm.xlu0 %3845, %v140
    %v3847 = vpop.permute.xlu0 %3846
    %3849 = vset.pattern.permute.xlu0 2
    %3850 = vperm.xlu0 %3849, %v141
    %v3851 = vpop.permute.xlu0 %3850
    %3853 = vset.pattern.permute.xlu0 2
    %3854 = vperm.xlu0 %3853, %v142
    %v3855 = vpop.permute.xlu0 %3854
    %3857 = vset.pattern.permute.xlu0 2
    %3858 = vperm.xlu0 %3857, %v143
    %v3859 = vpop.permute.xlu0 %3858
    %3861 = vset.pattern.permute.xlu0 2
    %3862 = vperm.xlu0 %3861, %v144
    %v3863 = vpop.permute.xlu0 %3862
    %3865 = vset.pattern.permute.xlu0 2
    %3866 = vperm.xlu0 %3865, %v145
    %v3867 = vpop.permute.xlu0 %3866
    %3869 = vset.pattern.permute.xlu0 2
    %3870 = vperm.xlu0 %3869, %v146
    %v3871 = vpop.permute.xlu0 %3870
    %3873 = vset.pattern.permute.xlu0 2
    %3874 = vperm.xlu0 %3873, %v147
    %v3875 = vpop.permute.xlu0 %3874
    %3877 = vset.pattern.permute.xlu0 2
    %3878 = vperm.xlu0 %3877, %v148
    %v3879 = vpop.permute.xlu0 %3878
    %3881 = vset.pattern.permute.xlu0 2
    %3882 = vperm.xlu0 %3881, %v149
    %v3883 = vpop.permute.xlu0 %3882
    %3885 = vset.pattern.permute.xlu0 2
    %3886 = vperm.xlu0 %3885, %v150
    %v3887 = vpop.permute.xlu0 %3886
    %3889 = vset.pattern.permute.xlu0 2
    %3890 = vperm.xlu0 %3889, %v151
    %v3891 = vpop.permute.xlu0 %3890
    %3893 = vset.pattern.permute.xlu0 2
    %3894 = vperm.xlu0 %3893, %v152
    %v3895 = vpop.permute.xlu0 %3894
    %3897 = vset.pattern.permute.xlu0 2
    %3898 = vperm.xlu0 %3897, %v153
    %v3899 = vpop.permute.xlu0 %3898
    %3901 = vset.pattern.permute.xlu0 2
    %3902 = vperm.xlu0 %3901, %v154
    %v3903 = vpop.permute.xlu0 %3902
    %v3905 = vperm.slane %v155, 2
    %v3906 = vperm.slane %v155, 6
    %v3907 = vperm.slane %v156, 2
    %v3908 = vperm.slane %v156, 6
    %v3913 = vperm.slane %v3905, 2
    %v3914 = vperm.slane %v3906, 2
    %v3915 = vperm.slane %v3907, 2
    %v3916 = vperm.slane %v3908, 2
    %v3917 = vmul.f32 %v3395, %v3913
    %v3918 = vmul.f32 %v3395, %v3914
    %v3919 = vmul.f32 %v3395, %v3915
    %v3920 = vmul.f32 %v3395, %v3916
    %v3921 = vmul.f32 %v3399, %v3913
    %v3922 = vmul.f32 %v3399, %v3914
    %v3923 = vmul.f32 %v3399, %v3915
    %v3924 = vmul.f32 %v3399, %v3916
    %v3925 = vmul.f32 %v3403, %v3913
    %v3926 = vmul.f32 %v3403, %v3914
    %v3927 = vmul.f32 %v3403, %v3915
    %v3928 = vmul.f32 %v3403, %v3916
    %v3929 = vmul.f32 %v3407, %v3913
    %v3930 = vmul.f32 %v3407, %v3914
    %v3931 = vmul.f32 %v3407, %v3915
    %v3932 = vmul.f32 %v3407, %v3916
    %v3933 = vmul.f32 %v3411, %v3913
    %v3934 = vmul.f32 %v3411, %v3914
    %v3935 = vmul.f32 %v3411, %v3915
    %v3936 = vmul.f32 %v3411, %v3916
    %v3937 = vmul.f32 %v3415, %v3913
    %v3938 = vmul.f32 %v3415, %v3914
    %v3939 = vmul.f32 %v3415, %v3915
    %v3940 = vmul.f32 %v3415, %v3916
    %v3941 = vmul.f32 %v3419, %v3913
    %v3942 = vmul.f32 %v3419, %v3914
    %v3943 = vmul.f32 %v3419, %v3915
    %v3944 = vmul.f32 %v3419, %v3916
    %v3945 = vmul.f32 %v3423, %v3913
    %v3946 = vmul.f32 %v3423, %v3914
    %v3947 = vmul.f32 %v3423, %v3915
    %v3948 = vmul.f32 %v3423, %v3916
    %v3949 = vmul.f32 %v3427, %v3913
    %v3950 = vmul.f32 %v3427, %v3914
    %v3951 = vmul.f32 %v3427, %v3915
    %v3952 = vmul.f32 %v3427, %v3916
    %v3953 = vmul.f32 %v3431, %v3913
    %v3954 = vmul.f32 %v3431, %v3914
    %v3955 = vmul.f32 %v3431, %v3915
    %v3956 = vmul.f32 %v3431, %v3916
    %v3957 = vmul.f32 %v3435, %v3913
    %v3958 = vmul.f32 %v3435, %v3914
    %v3959 = vmul.f32 %v3435, %v3915
    %v3960 = vmul.f32 %v3435, %v3916
    %v3961 = vmul.f32 %v3439, %v3913
    %v3962 = vmul.f32 %v3439, %v3914
    %v3963 = vmul.f32 %v3439, %v3915
    %v3964 = vmul.f32 %v3439, %v3916
    %v3965 = vmul.f32 %v3443, %v3913
    %v3966 = vmul.f32 %v3443, %v3914
    %v3967 = vmul.f32 %v3443, %v3915
    %v3968 = vmul.f32 %v3443, %v3916
    %v3969 = vmul.f32 %v3447, %v3913
    %v3970 = vmul.f32 %v3447, %v3914
    %v3971 = vmul.f32 %v3447, %v3915
    %v3972 = vmul.f32 %v3447, %v3916
    %v3973 = vmul.f32 %v3451, %v3913
    %v3974 = vmul.f32 %v3451, %v3914
    %v3975 = vmul.f32 %v3451, %v3915
    %v3976 = vmul.f32 %v3451, %v3916
    %v3977 = vmul.f32 %v3455, %v3913
    %v3978 = vmul.f32 %v3455, %v3914
    %v3979 = vmul.f32 %v3455, %v3915
    %v3980 = vmul.f32 %v3455, %v3916
    %v3981 = vmul.f32 %v3459, %v3913
    %v3982 = vmul.f32 %v3459, %v3914
    %v3983 = vmul.f32 %v3459, %v3915
    %v3984 = vmul.f32 %v3459, %v3916
    %v3985 = vmul.f32 %v3463, %v3913
    %v3986 = vmul.f32 %v3463, %v3914
    %v3987 = vmul.f32 %v3463, %v3915
    %v3988 = vmul.f32 %v3463, %v3916
    %v3989 = vmul.f32 %v3467, %v3913
    %v3990 = vmul.f32 %v3467, %v3914
    %v3991 = vmul.f32 %v3467, %v3915
    %v3992 = vmul.f32 %v3467, %v3916
    %v3993 = vmul.f32 %v3471, %v3913
    %v3994 = vmul.f32 %v3471, %v3914
    %v3995 = vmul.f32 %v3471, %v3915
    %v3996 = vmul.f32 %v3471, %v3916
    %v3997 = vmul.f32 %v3475, %v3913
    %v3998 = vmul.f32 %v3475, %v3914
    %v3999 = vmul.f32 %v3475, %v3915
    %v4000 = vmul.f32 %v3475, %v3916
    %v4001 = vmul.f32 %v3479, %v3913
    %v4002 = vmul.f32 %v3479, %v3914
    %v4003 = vmul.f32 %v3479, %v3915
    %v4004 = vmul.f32 %v3479, %v3916
    %v4005 = vmul.f32 %v3483, %v3913
    %v4006 = vmul.f32 %v3483, %v3914
    %v4007 = vmul.f32 %v3483, %v3915
    %v4008 = vmul.f32 %v3483, %v3916
    %v4009 = vmul.f32 %v3487, %v3913
    %v4010 = vmul.f32 %v3487, %v3914
    %v4011 = vmul.f32 %v3487, %v3915
    %v4012 = vmul.f32 %v3487, %v3916
    %v4013 = vmul.f32 %v3491, %v3913
    %v4014 = vmul.f32 %v3491, %v3914
    %v4015 = vmul.f32 %v3491, %v3915
    %v4016 = vmul.f32 %v3491, %v3916
    %v4017 = vmul.f32 %v3495, %v3913
    %v4018 = vmul.f32 %v3495, %v3914
    %v4019 = vmul.f32 %v3495, %v3915
    %v4020 = vmul.f32 %v3495, %v3916
    %v4021 = vmul.f32 %v3499, %v3913
    %v4022 = vmul.f32 %v3499, %v3914
    %v4023 = vmul.f32 %v3499, %v3915
    %v4024 = vmul.f32 %v3499, %v3916
    %v4025 = vmul.f32 %v3503, %v3913
    %v4026 = vmul.f32 %v3503, %v3914
    %v4027 = vmul.f32 %v3503, %v3915
    %v4028 = vmul.f32 %v3503, %v3916
    %v4029 = vmul.f32 %v3507, %v3913
    %v4030 = vmul.f32 %v3507, %v3914
    %v4031 = vmul.f32 %v3507, %v3915
    %v4032 = vmul.f32 %v3507, %v3916
    %v4033 = vmul.f32 %v3511, %v3913
    %v4034 = vmul.f32 %v3511, %v3914
    %v4035 = vmul.f32 %v3511, %v3915
    %v4036 = vmul.f32 %v3511, %v3916
    %v4037 = vmul.f32 %v3515, %v3913
    %v4038 = vmul.f32 %v3515, %v3914
    %v4039 = vmul.f32 %v3515, %v3915
    %v4040 = vmul.f32 %v3515, %v3916
    %v4041 = vmul.f32 %v3519, %v3913
    %v4042 = vmul.f32 %v3519, %v3914
    %v4043 = vmul.f32 %v3519, %v3915
    %v4044 = vmul.f32 %v3519, %v3916
    %v4045 = vmul.f32 %v3523, %v3913
    %v4046 = vmul.f32 %v3523, %v3914
    %v4047 = vmul.f32 %v3523, %v3915
    %v4048 = vmul.f32 %v3523, %v3916
    %v4049 = vmul.f32 %v3527, %v3913
    %v4050 = vmul.f32 %v3527, %v3914
    %v4051 = vmul.f32 %v3527, %v3915
    %v4052 = vmul.f32 %v3527, %v3916
    %v4053 = vmul.f32 %v3531, %v3913
    %v4054 = vmul.f32 %v3531, %v3914
    %v4055 = vmul.f32 %v3531, %v3915
    %v4056 = vmul.f32 %v3531, %v3916
    %v4057 = vmul.f32 %v3535, %v3913
    %v4058 = vmul.f32 %v3535, %v3914
    %v4059 = vmul.f32 %v3535, %v3915
    %v4060 = vmul.f32 %v3535, %v3916
    %v4061 = vmul.f32 %v3539, %v3913
    %v4062 = vmul.f32 %v3539, %v3914
    %v4063 = vmul.f32 %v3539, %v3915
    %v4064 = vmul.f32 %v3539, %v3916
    %v4065 = vmul.f32 %v3543, %v3913
    %v4066 = vmul.f32 %v3543, %v3914
    %v4067 = vmul.f32 %v3543, %v3915
    %v4068 = vmul.f32 %v3543, %v3916
    %v4069 = vmul.f32 %v3547, %v3913
    %v4070 = vmul.f32 %v3547, %v3914
    %v4071 = vmul.f32 %v3547, %v3915
    %v4072 = vmul.f32 %v3547, %v3916
    %v4073 = vmul.f32 %v3551, %v3913
    %v4074 = vmul.f32 %v3551, %v3914
    %v4075 = vmul.f32 %v3551, %v3915
    %v4076 = vmul.f32 %v3551, %v3916
    %v4077 = vmul.f32 %v3555, %v3913
    %v4078 = vmul.f32 %v3555, %v3914
    %v4079 = vmul.f32 %v3555, %v3915
    %v4080 = vmul.f32 %v3555, %v3916
    %v4081 = vmul.f32 %v3559, %v3913
    %v4082 = vmul.f32 %v3559, %v3914
    %v4083 = vmul.f32 %v3559, %v3915
    %v4084 = vmul.f32 %v3559, %v3916
    %v4085 = vmul.f32 %v3563, %v3913
    %v4086 = vmul.f32 %v3563, %v3914
    %v4087 = vmul.f32 %v3563, %v3915
    %v4088 = vmul.f32 %v3563, %v3916
    %v4089 = vmul.f32 %v3567, %v3913
    %v4090 = vmul.f32 %v3567, %v3914
    %v4091 = vmul.f32 %v3567, %v3915
    %v4092 = vmul.f32 %v3567, %v3916
    %v4093 = vmul.f32 %v3571, %v3913
    %v4094 = vmul.f32 %v3571, %v3914
    %v4095 = vmul.f32 %v3571, %v3915
    %v4096 = vmul.f32 %v3571, %v3916
    %v4097 = vmul.f32 %v3575, %v3913
    %v4098 = vmul.f32 %v3575, %v3914
    %v4099 = vmul.f32 %v3575, %v3915
    %v4100 = vmul.f32 %v3575, %v3916
    %v4101 = vmul.f32 %v3579, %v3913
    %v4102 = vmul.f32 %v3579, %v3914
    %v4103 = vmul.f32 %v3579, %v3915
    %v4104 = vmul.f32 %v3579, %v3916
    %v4105 = vmul.f32 %v3583, %v3913
    %v4106 = vmul.f32 %v3583, %v3914
    %v4107 = vmul.f32 %v3583, %v3915
    %v4108 = vmul.f32 %v3583, %v3916
    %v4109 = vmul.f32 %v3587, %v3913
    %v4110 = vmul.f32 %v3587, %v3914
    %v4111 = vmul.f32 %v3587, %v3915
    %v4112 = vmul.f32 %v3587, %v3916
    %v4113 = vmul.f32 %v3591, %v3913
    %v4114 = vmul.f32 %v3591, %v3914
    %v4115 = vmul.f32 %v3591, %v3915
    %v4116 = vmul.f32 %v3591, %v3916
    %v4117 = vmul.f32 %v3595, %v3913
    %v4118 = vmul.f32 %v3595, %v3914
    %v4119 = vmul.f32 %v3595, %v3915
    %v4120 = vmul.f32 %v3595, %v3916
    %v4121 = vmul.f32 %v3599, %v3913
    %v4122 = vmul.f32 %v3599, %v3914
    %v4123 = vmul.f32 %v3599, %v3915
    %v4124 = vmul.f32 %v3599, %v3916
    %v4125 = vmul.f32 %v3603, %v3913
    %v4126 = vmul.f32 %v3603, %v3914
    %v4127 = vmul.f32 %v3603, %v3915
    %v4128 = vmul.f32 %v3603, %v3916
    %v4129 = vmul.f32 %v3607, %v3913
    %v4130 = vmul.f32 %v3607, %v3914
    %v4131 = vmul.f32 %v3607, %v3915
    %v4132 = vmul.f32 %v3607, %v3916
    %v4133 = vmul.f32 %v3611, %v3913
    %v4134 = vmul.f32 %v3611, %v3914
    %v4135 = vmul.f32 %v3611, %v3915
    %v4136 = vmul.f32 %v3611, %v3916
    %v4137 = vmul.f32 %v3615, %v3913
    %v4138 = vmul.f32 %v3615, %v3914
    %v4139 = vmul.f32 %v3615, %v3915
    %v4140 = vmul.f32 %v3615, %v3916
    %v4141 = vmul.f32 %v3619, %v3913
    %v4142 = vmul.f32 %v3619, %v3914
    %v4143 = vmul.f32 %v3619, %v3915
    %v4144 = vmul.f32 %v3619, %v3916
    %v4145 = vmul.f32 %v3623, %v3913
    %v4146 = vmul.f32 %v3623, %v3914
    %v4147 = vmul.f32 %v3623, %v3915
    %v4148 = vmul.f32 %v3623, %v3916
    %v4149 = vmul.f32 %v3627, %v3913
    %v4150 = vmul.f32 %v3627, %v3914
    %v4151 = vmul.f32 %v3627, %v3915
    %v4152 = vmul.f32 %v3627, %v3916
    %v4153 = vmul.f32 %v3631, %v3913
    %v4154 = vmul.f32 %v3631, %v3914
    %v4155 = vmul.f32 %v3631, %v3915
    %v4156 = vmul.f32 %v3631, %v3916
    %v4157 = vmul.f32 %v3635, %v3913
    %v4158 = vmul.f32 %v3635, %v3914
    %v4159 = vmul.f32 %v3635, %v3915
    %v4160 = vmul.f32 %v3635, %v3916
    %v4161 = vmul.f32 %v3639, %v3913
    %v4162 = vmul.f32 %v3639, %v3914
    %v4163 = vmul.f32 %v3639, %v3915
    %v4164 = vmul.f32 %v3639, %v3916
    %v4165 = vmul.f32 %v3643, %v3913
    %v4166 = vmul.f32 %v3643, %v3914
    %v4167 = vmul.f32 %v3643, %v3915
    %v4168 = vmul.f32 %v3643, %v3916
    %v4169 = vmul.f32 %v3647, %v3913
    %v4170 = vmul.f32 %v3647, %v3914
    %v4171 = vmul.f32 %v3647, %v3915
    %v4172 = vmul.f32 %v3647, %v3916
    %v4173 = vmul.f32 %v3651, %v3913
    %v4174 = vmul.f32 %v3651, %v3914
    %v4175 = vmul.f32 %v3651, %v3915
    %v4176 = vmul.f32 %v3651, %v3916
    %v4177 = vmul.f32 %v3655, %v3913
    %v4178 = vmul.f32 %v3655, %v3914
    %v4179 = vmul.f32 %v3655, %v3915
    %v4180 = vmul.f32 %v3655, %v3916
    %v4181 = vmul.f32 %v3659, %v3913
    %v4182 = vmul.f32 %v3659, %v3914
    %v4183 = vmul.f32 %v3659, %v3915
    %v4184 = vmul.f32 %v3659, %v3916
    %v4185 = vmul.f32 %v3663, %v3913
    %v4186 = vmul.f32 %v3663, %v3914
    %v4187 = vmul.f32 %v3663, %v3915
    %v4188 = vmul.f32 %v3663, %v3916
    %v4189 = vmul.f32 %v3667, %v3913
    %v4190 = vmul.f32 %v3667, %v3914
    %v4191 = vmul.f32 %v3667, %v3915
    %v4192 = vmul.f32 %v3667, %v3916
    %v4193 = vmul.f32 %v3671, %v3913
    %v4194 = vmul.f32 %v3671, %v3914
    %v4195 = vmul.f32 %v3671, %v3915
    %v4196 = vmul.f32 %v3671, %v3916
    %v4197 = vmul.f32 %v3675, %v3913
    %v4198 = vmul.f32 %v3675, %v3914
    %v4199 = vmul.f32 %v3675, %v3915
    %v4200 = vmul.f32 %v3675, %v3916
    %v4201 = vmul.f32 %v3679, %v3913
    %v4202 = vmul.f32 %v3679, %v3914
    %v4203 = vmul.f32 %v3679, %v3915
    %v4204 = vmul.f32 %v3679, %v3916
    %v4205 = vmul.f32 %v3683, %v3913
    %v4206 = vmul.f32 %v3683, %v3914
    %v4207 = vmul.f32 %v3683, %v3915
    %v4208 = vmul.f32 %v3683, %v3916
    %v4209 = vmul.f32 %v3687, %v3913
    %v4210 = vmul.f32 %v3687, %v3914
    %v4211 = vmul.f32 %v3687, %v3915
    %v4212 = vmul.f32 %v3687, %v3916
    %v4213 = vmul.f32 %v3691, %v3913
    %v4214 = vmul.f32 %v3691, %v3914
    %v4215 = vmul.f32 %v3691, %v3915
    %v4216 = vmul.f32 %v3691, %v3916
    %v4217 = vmul.f32 %v3695, %v3913
    %v4218 = vmul.f32 %v3695, %v3914
    %v4219 = vmul.f32 %v3695, %v3915
    %v4220 = vmul.f32 %v3695, %v3916
    %v4221 = vmul.f32 %v3699, %v3913
    %v4222 = vmul.f32 %v3699, %v3914
    %v4223 = vmul.f32 %v3699, %v3915
    %v4224 = vmul.f32 %v3699, %v3916
    %v4225 = vmul.f32 %v3703, %v3913
    %v4226 = vmul.f32 %v3703, %v3914
    %v4227 = vmul.f32 %v3703, %v3915
    %v4228 = vmul.f32 %v3703, %v3916
    %v4229 = vmul.f32 %v3707, %v3913
    %v4230 = vmul.f32 %v3707, %v3914
    %v4231 = vmul.f32 %v3707, %v3915
    %v4232 = vmul.f32 %v3707, %v3916
    %v4233 = vmul.f32 %v3711, %v3913
    %v4234 = vmul.f32 %v3711, %v3914
    %v4235 = vmul.f32 %v3711, %v3915
    %v4236 = vmul.f32 %v3711, %v3916
    %v4237 = vmul.f32 %v3715, %v3913
    %v4238 = vmul.f32 %v3715, %v3914
    %v4239 = vmul.f32 %v3715, %v3915
    %v4240 = vmul.f32 %v3715, %v3916
    %v4241 = vmul.f32 %v3719, %v3913
    %v4242 = vmul.f32 %v3719, %v3914
    %v4243 = vmul.f32 %v3719, %v3915
    %v4244 = vmul.f32 %v3719, %v3916
    %v4245 = vmul.f32 %v3723, %v3913
    %v4246 = vmul.f32 %v3723, %v3914
    %v4247 = vmul.f32 %v3723, %v3915
    %v4248 = vmul.f32 %v3723, %v3916
    %v4249 = vmul.f32 %v3727, %v3913
    %v4250 = vmul.f32 %v3727, %v3914
    %v4251 = vmul.f32 %v3727, %v3915
    %v4252 = vmul.f32 %v3727, %v3916
    %v4253 = vmul.f32 %v3731, %v3913
    %v4254 = vmul.f32 %v3731, %v3914
    %v4255 = vmul.f32 %v3731, %v3915
    %v4256 = vmul.f32 %v3731, %v3916
    %v4257 = vmul.f32 %v3735, %v3913
    %v4258 = vmul.f32 %v3735, %v3914
    %v4259 = vmul.f32 %v3735, %v3915
    %v4260 = vmul.f32 %v3735, %v3916
    %v4261 = vmul.f32 %v3739, %v3913
    %v4262 = vmul.f32 %v3739, %v3914
    %v4263 = vmul.f32 %v3739, %v3915
    %v4264 = vmul.f32 %v3739, %v3916
    %v4265 = vmul.f32 %v3743, %v3913
    %v4266 = vmul.f32 %v3743, %v3914
    %v4267 = vmul.f32 %v3743, %v3915
    %v4268 = vmul.f32 %v3743, %v3916
    %v4269 = vmul.f32 %v3747, %v3913
    %v4270 = vmul.f32 %v3747, %v3914
    %v4271 = vmul.f32 %v3747, %v3915
    %v4272 = vmul.f32 %v3747, %v3916
    %v4273 = vmul.f32 %v3751, %v3913
    %v4274 = vmul.f32 %v3751, %v3914
    %v4275 = vmul.f32 %v3751, %v3915
    %v4276 = vmul.f32 %v3751, %v3916
    %v4277 = vmul.f32 %v3755, %v3913
    %v4278 = vmul.f32 %v3755, %v3914
    %v4279 = vmul.f32 %v3755, %v3915
    %v4280 = vmul.f32 %v3755, %v3916
    %v4281 = vmul.f32 %v3759, %v3913
    %v4282 = vmul.f32 %v3759, %v3914
    %v4283 = vmul.f32 %v3759, %v3915
    %v4284 = vmul.f32 %v3759, %v3916
    %v4285 = vmul.f32 %v3763, %v3913
    %v4286 = vmul.f32 %v3763, %v3914
    %v4287 = vmul.f32 %v3763, %v3915
    %v4288 = vmul.f32 %v3763, %v3916
    %v4289 = vmul.f32 %v3767, %v3913
    %v4290 = vmul.f32 %v3767, %v3914
    %v4291 = vmul.f32 %v3767, %v3915
    %v4292 = vmul.f32 %v3767, %v3916
    %v4293 = vmul.f32 %v3771, %v3913
    %v4294 = vmul.f32 %v3771, %v3914
    %v4295 = vmul.f32 %v3771, %v3915
    %v4296 = vmul.f32 %v3771, %v3916
    %v4297 = vmul.f32 %v3775, %v3913
    %v4298 = vmul.f32 %v3775, %v3914
    %v4299 = vmul.f32 %v3775, %v3915
    %v4300 = vmul.f32 %v3775, %v3916
    %v4301 = vmul.f32 %v3779, %v3913
    %v4302 = vmul.f32 %v3779, %v3914
    %v4303 = vmul.f32 %v3779, %v3915
    %v4304 = vmul.f32 %v3779, %v3916
    %v4305 = vmul.f32 %v3783, %v3913
    %v4306 = vmul.f32 %v3783, %v3914
    %v4307 = vmul.f32 %v3783, %v3915
    %v4308 = vmul.f32 %v3783, %v3916
    %v4309 = vmul.f32 %v3787, %v3913
    %v4310 = vmul.f32 %v3787, %v3914
    %v4311 = vmul.f32 %v3787, %v3915
    %v4312 = vmul.f32 %v3787, %v3916
    %v4313 = vmul.f32 %v3791, %v3913
    %v4314 = vmul.f32 %v3791, %v3914
    %v4315 = vmul.f32 %v3791, %v3915
    %v4316 = vmul.f32 %v3791, %v3916
    %v4317 = vmul.f32 %v3795, %v3913
    %v4318 = vmul.f32 %v3795, %v3914
    %v4319 = vmul.f32 %v3795, %v3915
    %v4320 = vmul.f32 %v3795, %v3916
    %v4321 = vmul.f32 %v3799, %v3913
    %v4322 = vmul.f32 %v3799, %v3914
    %v4323 = vmul.f32 %v3799, %v3915
    %v4324 = vmul.f32 %v3799, %v3916
    %v4325 = vmul.f32 %v3803, %v3913
    %v4326 = vmul.f32 %v3803, %v3914
    %v4327 = vmul.f32 %v3803, %v3915
    %v4328 = vmul.f32 %v3803, %v3916
    %v4329 = vmul.f32 %v3807, %v3913
    %v4330 = vmul.f32 %v3807, %v3914
    %v4331 = vmul.f32 %v3807, %v3915
    %v4332 = vmul.f32 %v3807, %v3916
    %v4333 = vmul.f32 %v3811, %v3913
    %v4334 = vmul.f32 %v3811, %v3914
    %v4335 = vmul.f32 %v3811, %v3915
    %v4336 = vmul.f32 %v3811, %v3916
    %v4337 = vmul.f32 %v3815, %v3913
    %v4338 = vmul.f32 %v3815, %v3914
    %v4339 = vmul.f32 %v3815, %v3915
    %v4340 = vmul.f32 %v3815, %v3916
    %v4341 = vmul.f32 %v3819, %v3913
    %v4342 = vmul.f32 %v3819, %v3914
    %v4343 = vmul.f32 %v3819, %v3915
    %v4344 = vmul.f32 %v3819, %v3916
    %v4345 = vmul.f32 %v3823, %v3913
    %v4346 = vmul.f32 %v3823, %v3914
    %v4347 = vmul.f32 %v3823, %v3915
    %v4348 = vmul.f32 %v3823, %v3916
    %v4349 = vmul.f32 %v3827, %v3913
    %v4350 = vmul.f32 %v3827, %v3914
    %v4351 = vmul.f32 %v3827, %v3915
    %v4352 = vmul.f32 %v3827, %v3916
    %v4353 = vmul.f32 %v3831, %v3913
    %v4354 = vmul.f32 %v3831, %v3914
    %v4355 = vmul.f32 %v3831, %v3915
    %v4356 = vmul.f32 %v3831, %v3916
    %v4357 = vmul.f32 %v3835, %v3913
    %v4358 = vmul.f32 %v3835, %v3914
    %v4359 = vmul.f32 %v3835, %v3915
    %v4360 = vmul.f32 %v3835, %v3916
    %v4361 = vmul.f32 %v3839, %v3913
    %v4362 = vmul.f32 %v3839, %v3914
    %v4363 = vmul.f32 %v3839, %v3915
    %v4364 = vmul.f32 %v3839, %v3916
    %v4365 = vmul.f32 %v3843, %v3913
    %v4366 = vmul.f32 %v3843, %v3914
    %v4367 = vmul.f32 %v3843, %v3915
    %v4368 = vmul.f32 %v3843, %v3916
    %v4369 = vmul.f32 %v3847, %v3913
    %v4370 = vmul.f32 %v3847, %v3914
    %v4371 = vmul.f32 %v3847, %v3915
    %v4372 = vmul.f32 %v3847, %v3916
    %v4373 = vmul.f32 %v3851, %v3913
    %v4374 = vmul.f32 %v3851, %v3914
    %v4375 = vmul.f32 %v3851, %v3915
    %v4376 = vmul.f32 %v3851, %v3916
    %v4377 = vmul.f32 %v3855, %v3913
    %v4378 = vmul.f32 %v3855, %v3914
    %v4379 = vmul.f32 %v3855, %v3915
    %v4380 = vmul.f32 %v3855, %v3916
    %v4381 = vmul.f32 %v3859, %v3913
    %v4382 = vmul.f32 %v3859, %v3914
    %v4383 = vmul.f32 %v3859, %v3915
    %v4384 = vmul.f32 %v3859, %v3916
    %v4385 = vmul.f32 %v3863, %v3913
    %v4386 = vmul.f32 %v3863, %v3914
    %v4387 = vmul.f32 %v3863, %v3915
    %v4388 = vmul.f32 %v3863, %v3916
    %v4389 = vmul.f32 %v3867, %v3913
    %v4390 = vmul.f32 %v3867, %v3914
    %v4391 = vmul.f32 %v3867, %v3915
    %v4392 = vmul.f32 %v3867, %v3916
    %v4393 = vmul.f32 %v3871, %v3913
    %v4394 = vmul.f32 %v3871, %v3914
    %v4395 = vmul.f32 %v3871, %v3915
    %v4396 = vmul.f32 %v3871, %v3916
    %v4397 = vmul.f32 %v3875, %v3913
    %v4398 = vmul.f32 %v3875, %v3914
    %v4399 = vmul.f32 %v3875, %v3915
    %v4400 = vmul.f32 %v3875, %v3916
    %v4401 = vmul.f32 %v3879, %v3913
    %v4402 = vmul.f32 %v3879, %v3914
    %v4403 = vmul.f32 %v3879, %v3915
    %v4404 = vmul.f32 %v3879, %v3916
    %v4405 = vmul.f32 %v3883, %v3913
    %v4406 = vmul.f32 %v3883, %v3914
    %v4407 = vmul.f32 %v3883, %v3915
    %v4408 = vmul.f32 %v3883, %v3916
    %v4409 = vmul.f32 %v3887, %v3913
    %v4410 = vmul.f32 %v3887, %v3914
    %v4411 = vmul.f32 %v3887, %v3915
    %v4412 = vmul.f32 %v3887, %v3916
    %v4413 = vmul.f32 %v3891, %v3913
    %v4414 = vmul.f32 %v3891, %v3914
    %v4415 = vmul.f32 %v3891, %v3915
    %v4416 = vmul.f32 %v3891, %v3916
    %v4417 = vmul.f32 %v3895, %v3913
    %v4418 = vmul.f32 %v3895, %v3914
    %v4419 = vmul.f32 %v3895, %v3915
    %v4420 = vmul.f32 %v3895, %v3916
    %v4421 = vmul.f32 %v3899, %v3913
    %v4422 = vmul.f32 %v3899, %v3914
    %v4423 = vmul.f32 %v3899, %v3915
    %v4424 = vmul.f32 %v3899, %v3916
    %v4425 = vmul.f32 %v3903, %v3913
    %v4426 = vmul.f32 %v3903, %v3914
    %v4427 = vmul.f32 %v3903, %v3915
    %v4428 = vmul.f32 %v3903, %v3916
    %v4429 = vadd.f32 %v2881, %v3917
    %v4430 = vadd.f32 %v2882, %v3918
    %v4431 = vadd.f32 %v2883, %v3919
    %v4432 = vadd.f32 %v2884, %v3920
    %v4433 = vadd.f32 %v2885, %v3921
    %v4434 = vadd.f32 %v2886, %v3922
    %v4435 = vadd.f32 %v2887, %v3923
    %v4436 = vadd.f32 %v2888, %v3924
    %v4437 = vadd.f32 %v2889, %v3925
    %v4438 = vadd.f32 %v2890, %v3926
    %v4439 = vadd.f32 %v2891, %v3927
    %v4440 = vadd.f32 %v2892, %v3928
    %v4441 = vadd.f32 %v2893, %v3929
    %v4442 = vadd.f32 %v2894, %v3930
    %v4443 = vadd.f32 %v2895, %v3931
    %v4444 = vadd.f32 %v2896, %v3932
    %v4445 = vadd.f32 %v2897, %v3933
    %v4446 = vadd.f32 %v2898, %v3934
    %v4447 = vadd.f32 %v2899, %v3935
    %v4448 = vadd.f32 %v2900, %v3936
    %v4449 = vadd.f32 %v2901, %v3937
    %v4450 = vadd.f32 %v2902, %v3938
    %v4451 = vadd.f32 %v2903, %v3939
    %v4452 = vadd.f32 %v2904, %v3940
    %v4453 = vadd.f32 %v2905, %v3941
    %v4454 = vadd.f32 %v2906, %v3942
    %v4455 = vadd.f32 %v2907, %v3943
    %v4456 = vadd.f32 %v2908, %v3944
    %v4457 = vadd.f32 %v2909, %v3945
    %v4458 = vadd.f32 %v2910, %v3946
    %v4459 = vadd.f32 %v2911, %v3947
    %v4460 = vadd.f32 %v2912, %v3948
    %v4461 = vadd.f32 %v2913, %v3949
    %v4462 = vadd.f32 %v2914, %v3950
    %v4463 = vadd.f32 %v2915, %v3951
    %v4464 = vadd.f32 %v2916, %v3952
    %v4465 = vadd.f32 %v2917, %v3953
    %v4466 = vadd.f32 %v2918, %v3954
    %v4467 = vadd.f32 %v2919, %v3955
    %v4468 = vadd.f32 %v2920, %v3956
    %v4469 = vadd.f32 %v2921, %v3957
    %v4470 = vadd.f32 %v2922, %v3958
    %v4471 = vadd.f32 %v2923, %v3959
    %v4472 = vadd.f32 %v2924, %v3960
    %v4473 = vadd.f32 %v2925, %v3961
    %v4474 = vadd.f32 %v2926, %v3962
    %v4475 = vadd.f32 %v2927, %v3963
    %v4476 = vadd.f32 %v2928, %v3964
    %v4477 = vadd.f32 %v2929, %v3965
    %v4478 = vadd.f32 %v2930, %v3966
    %v4479 = vadd.f32 %v2931, %v3967
    %v4480 = vadd.f32 %v2932, %v3968
    %v4481 = vadd.f32 %v2933, %v3969
    %v4482 = vadd.f32 %v2934, %v3970
    %v4483 = vadd.f32 %v2935, %v3971
    %v4484 = vadd.f32 %v2936, %v3972
    %v4485 = vadd.f32 %v2937, %v3973
    %v4486 = vadd.f32 %v2938, %v3974
    %v4487 = vadd.f32 %v2939, %v3975
    %v4488 = vadd.f32 %v2940, %v3976
    %v4489 = vadd.f32 %v2941, %v3977
    %v4490 = vadd.f32 %v2942, %v3978
    %v4491 = vadd.f32 %v2943, %v3979
    %v4492 = vadd.f32 %v2944, %v3980
    %v4493 = vadd.f32 %v2945, %v3981
    %v4494 = vadd.f32 %v2946, %v3982
    %v4495 = vadd.f32 %v2947, %v3983
    %v4496 = vadd.f32 %v2948, %v3984
    %v4497 = vadd.f32 %v2949, %v3985
    %v4498 = vadd.f32 %v2950, %v3986
    %v4499 = vadd.f32 %v2951, %v3987
    %v4500 = vadd.f32 %v2952, %v3988
    %v4501 = vadd.f32 %v2953, %v3989
    %v4502 = vadd.f32 %v2954, %v3990
    %v4503 = vadd.f32 %v2955, %v3991
    %v4504 = vadd.f32 %v2956, %v3992
    %v4505 = vadd.f32 %v2957, %v3993
    %v4506 = vadd.f32 %v2958, %v3994
    %v4507 = vadd.f32 %v2959, %v3995
    %v4508 = vadd.f32 %v2960, %v3996
    %v4509 = vadd.f32 %v2961, %v3997
    %v4510 = vadd.f32 %v2962, %v3998
    %v4511 = vadd.f32 %v2963, %v3999
    %v4512 = vadd.f32 %v2964, %v4000
    %v4513 = vadd.f32 %v2965, %v4001
    %v4514 = vadd.f32 %v2966, %v4002
    %v4515 = vadd.f32 %v2967, %v4003
    %v4516 = vadd.f32 %v2968, %v4004
    %v4517 = vadd.f32 %v2969, %v4005
    %v4518 = vadd.f32 %v2970, %v4006
    %v4519 = vadd.f32 %v2971, %v4007
    %v4520 = vadd.f32 %v2972, %v4008
    %v4521 = vadd.f32 %v2973, %v4009
    %v4522 = vadd.f32 %v2974, %v4010
    %v4523 = vadd.f32 %v2975, %v4011
    %v4524 = vadd.f32 %v2976, %v4012
    %v4525 = vadd.f32 %v2977, %v4013
    %v4526 = vadd.f32 %v2978, %v4014
    %v4527 = vadd.f32 %v2979, %v4015
    %v4528 = vadd.f32 %v2980, %v4016
    %v4529 = vadd.f32 %v2981, %v4017
    %v4530 = vadd.f32 %v2982, %v4018
    %v4531 = vadd.f32 %v2983, %v4019
    %v4532 = vadd.f32 %v2984, %v4020
    %v4533 = vadd.f32 %v2985, %v4021
    %v4534 = vadd.f32 %v2986, %v4022
    %v4535 = vadd.f32 %v2987, %v4023
    %v4536 = vadd.f32 %v2988, %v4024
    %v4537 = vadd.f32 %v2989, %v4025
    %v4538 = vadd.f32 %v2990, %v4026
    %v4539 = vadd.f32 %v2991, %v4027
    %v4540 = vadd.f32 %v2992, %v4028
    %v4541 = vadd.f32 %v2993, %v4029
    %v4542 = vadd.f32 %v2994, %v4030
    %v4543 = vadd.f32 %v2995, %v4031
    %v4544 = vadd.f32 %v2996, %v4032
    %v4545 = vadd.f32 %v2997, %v4033
    %v4546 = vadd.f32 %v2998, %v4034
    %v4547 = vadd.f32 %v2999, %v4035
    %v4548 = vadd.f32 %v3000, %v4036
    %v4549 = vadd.f32 %v3001, %v4037
    %v4550 = vadd.f32 %v3002, %v4038
    %v4551 = vadd.f32 %v3003, %v4039
    %v4552 = vadd.f32 %v3004, %v4040
    %v4553 = vadd.f32 %v3005, %v4041
    %v4554 = vadd.f32 %v3006, %v4042
    %v4555 = vadd.f32 %v3007, %v4043
    %v4556 = vadd.f32 %v3008, %v4044
    %v4557 = vadd.f32 %v3009, %v4045
    %v4558 = vadd.f32 %v3010, %v4046
    %v4559 = vadd.f32 %v3011, %v4047
    %v4560 = vadd.f32 %v3012, %v4048
    %v4561 = vadd.f32 %v3013, %v4049
    %v4562 = vadd.f32 %v3014, %v4050
    %v4563 = vadd.f32 %v3015, %v4051
    %v4564 = vadd.f32 %v3016, %v4052
    %v4565 = vadd.f32 %v3017, %v4053
    %v4566 = vadd.f32 %v3018, %v4054
    %v4567 = vadd.f32 %v3019, %v4055
    %v4568 = vadd.f32 %v3020, %v4056
    %v4569 = vadd.f32 %v3021, %v4057
    %v4570 = vadd.f32 %v3022, %v4058
    %v4571 = vadd.f32 %v3023, %v4059
    %v4572 = vadd.f32 %v3024, %v4060
    %v4573 = vadd.f32 %v3025, %v4061
    %v4574 = vadd.f32 %v3026, %v4062
    %v4575 = vadd.f32 %v3027, %v4063
    %v4576 = vadd.f32 %v3028, %v4064
    %v4577 = vadd.f32 %v3029, %v4065
    %v4578 = vadd.f32 %v3030, %v4066
    %v4579 = vadd.f32 %v3031, %v4067
    %v4580 = vadd.f32 %v3032, %v4068
    %v4581 = vadd.f32 %v3033, %v4069
    %v4582 = vadd.f32 %v3034, %v4070
    %v4583 = vadd.f32 %v3035, %v4071
    %v4584 = vadd.f32 %v3036, %v4072
    %v4585 = vadd.f32 %v3037, %v4073
    %v4586 = vadd.f32 %v3038, %v4074
    %v4587 = vadd.f32 %v3039, %v4075
    %v4588 = vadd.f32 %v3040, %v4076
    %v4589 = vadd.f32 %v3041, %v4077
    %v4590 = vadd.f32 %v3042, %v4078
    %v4591 = vadd.f32 %v3043, %v4079
    %v4592 = vadd.f32 %v3044, %v4080
    %v4593 = vadd.f32 %v3045, %v4081
    %v4594 = vadd.f32 %v3046, %v4082
    %v4595 = vadd.f32 %v3047, %v4083
    %v4596 = vadd.f32 %v3048, %v4084
    %v4597 = vadd.f32 %v3049, %v4085
    %v4598 = vadd.f32 %v3050, %v4086
    %v4599 = vadd.f32 %v3051, %v4087
    %v4600 = vadd.f32 %v3052, %v4088
    %v4601 = vadd.f32 %v3053, %v4089
    %v4602 = vadd.f32 %v3054, %v4090
    %v4603 = vadd.f32 %v3055, %v4091
    %v4604 = vadd.f32 %v3056, %v4092
    %v4605 = vadd.f32 %v3057, %v4093
    %v4606 = vadd.f32 %v3058, %v4094
    %v4607 = vadd.f32 %v3059, %v4095
    %v4608 = vadd.f32 %v3060, %v4096
    %v4609 = vadd.f32 %v3061, %v4097
    %v4610 = vadd.f32 %v3062, %v4098
    %v4611 = vadd.f32 %v3063, %v4099
    %v4612 = vadd.f32 %v3064, %v4100
    %v4613 = vadd.f32 %v3065, %v4101
    %v4614 = vadd.f32 %v3066, %v4102
    %v4615 = vadd.f32 %v3067, %v4103
    %v4616 = vadd.f32 %v3068, %v4104
    %v4617 = vadd.f32 %v3069, %v4105
    %v4618 = vadd.f32 %v3070, %v4106
    %v4619 = vadd.f32 %v3071, %v4107
    %v4620 = vadd.f32 %v3072, %v4108
    %v4621 = vadd.f32 %v3073, %v4109
    %v4622 = vadd.f32 %v3074, %v4110
    %v4623 = vadd.f32 %v3075, %v4111
    %v4624 = vadd.f32 %v3076, %v4112
    %v4625 = vadd.f32 %v3077, %v4113
    %v4626 = vadd.f32 %v3078, %v4114
    %v4627 = vadd.f32 %v3079, %v4115
    %v4628 = vadd.f32 %v3080, %v4116
    %v4629 = vadd.f32 %v3081, %v4117
    %v4630 = vadd.f32 %v3082, %v4118
    %v4631 = vadd.f32 %v3083, %v4119
    %v4632 = vadd.f32 %v3084, %v4120
    %v4633 = vadd.f32 %v3085, %v4121
    %v4634 = vadd.f32 %v3086, %v4122
    %v4635 = vadd.f32 %v3087, %v4123
    %v4636 = vadd.f32 %v3088, %v4124
    %v4637 = vadd.f32 %v3089, %v4125
    %v4638 = vadd.f32 %v3090, %v4126
    %v4639 = vadd.f32 %v3091, %v4127
    %v4640 = vadd.f32 %v3092, %v4128
    %v4641 = vadd.f32 %v3093, %v4129
    %v4642 = vadd.f32 %v3094, %v4130
    %v4643 = vadd.f32 %v3095, %v4131
    %v4644 = vadd.f32 %v3096, %v4132
    %v4645 = vadd.f32 %v3097, %v4133
    %v4646 = vadd.f32 %v3098, %v4134
    %v4647 = vadd.f32 %v3099, %v4135
    %v4648 = vadd.f32 %v3100, %v4136
    %v4649 = vadd.f32 %v3101, %v4137
    %v4650 = vadd.f32 %v3102, %v4138
    %v4651 = vadd.f32 %v3103, %v4139
    %v4652 = vadd.f32 %v3104, %v4140
    %v4653 = vadd.f32 %v3105, %v4141
    %v4654 = vadd.f32 %v3106, %v4142
    %v4655 = vadd.f32 %v3107, %v4143
    %v4656 = vadd.f32 %v3108, %v4144
    %v4657 = vadd.f32 %v3109, %v4145
    %v4658 = vadd.f32 %v3110, %v4146
    %v4659 = vadd.f32 %v3111, %v4147
    %v4660 = vadd.f32 %v3112, %v4148
    %v4661 = vadd.f32 %v3113, %v4149
    %v4662 = vadd.f32 %v3114, %v4150
    %v4663 = vadd.f32 %v3115, %v4151
    %v4664 = vadd.f32 %v3116, %v4152
    %v4665 = vadd.f32 %v3117, %v4153
    %v4666 = vadd.f32 %v3118, %v4154
    %v4667 = vadd.f32 %v3119, %v4155
    %v4668 = vadd.f32 %v3120, %v4156
    %v4669 = vadd.f32 %v3121, %v4157
    %v4670 = vadd.f32 %v3122, %v4158
    %v4671 = vadd.f32 %v3123, %v4159
    %v4672 = vadd.f32 %v3124, %v4160
    %v4673 = vadd.f32 %v3125, %v4161
    %v4674 = vadd.f32 %v3126, %v4162
    %v4675 = vadd.f32 %v3127, %v4163
    %v4676 = vadd.f32 %v3128, %v4164
    %v4677 = vadd.f32 %v3129, %v4165
    %v4678 = vadd.f32 %v3130, %v4166
    %v4679 = vadd.f32 %v3131, %v4167
    %v4680 = vadd.f32 %v3132, %v4168
    %v4681 = vadd.f32 %v3133, %v4169
    %v4682 = vadd.f32 %v3134, %v4170
    %v4683 = vadd.f32 %v3135, %v4171
    %v4684 = vadd.f32 %v3136, %v4172
    %v4685 = vadd.f32 %v3137, %v4173
    %v4686 = vadd.f32 %v3138, %v4174
    %v4687 = vadd.f32 %v3139, %v4175
    %v4688 = vadd.f32 %v3140, %v4176
    %v4689 = vadd.f32 %v3141, %v4177
    %v4690 = vadd.f32 %v3142, %v4178
    %v4691 = vadd.f32 %v3143, %v4179
    %v4692 = vadd.f32 %v3144, %v4180
    %v4693 = vadd.f32 %v3145, %v4181
    %v4694 = vadd.f32 %v3146, %v4182
    %v4695 = vadd.f32 %v3147, %v4183
    %v4696 = vadd.f32 %v3148, %v4184
    %v4697 = vadd.f32 %v3149, %v4185
    %v4698 = vadd.f32 %v3150, %v4186
    %v4699 = vadd.f32 %v3151, %v4187
    %v4700 = vadd.f32 %v3152, %v4188
    %v4701 = vadd.f32 %v3153, %v4189
    %v4702 = vadd.f32 %v3154, %v4190
    %v4703 = vadd.f32 %v3155, %v4191
    %v4704 = vadd.f32 %v3156, %v4192
    %v4705 = vadd.f32 %v3157, %v4193
    %v4706 = vadd.f32 %v3158, %v4194
    %v4707 = vadd.f32 %v3159, %v4195
    %v4708 = vadd.f32 %v3160, %v4196
    %v4709 = vadd.f32 %v3161, %v4197
    %v4710 = vadd.f32 %v3162, %v4198
    %v4711 = vadd.f32 %v3163, %v4199
    %v4712 = vadd.f32 %v3164, %v4200
    %v4713 = vadd.f32 %v3165, %v4201
    %v4714 = vadd.f32 %v3166, %v4202
    %v4715 = vadd.f32 %v3167, %v4203
    %v4716 = vadd.f32 %v3168, %v4204
    %v4717 = vadd.f32 %v3169, %v4205
    %v4718 = vadd.f32 %v3170, %v4206
    %v4719 = vadd.f32 %v3171, %v4207
    %v4720 = vadd.f32 %v3172, %v4208
    %v4721 = vadd.f32 %v3173, %v4209
    %v4722 = vadd.f32 %v3174, %v4210
    %v4723 = vadd.f32 %v3175, %v4211
    %v4724 = vadd.f32 %v3176, %v4212
    %v4725 = vadd.f32 %v3177, %v4213
    %v4726 = vadd.f32 %v3178, %v4214
    %v4727 = vadd.f32 %v3179, %v4215
    %v4728 = vadd.f32 %v3180, %v4216
    %v4729 = vadd.f32 %v3181, %v4217
    %v4730 = vadd.f32 %v3182, %v4218
    %v4731 = vadd.f32 %v3183, %v4219
    %v4732 = vadd.f32 %v3184, %v4220
    %v4733 = vadd.f32 %v3185, %v4221
    %v4734 = vadd.f32 %v3186, %v4222
    %v4735 = vadd.f32 %v3187, %v4223
    %v4736 = vadd.f32 %v3188, %v4224
    %v4737 = vadd.f32 %v3189, %v4225
    %v4738 = vadd.f32 %v3190, %v4226
    %v4739 = vadd.f32 %v3191, %v4227
    %v4740 = vadd.f32 %v3192, %v4228
    %v4741 = vadd.f32 %v3193, %v4229
    %v4742 = vadd.f32 %v3194, %v4230
    %v4743 = vadd.f32 %v3195, %v4231
    %v4744 = vadd.f32 %v3196, %v4232
    %v4745 = vadd.f32 %v3197, %v4233
    %v4746 = vadd.f32 %v3198, %v4234
    %v4747 = vadd.f32 %v3199, %v4235
    %v4748 = vadd.f32 %v3200, %v4236
    %v4749 = vadd.f32 %v3201, %v4237
    %v4750 = vadd.f32 %v3202, %v4238
    %v4751 = vadd.f32 %v3203, %v4239
    %v4752 = vadd.f32 %v3204, %v4240
    %v4753 = vadd.f32 %v3205, %v4241
    %v4754 = vadd.f32 %v3206, %v4242
    %v4755 = vadd.f32 %v3207, %v4243
    %v4756 = vadd.f32 %v3208, %v4244
    %v4757 = vadd.f32 %v3209, %v4245
    %v4758 = vadd.f32 %v3210, %v4246
    %v4759 = vadd.f32 %v3211, %v4247
    %v4760 = vadd.f32 %v3212, %v4248
    %v4761 = vadd.f32 %v3213, %v4249
    %v4762 = vadd.f32 %v3214, %v4250
    %v4763 = vadd.f32 %v3215, %v4251
    %v4764 = vadd.f32 %v3216, %v4252
    %v4765 = vadd.f32 %v3217, %v4253
    %v4766 = vadd.f32 %v3218, %v4254
    %v4767 = vadd.f32 %v3219, %v4255
    %v4768 = vadd.f32 %v3220, %v4256
    %v4769 = vadd.f32 %v3221, %v4257
    %v4770 = vadd.f32 %v3222, %v4258
    %v4771 = vadd.f32 %v3223, %v4259
    %v4772 = vadd.f32 %v3224, %v4260
    %v4773 = vadd.f32 %v3225, %v4261
    %v4774 = vadd.f32 %v3226, %v4262
    %v4775 = vadd.f32 %v3227, %v4263
    %v4776 = vadd.f32 %v3228, %v4264
    %v4777 = vadd.f32 %v3229, %v4265
    %v4778 = vadd.f32 %v3230, %v4266
    %v4779 = vadd.f32 %v3231, %v4267
    %v4780 = vadd.f32 %v3232, %v4268
    %v4781 = vadd.f32 %v3233, %v4269
    %v4782 = vadd.f32 %v3234, %v4270
    %v4783 = vadd.f32 %v3235, %v4271
    %v4784 = vadd.f32 %v3236, %v4272
    %v4785 = vadd.f32 %v3237, %v4273
    %v4786 = vadd.f32 %v3238, %v4274
    %v4787 = vadd.f32 %v3239, %v4275
    %v4788 = vadd.f32 %v3240, %v4276
    %v4789 = vadd.f32 %v3241, %v4277
    %v4790 = vadd.f32 %v3242, %v4278
    %v4791 = vadd.f32 %v3243, %v4279
    %v4792 = vadd.f32 %v3244, %v4280
    %v4793 = vadd.f32 %v3245, %v4281
    %v4794 = vadd.f32 %v3246, %v4282
    %v4795 = vadd.f32 %v3247, %v4283
    %v4796 = vadd.f32 %v3248, %v4284
    %v4797 = vadd.f32 %v3249, %v4285
    %v4798 = vadd.f32 %v3250, %v4286
    %v4799 = vadd.f32 %v3251, %v4287
    %v4800 = vadd.f32 %v3252, %v4288
    %v4801 = vadd.f32 %v3253, %v4289
    %v4802 = vadd.f32 %v3254, %v4290
    %v4803 = vadd.f32 %v3255, %v4291
    %v4804 = vadd.f32 %v3256, %v4292
    %v4805 = vadd.f32 %v3257, %v4293
    %v4806 = vadd.f32 %v3258, %v4294
    %v4807 = vadd.f32 %v3259, %v4295
    %v4808 = vadd.f32 %v3260, %v4296
    %v4809 = vadd.f32 %v3261, %v4297
    %v4810 = vadd.f32 %v3262, %v4298
    %v4811 = vadd.f32 %v3263, %v4299
    %v4812 = vadd.f32 %v3264, %v4300
    %v4813 = vadd.f32 %v3265, %v4301
    %v4814 = vadd.f32 %v3266, %v4302
    %v4815 = vadd.f32 %v3267, %v4303
    %v4816 = vadd.f32 %v3268, %v4304
    %v4817 = vadd.f32 %v3269, %v4305
    %v4818 = vadd.f32 %v3270, %v4306
    %v4819 = vadd.f32 %v3271, %v4307
    %v4820 = vadd.f32 %v3272, %v4308
    %v4821 = vadd.f32 %v3273, %v4309
    %v4822 = vadd.f32 %v3274, %v4310
    %v4823 = vadd.f32 %v3275, %v4311
    %v4824 = vadd.f32 %v3276, %v4312
    %v4825 = vadd.f32 %v3277, %v4313
    %v4826 = vadd.f32 %v3278, %v4314
    %v4827 = vadd.f32 %v3279, %v4315
    %v4828 = vadd.f32 %v3280, %v4316
    %v4829 = vadd.f32 %v3281, %v4317
    %v4830 = vadd.f32 %v3282, %v4318
    %v4831 = vadd.f32 %v3283, %v4319
    %v4832 = vadd.f32 %v3284, %v4320
    %v4833 = vadd.f32 %v3285, %v4321
    %v4834 = vadd.f32 %v3286, %v4322
    %v4835 = vadd.f32 %v3287, %v4323
    %v4836 = vadd.f32 %v3288, %v4324
    %v4837 = vadd.f32 %v3289, %v4325
    %v4838 = vadd.f32 %v3290, %v4326
    %v4839 = vadd.f32 %v3291, %v4327
    %v4840 = vadd.f32 %v3292, %v4328
    %v4841 = vadd.f32 %v3293, %v4329
    %v4842 = vadd.f32 %v3294, %v4330
    %v4843 = vadd.f32 %v3295, %v4331
    %v4844 = vadd.f32 %v3296, %v4332
    %v4845 = vadd.f32 %v3297, %v4333
    %v4846 = vadd.f32 %v3298, %v4334
    %v4847 = vadd.f32 %v3299, %v4335
    %v4848 = vadd.f32 %v3300, %v4336
    %v4849 = vadd.f32 %v3301, %v4337
    %v4850 = vadd.f32 %v3302, %v4338
    %v4851 = vadd.f32 %v3303, %v4339
    %v4852 = vadd.f32 %v3304, %v4340
    %v4853 = vadd.f32 %v3305, %v4341
    %v4854 = vadd.f32 %v3306, %v4342
    %v4855 = vadd.f32 %v3307, %v4343
    %v4856 = vadd.f32 %v3308, %v4344
    %v4857 = vadd.f32 %v3309, %v4345
    %v4858 = vadd.f32 %v3310, %v4346
    %v4859 = vadd.f32 %v3311, %v4347
    %v4860 = vadd.f32 %v3312, %v4348
    %v4861 = vadd.f32 %v3313, %v4349
    %v4862 = vadd.f32 %v3314, %v4350
    %v4863 = vadd.f32 %v3315, %v4351
    %v4864 = vadd.f32 %v3316, %v4352
    %v4865 = vadd.f32 %v3317, %v4353
    %v4866 = vadd.f32 %v3318, %v4354
    %v4867 = vadd.f32 %v3319, %v4355
    %v4868 = vadd.f32 %v3320, %v4356
    %v4869 = vadd.f32 %v3321, %v4357
    %v4870 = vadd.f32 %v3322, %v4358
    %v4871 = vadd.f32 %v3323, %v4359
    %v4872 = vadd.f32 %v3324, %v4360
    %v4873 = vadd.f32 %v3325, %v4361
    %v4874 = vadd.f32 %v3326, %v4362
    %v4875 = vadd.f32 %v3327, %v4363
    %v4876 = vadd.f32 %v3328, %v4364
    %v4877 = vadd.f32 %v3329, %v4365
    %v4878 = vadd.f32 %v3330, %v4366
    %v4879 = vadd.f32 %v3331, %v4367
    %v4880 = vadd.f32 %v3332, %v4368
    %v4881 = vadd.f32 %v3333, %v4369
    %v4882 = vadd.f32 %v3334, %v4370
    %v4883 = vadd.f32 %v3335, %v4371
    %v4884 = vadd.f32 %v3336, %v4372
    %v4885 = vadd.f32 %v3337, %v4373
    %v4886 = vadd.f32 %v3338, %v4374
    %v4887 = vadd.f32 %v3339, %v4375
    %v4888 = vadd.f32 %v3340, %v4376
    %v4889 = vadd.f32 %v3341, %v4377
    %v4890 = vadd.f32 %v3342, %v4378
    %v4891 = vadd.f32 %v3343, %v4379
    %v4892 = vadd.f32 %v3344, %v4380
    %v4893 = vadd.f32 %v3345, %v4381
    %v4894 = vadd.f32 %v3346, %v4382
    %v4895 = vadd.f32 %v3347, %v4383
    %v4896 = vadd.f32 %v3348, %v4384
    %v4897 = vadd.f32 %v3349, %v4385
    %v4898 = vadd.f32 %v3350, %v4386
    %v4899 = vadd.f32 %v3351, %v4387
    %v4900 = vadd.f32 %v3352, %v4388
    %v4901 = vadd.f32 %v3353, %v4389
    %v4902 = vadd.f32 %v3354, %v4390
    %v4903 = vadd.f32 %v3355, %v4391
    %v4904 = vadd.f32 %v3356, %v4392
    %v4905 = vadd.f32 %v3357, %v4393
    %v4906 = vadd.f32 %v3358, %v4394
    %v4907 = vadd.f32 %v3359, %v4395
    %v4908 = vadd.f32 %v3360, %v4396
    %v4909 = vadd.f32 %v3361, %v4397
    %v4910 = vadd.f32 %v3362, %v4398
    %v4911 = vadd.f32 %v3363, %v4399
    %v4912 = vadd.f32 %v3364, %v4400
    %v4913 = vadd.f32 %v3365, %v4401
    %v4914 = vadd.f32 %v3366, %v4402
    %v4915 = vadd.f32 %v3367, %v4403
    %v4916 = vadd.f32 %v3368, %v4404
    %v4917 = vadd.f32 %v3369, %v4405
    %v4918 = vadd.f32 %v3370, %v4406
    %v4919 = vadd.f32 %v3371, %v4407
    %v4920 = vadd.f32 %v3372, %v4408
    %v4921 = vadd.f32 %v3373, %v4409
    %v4922 = vadd.f32 %v3374, %v4410
    %v4923 = vadd.f32 %v3375, %v4411
    %v4924 = vadd.f32 %v3376, %v4412
    %v4925 = vadd.f32 %v3377, %v4413
    %v4926 = vadd.f32 %v3378, %v4414
    %v4927 = vadd.f32 %v3379, %v4415
    %v4928 = vadd.f32 %v3380, %v4416
    %v4929 = vadd.f32 %v3381, %v4417
    %v4930 = vadd.f32 %v3382, %v4418
    %v4931 = vadd.f32 %v3383, %v4419
    %v4932 = vadd.f32 %v3384, %v4420
    %v4933 = vadd.f32 %v3385, %v4421
    %v4934 = vadd.f32 %v3386, %v4422
    %v4935 = vadd.f32 %v3387, %v4423
    %v4936 = vadd.f32 %v3388, %v4424
    %v4937 = vadd.f32 %v3389, %v4425
    %v4938 = vadd.f32 %v3390, %v4426
    %v4939 = vadd.f32 %v3391, %v4427
    %v4940 = vadd.f32 %v3392, %v4428
    %v4941 = vmax.f32 %v4429, %v4433
    %v4942 = vmax.f32 %v4941, %v4437
    %v4943 = vmax.f32 %v4942, %v4441
    %v4944 = vmax.f32 %v4943, %v4445
    %v4945 = vmax.f32 %v4944, %v4449
    %v4946 = vmax.f32 %v4945, %v4453
    %v4947 = vmax.f32 %v4946, %v4457
    %v4948 = vmax.f32 %v4947, %v4461
    %v4949 = vmax.f32 %v4948, %v4465
    %v4950 = vmax.f32 %v4949, %v4469
    %v4951 = vmax.f32 %v4950, %v4473
    %v4952 = vmax.f32 %v4951, %v4477
    %v4953 = vmax.f32 %v4952, %v4481
    %v4954 = vmax.f32 %v4953, %v4485
    %v4955 = vmax.f32 %v4954, %v4489
    %v4956 = vmax.f32 %v4955, %v4493
    %v4957 = vmax.f32 %v4956, %v4497
    %v4958 = vmax.f32 %v4957, %v4501
    %v4959 = vmax.f32 %v4958, %v4505
    %v4960 = vmax.f32 %v4959, %v4509
    %v4961 = vmax.f32 %v4960, %v4513
    %v4962 = vmax.f32 %v4961, %v4517
    %v4963 = vmax.f32 %v4962, %v4521
    %v4964 = vmax.f32 %v4963, %v4525
    %v4965 = vmax.f32 %v4964, %v4529
    %v4966 = vmax.f32 %v4965, %v4533
    %v4967 = vmax.f32 %v4966, %v4537
    %v4968 = vmax.f32 %v4967, %v4541
    %v4969 = vmax.f32 %v4968, %v4545
    %v4970 = vmax.f32 %v4969, %v4549
    %v4971 = vmax.f32 %v4970, %v4553
    %v4972 = vmax.f32 %v4971, %v4557
    %v4973 = vmax.f32 %v4972, %v4561
    %v4974 = vmax.f32 %v4973, %v4565
    %v4975 = vmax.f32 %v4974, %v4569
    %v4976 = vmax.f32 %v4975, %v4573
    %v4977 = vmax.f32 %v4976, %v4577
    %v4978 = vmax.f32 %v4977, %v4581
    %v4979 = vmax.f32 %v4978, %v4585
    %v4980 = vmax.f32 %v4979, %v4589
    %v4981 = vmax.f32 %v4980, %v4593
    %v4982 = vmax.f32 %v4981, %v4597
    %v4983 = vmax.f32 %v4982, %v4601
    %v4984 = vmax.f32 %v4983, %v4605
    %v4985 = vmax.f32 %v4984, %v4609
    %v4986 = vmax.f32 %v4985, %v4613
    %v4987 = vmax.f32 %v4986, %v4617
    %v4988 = vmax.f32 %v4987, %v4621
    %v4989 = vmax.f32 %v4988, %v4625
    %v4990 = vmax.f32 %v4989, %v4629
    %v4991 = vmax.f32 %v4990, %v4633
    %v4992 = vmax.f32 %v4991, %v4637
    %v4993 = vmax.f32 %v4992, %v4641
    %v4994 = vmax.f32 %v4993, %v4645
    %v4995 = vmax.f32 %v4994, %v4649
    %v4996 = vmax.f32 %v4995, %v4653
    %v4997 = vmax.f32 %v4996, %v4657
    %v4998 = vmax.f32 %v4997, %v4661
    %v4999 = vmax.f32 %v4998, %v4665
    %v5000 = vmax.f32 %v4999, %v4669
    %v5001 = vmax.f32 %v5000, %v4673
    %v5002 = vmax.f32 %v5001, %v4677
    %v5003 = vmax.f32 %v5002, %v4681
    %v5004 = vrot.slane %v5003, 4
    %v5005 = vmax.f32 %v5003, %v5004
    %v5006 = vrot.slane %v5005, 2
    %v5007 = vmax.f32 %v5005, %v5006
    %v5008 = vrot.slane %v5007, 1
    %v5009 = vmax.f32 %v5007, %v5008
    %v5010 = vmax.f32 %v4430, %v4434
    %v5011 = vmax.f32 %v5010, %v4438
    %v5012 = vmax.f32 %v5011, %v4442
    %v5013 = vmax.f32 %v5012, %v4446
    %v5014 = vmax.f32 %v5013, %v4450
    %v5015 = vmax.f32 %v5014, %v4454
    %v5016 = vmax.f32 %v5015, %v4458
    %v5017 = vmax.f32 %v5016, %v4462
    %v5018 = vmax.f32 %v5017, %v4466
    %v5019 = vmax.f32 %v5018, %v4470
    %v5020 = vmax.f32 %v5019, %v4474
    %v5021 = vmax.f32 %v5020, %v4478
    %v5022 = vmax.f32 %v5021, %v4482
    %v5023 = vmax.f32 %v5022, %v4486
    %v5024 = vmax.f32 %v5023, %v4490
    %v5025 = vmax.f32 %v5024, %v4494
    %v5026 = vmax.f32 %v5025, %v4498
    %v5027 = vmax.f32 %v5026, %v4502
    %v5028 = vmax.f32 %v5027, %v4506
    %v5029 = vmax.f32 %v5028, %v4510
    %v5030 = vmax.f32 %v5029, %v4514
    %v5031 = vmax.f32 %v5030, %v4518
    %v5032 = vmax.f32 %v5031, %v4522
    %v5033 = vmax.f32 %v5032, %v4526
    %v5034 = vmax.f32 %v5033, %v4530
    %v5035 = vmax.f32 %v5034, %v4534
    %v5036 = vmax.f32 %v5035, %v4538
    %v5037 = vmax.f32 %v5036, %v4542
    %v5038 = vmax.f32 %v5037, %v4546
    %v5039 = vmax.f32 %v5038, %v4550
    %v5040 = vmax.f32 %v5039, %v4554
    %v5041 = vmax.f32 %v5040, %v4558
    %v5042 = vmax.f32 %v5041, %v4562
    %v5043 = vmax.f32 %v5042, %v4566
    %v5044 = vmax.f32 %v5043, %v4570
    %v5045 = vmax.f32 %v5044, %v4574
    %v5046 = vmax.f32 %v5045, %v4578
    %v5047 = vmax.f32 %v5046, %v4582
    %v5048 = vmax.f32 %v5047, %v4586
    %v5049 = vmax.f32 %v5048, %v4590
    %v5050 = vmax.f32 %v5049, %v4594
    %v5051 = vmax.f32 %v5050, %v4598
    %v5052 = vmax.f32 %v5051, %v4602
    %v5053 = vmax.f32 %v5052, %v4606
    %v5054 = vmax.f32 %v5053, %v4610
    %v5055 = vmax.f32 %v5054, %v4614
    %v5056 = vmax.f32 %v5055, %v4618
    %v5057 = vmax.f32 %v5056, %v4622
    %v5058 = vmax.f32 %v5057, %v4626
    %v5059 = vmax.f32 %v5058, %v4630
    %v5060 = vmax.f32 %v5059, %v4634
    %v5061 = vmax.f32 %v5060, %v4638
    %v5062 = vmax.f32 %v5061, %v4642
    %v5063 = vmax.f32 %v5062, %v4646
    %v5064 = vmax.f32 %v5063, %v4650
    %v5065 = vmax.f32 %v5064, %v4654
    %v5066 = vmax.f32 %v5065, %v4658
    %v5067 = vmax.f32 %v5066, %v4662
    %v5068 = vmax.f32 %v5067, %v4666
    %v5069 = vmax.f32 %v5068, %v4670
    %v5070 = vmax.f32 %v5069, %v4674
    %v5071 = vmax.f32 %v5070, %v4678
    %v5072 = vmax.f32 %v5071, %v4682
    %v5073 = vrot.slane %v5072, 4
    %v5074 = vmax.f32 %v5072, %v5073
    %v5075 = vrot.slane %v5074, 2
    %v5076 = vmax.f32 %v5074, %v5075
    %v5077 = vrot.slane %v5076, 1
    %v5078 = vmax.f32 %v5076, %v5077
    %v5079 = vmax.f32 %v4431, %v4435
    %v5080 = vmax.f32 %v5079, %v4439
    %v5081 = vmax.f32 %v5080, %v4443
    %v5082 = vmax.f32 %v5081, %v4447
    %v5083 = vmax.f32 %v5082, %v4451
    %v5084 = vmax.f32 %v5083, %v4455
    %v5085 = vmax.f32 %v5084, %v4459
    %v5086 = vmax.f32 %v5085, %v4463
    %v5087 = vmax.f32 %v5086, %v4467
    %v5088 = vmax.f32 %v5087, %v4471
    %v5089 = vmax.f32 %v5088, %v4475
    %v5090 = vmax.f32 %v5089, %v4479
    %v5091 = vmax.f32 %v5090, %v4483
    %v5092 = vmax.f32 %v5091, %v4487
    %v5093 = vmax.f32 %v5092, %v4491
    %v5094 = vmax.f32 %v5093, %v4495
    %v5095 = vmax.f32 %v5094, %v4499
    %v5096 = vmax.f32 %v5095, %v4503
    %v5097 = vmax.f32 %v5096, %v4507
    %v5098 = vmax.f32 %v5097, %v4511
    %v5099 = vmax.f32 %v5098, %v4515
    %v5100 = vmax.f32 %v5099, %v4519
    %v5101 = vmax.f32 %v5100, %v4523
    %v5102 = vmax.f32 %v5101, %v4527
    %v5103 = vmax.f32 %v5102, %v4531
    %v5104 = vmax.f32 %v5103, %v4535
    %v5105 = vmax.f32 %v5104, %v4539
    %v5106 = vmax.f32 %v5105, %v4543
    %v5107 = vmax.f32 %v5106, %v4547
    %v5108 = vmax.f32 %v5107, %v4551
    %v5109 = vmax.f32 %v5108, %v4555
    %v5110 = vmax.f32 %v5109, %v4559
    %v5111 = vmax.f32 %v5110, %v4563
    %v5112 = vmax.f32 %v5111, %v4567
    %v5113 = vmax.f32 %v5112, %v4571
    %v5114 = vmax.f32 %v5113, %v4575
    %v5115 = vmax.f32 %v5114, %v4579
    %v5116 = vmax.f32 %v5115, %v4583
    %v5117 = vmax.f32 %v5116, %v4587
    %v5118 = vmax.f32 %v5117, %v4591
    %v5119 = vmax.f32 %v5118, %v4595
    %v5120 = vmax.f32 %v5119, %v4599
    %v5121 = vmax.f32 %v5120, %v4603
    %v5122 = vmax.f32 %v5121, %v4607
    %v5123 = vmax.f32 %v5122, %v4611
    %v5124 = vmax.f32 %v5123, %v4615
    %v5125 = vmax.f32 %v5124, %v4619
    %v5126 = vmax.f32 %v5125, %v4623
    %v5127 = vmax.f32 %v5126, %v4627
    %v5128 = vmax.f32 %v5127, %v4631
    %v5129 = vmax.f32 %v5128, %v4635
    %v5130 = vmax.f32 %v5129, %v4639
    %v5131 = vmax.f32 %v5130, %v4643
    %v5132 = vmax.f32 %v5131, %v4647
    %v5133 = vmax.f32 %v5132, %v4651
    %v5134 = vmax.f32 %v5133, %v4655
    %v5135 = vmax.f32 %v5134, %v4659
    %v5136 = vmax.f32 %v5135, %v4663
    %v5137 = vmax.f32 %v5136, %v4667
    %v5138 = vmax.f32 %v5137, %v4671
    %v5139 = vmax.f32 %v5138, %v4675
    %v5140 = vmax.f32 %v5139, %v4679
    %v5141 = vmax.f32 %v5140, %v4683
    %v5142 = vrot.slane %v5141, 4
    %v5143 = vmax.f32 %v5141, %v5142
    %v5144 = vrot.slane %v5143, 2
    %v5145 = vmax.f32 %v5143, %v5144
    %v5146 = vrot.slane %v5145, 1
    %v5147 = vmax.f32 %v5145, %v5146
    %v5148 = vmax.f32 %v4432, %v4436
    %v5149 = vmax.f32 %v5148, %v4440
    %v5150 = vmax.f32 %v5149, %v4444
    %v5151 = vmax.f32 %v5150, %v4448
    %v5152 = vmax.f32 %v5151, %v4452
    %v5153 = vmax.f32 %v5152, %v4456
    %v5154 = vmax.f32 %v5153, %v4460
    %v5155 = vmax.f32 %v5154, %v4464
    %v5156 = vmax.f32 %v5155, %v4468
    %v5157 = vmax.f32 %v5156, %v4472
    %v5158 = vmax.f32 %v5157, %v4476
    %v5159 = vmax.f32 %v5158, %v4480
    %v5160 = vmax.f32 %v5159, %v4484
    %v5161 = vmax.f32 %v5160, %v4488
    %v5162 = vmax.f32 %v5161, %v4492
    %v5163 = vmax.f32 %v5162, %v4496
    %v5164 = vmax.f32 %v5163, %v4500
    %v5165 = vmax.f32 %v5164, %v4504
    %v5166 = vmax.f32 %v5165, %v4508
    %v5167 = vmax.f32 %v5166, %v4512
    %v5168 = vmax.f32 %v5167, %v4516
    %v5169 = vmax.f32 %v5168, %v4520
    %v5170 = vmax.f32 %v5169, %v4524
    %v5171 = vmax.f32 %v5170, %v4528
    %v5172 = vmax.f32 %v5171, %v4532
    %v5173 = vmax.f32 %v5172, %v4536
    %v5174 = vmax.f32 %v5173, %v4540
    %v5175 = vmax.f32 %v5174, %v4544
    %v5176 = vmax.f32 %v5175, %v4548
    %v5177 = vmax.f32 %v5176, %v4552
    %v5178 = vmax.f32 %v5177, %v4556
    %v5179 = vmax.f32 %v5178, %v4560
    %v5180 = vmax.f32 %v5179, %v4564
    %v5181 = vmax.f32 %v5180, %v4568
    %v5182 = vmax.f32 %v5181, %v4572
    %v5183 = vmax.f32 %v5182, %v4576
    %v5184 = vmax.f32 %v5183, %v4580
    %v5185 = vmax.f32 %v5184, %v4584
    %v5186 = vmax.f32 %v5185, %v4588
    %v5187 = vmax.f32 %v5186, %v4592
    %v5188 = vmax.f32 %v5187, %v4596
    %v5189 = vmax.f32 %v5188, %v4600
    %v5190 = vmax.f32 %v5189, %v4604
    %v5191 = vmax.f32 %v5190, %v4608
    %v5192 = vmax.f32 %v5191, %v4612
    %v5193 = vmax.f32 %v5192, %v4616
    %v5194 = vmax.f32 %v5193, %v4620
    %v5195 = vmax.f32 %v5194, %v4624
    %v5196 = vmax.f32 %v5195, %v4628
    %v5197 = vmax.f32 %v5196, %v4632
    %v5198 = vmax.f32 %v5197, %v4636
    %v5199 = vmax.f32 %v5198, %v4640
    %v5200 = vmax.f32 %v5199, %v4644
    %v5201 = vmax.f32 %v5200, %v4648
    %v5202 = vmax.f32 %v5201, %v4652
    %v5203 = vmax.f32 %v5202, %v4656
    %v5204 = vmax.f32 %v5203, %v4660
    %v5205 = vmax.f32 %v5204, %v4664
    %v5206 = vmax.f32 %v5205, %v4668
    %v5207 = vmax.f32 %v5206, %v4672
    %v5208 = vmax.f32 %v5207, %v4676
    %v5209 = vmax.f32 %v5208, %v4680
    %v5210 = vmax.f32 %v5209, %v4684
    %v5211 = vrot.slane %v5210, 4
    %v5212 = vmax.f32 %v5210, %v5211
    %v5213 = vrot.slane %v5212, 2
    %v5214 = vmax.f32 %v5212, %v5213
    %v5215 = vrot.slane %v5214, 1
    %v5216 = vmax.f32 %v5214, %v5215
    %v5217 = vmax.f32 %v4685, %v4689
    %v5218 = vmax.f32 %v5217, %v4693
    %v5219 = vmax.f32 %v5218, %v4697
    %v5220 = vmax.f32 %v5219, %v4701
    %v5221 = vmax.f32 %v5220, %v4705
    %v5222 = vmax.f32 %v5221, %v4709
    %v5223 = vmax.f32 %v5222, %v4713
    %v5224 = vmax.f32 %v5223, %v4717
    %v5225 = vmax.f32 %v5224, %v4721
    %v5226 = vmax.f32 %v5225, %v4725
    %v5227 = vmax.f32 %v5226, %v4729
    %v5228 = vmax.f32 %v5227, %v4733
    %v5229 = vmax.f32 %v5228, %v4737
    %v5230 = vmax.f32 %v5229, %v4741
    %v5231 = vmax.f32 %v5230, %v4745
    %v5232 = vmax.f32 %v5231, %v4749
    %v5233 = vmax.f32 %v5232, %v4753
    %v5234 = vmax.f32 %v5233, %v4757
    %v5235 = vmax.f32 %v5234, %v4761
    %v5236 = vmax.f32 %v5235, %v4765
    %v5237 = vmax.f32 %v5236, %v4769
    %v5238 = vmax.f32 %v5237, %v4773
    %v5239 = vmax.f32 %v5238, %v4777
    %v5240 = vmax.f32 %v5239, %v4781
    %v5241 = vmax.f32 %v5240, %v4785
    %v5242 = vmax.f32 %v5241, %v4789
    %v5243 = vmax.f32 %v5242, %v4793
    %v5244 = vmax.f32 %v5243, %v4797
    %v5245 = vmax.f32 %v5244, %v4801
    %v5246 = vmax.f32 %v5245, %v4805
    %v5247 = vmax.f32 %v5246, %v4809
    %v5248 = vmax.f32 %v5247, %v4813
    %v5249 = vmax.f32 %v5248, %v4817
    %v5250 = vmax.f32 %v5249, %v4821
    %v5251 = vmax.f32 %v5250, %v4825
    %v5252 = vmax.f32 %v5251, %v4829
    %v5253 = vmax.f32 %v5252, %v4833
    %v5254 = vmax.f32 %v5253, %v4837
    %v5255 = vmax.f32 %v5254, %v4841
    %v5256 = vmax.f32 %v5255, %v4845
    %v5257 = vmax.f32 %v5256, %v4849
    %v5258 = vmax.f32 %v5257, %v4853
    %v5259 = vmax.f32 %v5258, %v4857
    %v5260 = vmax.f32 %v5259, %v4861
    %v5261 = vmax.f32 %v5260, %v4865
    %v5262 = vmax.f32 %v5261, %v4869
    %v5263 = vmax.f32 %v5262, %v4873
    %v5264 = vmax.f32 %v5263, %v4877
    %v5265 = vmax.f32 %v5264, %v4881
    %v5266 = vmax.f32 %v5265, %v4885
    %v5267 = vmax.f32 %v5266, %v4889
    %v5268 = vmax.f32 %v5267, %v4893
    %v5269 = vmax.f32 %v5268, %v4897
    %v5270 = vmax.f32 %v5269, %v4901
    %v5271 = vmax.f32 %v5270, %v4905
    %v5272 = vmax.f32 %v5271, %v4909
    %v5273 = vmax.f32 %v5272, %v4913
    %v5274 = vmax.f32 %v5273, %v4917
    %v5275 = vmax.f32 %v5274, %v4921
    %v5276 = vmax.f32 %v5275, %v4925
    %v5277 = vmax.f32 %v5276, %v4929
    %v5278 = vmax.f32 %v5277, %v4933
    %v5279 = vmax.f32 %v5278, %v4937
    %v5280 = vrot.slane %v5279, 4
    %v5281 = vmax.f32 %v5279, %v5280
    %v5282 = vrot.slane %v5281, 2
    %v5283 = vmax.f32 %v5281, %v5282
    %v5284 = vrot.slane %v5283, 1
    %v5285 = vmax.f32 %v5283, %v5284
    %v5286 = vmax.f32 %v4686, %v4690
    %v5287 = vmax.f32 %v5286, %v4694
    %v5288 = vmax.f32 %v5287, %v4698
    %v5289 = vmax.f32 %v5288, %v4702
    %v5290 = vmax.f32 %v5289, %v4706
    %v5291 = vmax.f32 %v5290, %v4710
    %v5292 = vmax.f32 %v5291, %v4714
    %v5293 = vmax.f32 %v5292, %v4718
    %v5294 = vmax.f32 %v5293, %v4722
    %v5295 = vmax.f32 %v5294, %v4726
    %v5296 = vmax.f32 %v5295, %v4730
    %v5297 = vmax.f32 %v5296, %v4734
    %v5298 = vmax.f32 %v5297, %v4738
    %v5299 = vmax.f32 %v5298, %v4742
    %v5300 = vmax.f32 %v5299, %v4746
    %v5301 = vmax.f32 %v5300, %v4750
    %v5302 = vmax.f32 %v5301, %v4754
    %v5303 = vmax.f32 %v5302, %v4758
    %v5304 = vmax.f32 %v5303, %v4762
    %v5305 = vmax.f32 %v5304, %v4766
    %v5306 = vmax.f32 %v5305, %v4770
    %v5307 = vmax.f32 %v5306, %v4774
    %v5308 = vmax.f32 %v5307, %v4778
    %v5309 = vmax.f32 %v5308, %v4782
    %v5310 = vmax.f32 %v5309, %v4786
    %v5311 = vmax.f32 %v5310, %v4790
    %v5312 = vmax.f32 %v5311, %v4794
    %v5313 = vmax.f32 %v5312, %v4798
    %v5314 = vmax.f32 %v5313, %v4802
    %v5315 = vmax.f32 %v5314, %v4806
    %v5316 = vmax.f32 %v5315, %v4810
    %v5317 = vmax.f32 %v5316, %v4814
    %v5318 = vmax.f32 %v5317, %v4818
    %v5319 = vmax.f32 %v5318, %v4822
    %v5320 = vmax.f32 %v5319, %v4826
    %v5321 = vmax.f32 %v5320, %v4830
    %v5322 = vmax.f32 %v5321, %v4834
    %v5323 = vmax.f32 %v5322, %v4838
    %v5324 = vmax.f32 %v5323, %v4842
    %v5325 = vmax.f32 %v5324, %v4846
    %v5326 = vmax.f32 %v5325, %v4850
    %v5327 = vmax.f32 %v5326, %v4854
    %v5328 = vmax.f32 %v5327, %v4858
    %v5329 = vmax.f32 %v5328, %v4862
    %v5330 = vmax.f32 %v5329, %v4866
    %v5331 = vmax.f32 %v5330, %v4870
    %v5332 = vmax.f32 %v5331, %v4874
    %v5333 = vmax.f32 %v5332, %v4878
    %v5334 = vmax.f32 %v5333, %v4882
    %v5335 = vmax.f32 %v5334, %v4886
    %v5336 = vmax.f32 %v5335, %v4890
    %v5337 = vmax.f32 %v5336, %v4894
    %v5338 = vmax.f32 %v5337, %v4898
    %v5339 = vmax.f32 %v5338, %v4902
    %v5340 = vmax.f32 %v5339, %v4906
    %v5341 = vmax.f32 %v5340, %v4910
    %v5342 = vmax.f32 %v5341, %v4914
    %v5343 = vmax.f32 %v5342, %v4918
    %v5344 = vmax.f32 %v5343, %v4922
    %v5345 = vmax.f32 %v5344, %v4926
    %v5346 = vmax.f32 %v5345, %v4930
    %v5347 = vmax.f32 %v5346, %v4934
    %v5348 = vmax.f32 %v5347, %v4938
    %v5349 = vrot.slane %v5348, 4
    %v5350 = vmax.f32 %v5348, %v5349
    %v5351 = vrot.slane %v5350, 2
    %v5352 = vmax.f32 %v5350, %v5351
    %v5353 = vrot.slane %v5352, 1
    %v5354 = vmax.f32 %v5352, %v5353
    %v5355 = vmax.f32 %v4687, %v4691
    %v5356 = vmax.f32 %v5355, %v4695
    %v5357 = vmax.f32 %v5356, %v4699
    %v5358 = vmax.f32 %v5357, %v4703
    %v5359 = vmax.f32 %v5358, %v4707
    %v5360 = vmax.f32 %v5359, %v4711
    %v5361 = vmax.f32 %v5360, %v4715
    %v5362 = vmax.f32 %v5361, %v4719
    %v5363 = vmax.f32 %v5362, %v4723
    %v5364 = vmax.f32 %v5363, %v4727
    %v5365 = vmax.f32 %v5364, %v4731
    %v5366 = vmax.f32 %v5365, %v4735
    %v5367 = vmax.f32 %v5366, %v4739
    %v5368 = vmax.f32 %v5367, %v4743
    %v5369 = vmax.f32 %v5368, %v4747
    %v5370 = vmax.f32 %v5369, %v4751
    %v5371 = vmax.f32 %v5370, %v4755
    %v5372 = vmax.f32 %v5371, %v4759
    %v5373 = vmax.f32 %v5372, %v4763
    %v5374 = vmax.f32 %v5373, %v4767
    %v5375 = vmax.f32 %v5374, %v4771
    %v5376 = vmax.f32 %v5375, %v4775
    %v5377 = vmax.f32 %v5376, %v4779
    %v5378 = vmax.f32 %v5377, %v4783
    %v5379 = vmax.f32 %v5378, %v4787
    %v5380 = vmax.f32 %v5379, %v4791
    %v5381 = vmax.f32 %v5380, %v4795
    %v5382 = vmax.f32 %v5381, %v4799
    %v5383 = vmax.f32 %v5382, %v4803
    %v5384 = vmax.f32 %v5383, %v4807
    %v5385 = vmax.f32 %v5384, %v4811
    %v5386 = vmax.f32 %v5385, %v4815
    %v5387 = vmax.f32 %v5386, %v4819
    %v5388 = vmax.f32 %v5387, %v4823
    %v5389 = vmax.f32 %v5388, %v4827
    %v5390 = vmax.f32 %v5389, %v4831
    %v5391 = vmax.f32 %v5390, %v4835
    %v5392 = vmax.f32 %v5391, %v4839
    %v5393 = vmax.f32 %v5392, %v4843
    %v5394 = vmax.f32 %v5393, %v4847
    %v5395 = vmax.f32 %v5394, %v4851
    %v5396 = vmax.f32 %v5395, %v4855
    %v5397 = vmax.f32 %v5396, %v4859
    %v5398 = vmax.f32 %v5397, %v4863
    %v5399 = vmax.f32 %v5398, %v4867
    %v5400 = vmax.f32 %v5399, %v4871
    %v5401 = vmax.f32 %v5400, %v4875
    %v5402 = vmax.f32 %v5401, %v4879
    %v5403 = vmax.f32 %v5402, %v4883
    %v5404 = vmax.f32 %v5403, %v4887
    %v5405 = vmax.f32 %v5404, %v4891
    %v5406 = vmax.f32 %v5405, %v4895
    %v5407 = vmax.f32 %v5406, %v4899
    %v5408 = vmax.f32 %v5407, %v4903
    %v5409 = vmax.f32 %v5408, %v4907
    %v5410 = vmax.f32 %v5409, %v4911
    %v5411 = vmax.f32 %v5410, %v4915
    %v5412 = vmax.f32 %v5411, %v4919
    %v5413 = vmax.f32 %v5412, %v4923
    %v5414 = vmax.f32 %v5413, %v4927
    %v5415 = vmax.f32 %v5414, %v4931
    %v5416 = vmax.f32 %v5415, %v4935
    %v5417 = vmax.f32 %v5416, %v4939
    %v5418 = vrot.slane %v5417, 4
    %v5419 = vmax.f32 %v5417, %v5418
    %v5420 = vrot.slane %v5419, 2
    %v5421 = vmax.f32 %v5419, %v5420
    %v5422 = vrot.slane %v5421, 1
    %v5423 = vmax.f32 %v5421, %v5422
    %v5424 = vmax.f32 %v4688, %v4692
    %v5425 = vmax.f32 %v5424, %v4696
    %v5426 = vmax.f32 %v5425, %v4700
    %v5427 = vmax.f32 %v5426, %v4704
    %v5428 = vmax.f32 %v5427, %v4708
    %v5429 = vmax.f32 %v5428, %v4712
    %v5430 = vmax.f32 %v5429, %v4716
    %v5431 = vmax.f32 %v5430, %v4720
    %v5432 = vmax.f32 %v5431, %v4724
    %v5433 = vmax.f32 %v5432, %v4728
    %v5434 = vmax.f32 %v5433, %v4732
    %v5435 = vmax.f32 %v5434, %v4736
    %v5436 = vmax.f32 %v5435, %v4740
    %v5437 = vmax.f32 %v5436, %v4744
    %v5438 = vmax.f32 %v5437, %v4748
    %v5439 = vmax.f32 %v5438, %v4752
    %v5440 = vmax.f32 %v5439, %v4756
    %v5441 = vmax.f32 %v5440, %v4760
    %v5442 = vmax.f32 %v5441, %v4764
    %v5443 = vmax.f32 %v5442, %v4768
    %v5444 = vmax.f32 %v5443, %v4772
    %v5445 = vmax.f32 %v5444, %v4776
    %v5446 = vmax.f32 %v5445, %v4780
    %v5447 = vmax.f32 %v5446, %v4784
    %v5448 = vmax.f32 %v5447, %v4788
    %v5449 = vmax.f32 %v5448, %v4792
    %v5450 = vmax.f32 %v5449, %v4796
    %v5451 = vmax.f32 %v5450, %v4800
    %v5452 = vmax.f32 %v5451, %v4804
    %v5453 = vmax.f32 %v5452, %v4808
    %v5454 = vmax.f32 %v5453, %v4812
    %v5455 = vmax.f32 %v5454, %v4816
    %v5456 = vmax.f32 %v5455, %v4820
    %v5457 = vmax.f32 %v5456, %v4824
    %v5458 = vmax.f32 %v5457, %v4828
    %v5459 = vmax.f32 %v5458, %v4832
    %v5460 = vmax.f32 %v5459, %v4836
    %v5461 = vmax.f32 %v5460, %v4840
    %v5462 = vmax.f32 %v5461, %v4844
    %v5463 = vmax.f32 %v5462, %v4848
    %v5464 = vmax.f32 %v5463, %v4852
    %v5465 = vmax.f32 %v5464, %v4856
    %v5466 = vmax.f32 %v5465, %v4860
    %v5467 = vmax.f32 %v5466, %v4864
    %v5468 = vmax.f32 %v5467, %v4868
    %v5469 = vmax.f32 %v5468, %v4872
    %v5470 = vmax.f32 %v5469, %v4876
    %v5471 = vmax.f32 %v5470, %v4880
    %v5472 = vmax.f32 %v5471, %v4884
    %v5473 = vmax.f32 %v5472, %v4888
    %v5474 = vmax.f32 %v5473, %v4892
    %v5475 = vmax.f32 %v5474, %v4896
    %v5476 = vmax.f32 %v5475, %v4900
    %v5477 = vmax.f32 %v5476, %v4904
    %v5478 = vmax.f32 %v5477, %v4908
    %v5479 = vmax.f32 %v5478, %v4912
    %v5480 = vmax.f32 %v5479, %v4916
    %v5481 = vmax.f32 %v5480, %v4920
    %v5482 = vmax.f32 %v5481, %v4924
    %v5483 = vmax.f32 %v5482, %v4928
    %v5484 = vmax.f32 %v5483, %v4932
    %v5485 = vmax.f32 %v5484, %v4936
    %v5486 = vmax.f32 %v5485, %v4940
    %v5487 = vrot.slane %v5486, 4
    %v5488 = vmax.f32 %v5486, %v5487
    %v5489 = vrot.slane %v5488, 2
    %v5490 = vmax.f32 %v5488, %v5489
    %v5491 = vrot.slane %v5490, 1
    %v5492 = vmax.f32 %v5490, %v5491
    %v5493 = vld [vmem:[%s4] sm:$0xff]
    %v5494 = vld [vmem:[%s4 + $0x8] sm:$0xff]
    %v5495 = vld [vmem:[%s4 + $0x10] sm:$0xff]
    %v5496 = vld [vmem:[%s4 + $0x18] sm:$0xff]
    %v5497 = vld [vmem:[%s4 + $0x20] sm:$0xff]
    %v5498 = vld [vmem:[%s4 + $0x28] sm:$0xff]
    %v5499 = vld [vmem:[%s4 + $0x30] sm:$0xff]
    %v5500 = vld [vmem:[%s4 + $0x38] sm:$0xff]
    %v5501 = vld [vmem:[%s4 + $0x40] sm:$0xff]
    %v5502 = vld [vmem:[%s4 + $0x48] sm:$0xff]
    %v5503 = vld [vmem:[%s4 + $0x50] sm:$0xff]
    %v5504 = vld [vmem:[%s4 + $0x58] sm:$0xff]
    %v5505 = vld [vmem:[%s4 + $0x60] sm:$0xff]
    %v5506 = vld [vmem:[%s4 + $0x68] sm:$0xff]
    %v5507 = vld [vmem:[%s4 + $0x70] sm:$0xff]
    %v5508 = vld [vmem:[%s4 + $0x78] sm:$0xff]
    %v5509 = vld [vmem:[%s4 + $0x80] sm:$0xff]
    %v5510 = vld [vmem:[%s4 + $0x88] sm:$0xff]
    %v5511 = vld [vmem:[%s4 + $0x90] sm:$0xff]
    %v5512 = vld [vmem:[%s4 + $0x98] sm:$0xff]
    %v5513 = vld [vmem:[%s4 + $0xa0] sm:$0xff]
    %v5514 = vld [vmem:[%s4 + $0xa8] sm:$0xff]
    %v5515 = vld [vmem:[%s4 + $0xb0] sm:$0xff]
    %v5516 = vld [vmem:[%s4 + $0xb8] sm:$0xff]
    %v5517 = vld [vmem:[%s4 + $0xc0] sm:$0xff]
    %v5518 = vld [vmem:[%s4 + $0xc8] sm:$0xff]
    %v5519 = vld [vmem:[%s4 + $0xd0] sm:$0xff]
    %v5520 = vld [vmem:[%s4 + $0xd8] sm:$0xff]
    %v5521 = vld [vmem:[%s4 + $0xe0] sm:$0xff]
    %v5522 = vld [vmem:[%s4 + $0xe8] sm:$0xff]
    %v5523 = vld [vmem:[%s4 + $0xf0] sm:$0xff]
    %v5524 = vld [vmem:[%s4 + $0xf8] sm:$0xff]
    %v5525 = vld [vmem:[%s4 + $0x100] sm:$0xff]
    %v5526 = vld [vmem:[%s4 + $0x108] sm:$0xff]
    %v5527 = vld [vmem:[%s4 + $0x110] sm:$0xff]
    %v5528 = vld [vmem:[%s4 + $0x118] sm:$0xff]
    %v5529 = vld [vmem:[%s4 + $0x120] sm:$0xff]
    %v5530 = vld [vmem:[%s4 + $0x128] sm:$0xff]
    %v5531 = vld [vmem:[%s4 + $0x130] sm:$0xff]
    %v5532 = vld [vmem:[%s4 + $0x138] sm:$0xff]
    %v5533 = vld [vmem:[%s4 + $0x140] sm:$0xff]
    %v5534 = vld [vmem:[%s4 + $0x148] sm:$0xff]
    %v5535 = vld [vmem:[%s4 + $0x150] sm:$0xff]
    %v5536 = vld [vmem:[%s4 + $0x158] sm:$0xff]
    %v5537 = vld [vmem:[%s4 + $0x160] sm:$0xff]
    %v5538 = vld [vmem:[%s4 + $0x168] sm:$0xff]
    %v5539 = vld [vmem:[%s4 + $0x170] sm:$0xff]
    %v5540 = vld [vmem:[%s4 + $0x178] sm:$0xff]
    %v5541 = vld [vmem:[%s4 + $0x180] sm:$0xff]
    %v5542 = vld [vmem:[%s4 + $0x188] sm:$0xff]
    %v5543 = vld [vmem:[%s4 + $0x190] sm:$0xff]
    %v5544 = vld [vmem:[%s4 + $0x198] sm:$0xff]
    %v5545 = vld [vmem:[%s4 + $0x1a0] sm:$0xff]
    %v5546 = vld [vmem:[%s4 + $0x1a8] sm:$0xff]
    %v5547 = vld [vmem:[%s4 + $0x1b0] sm:$0xff]
    %v5548 = vld [vmem:[%s4 + $0x1b8] sm:$0xff]
    %v5549 = vld [vmem:[%s4 + $0x1c0] sm:$0xff]
    %v5550 = vld [vmem:[%s4 + $0x1c8] sm:$0xff]
    %v5551 = vld [vmem:[%s4 + $0x1d0] sm:$0xff]
    %v5552 = vld [vmem:[%s4 + $0x1d8] sm:$0xff]
    %v5553 = vld [vmem:[%s4 + $0x1e0] sm:$0xff]
    %v5554 = vld [vmem:[%s4 + $0x1e8] sm:$0xff]
    %v5555 = vld [vmem:[%s4 + $0x1f0] sm:$0xff]
    %v5556 = vld [vmem:[%s4 + $0x1f8] sm:$0xff]
    %v5557 = vld [vmem:[%s1] sm:$0x3]
    %v5558 = vld [vmem:[%s5] sm:$0x7]
    %5560 = vset.pattern.permute.xlu0 0
    %5561 = vperm.xlu0 %5560, %v5557
    %v5562 = vpop.permute.xlu0 %5561
    %v5564 = vperm.slane %v5558, 0
    %v5565 = vmul.f32 %v5562, %v5564
    %vm5574 = vcmask 1041409
    %v5575 = vsel %vm5574, %v5285, %v5009
    %v5576 = vsel %vm5574, %v5354, %v5078
    %v5577 = vsel %vm5574, %v5423, %v5147
    %v5578 = vsel %vm5574, %v5492, %v5216
    %5583 = vmatpush.msra.mxu0 %v5508
    %5584 = vmatpush.msra.mxu0 %v5507
    %5585 = vmatpush.msra.mxu0 %v5506
    %5586 = vmatpush.msra.mxu0 %v5505
    %5587 = vmatpush.msra.mxu0 %v5504
    %5588 = vmatpush.msra.mxu0 %v5503
    %5589 = vmatpush.msra.mxu0 %v5502
    %5590 = vmatpush.msra.mxu0 %v5501
    %5591 = vmatpush.msra.mxu0 %v5500
    %5592 = vmatpush.msra.mxu0 %v5499
    %5593 = vmatpush.msra.mxu0 %v5498
    %5594 = vmatpush.msra.mxu0 %v5497
    %5595 = vmatpush.msra.mxu0 %v5496
    %5596 = vmatpush.msra.mxu0 %v5495
    %5597 = vmatpush.msra.mxu0 %v5494
    %5598 = vmatpush.msra.mxu0 %v5493
    %5599 = vmatmul.f32.gmra.mxu0 %v5575
    %v5600 = vpop.f32.mrf.mxu0
    %v5601 = vadd.f32 %v5565, %v5600
    %5602 = vdwg.mxu0
    %5603 = vmatpush.msra.mxu0 %v5524
    %5604 = vmatpush.msra.mxu0 %v5523
    %5605 = vmatpush.msra.mxu0 %v5522
    %5606 = vmatpush.msra.mxu0 %v5521
    %5607 = vmatpush.msra.mxu0 %v5520
    %5608 = vmatpush.msra.mxu0 %v5519
    %5609 = vmatpush.msra.mxu0 %v5518
    %5610 = vmatpush.msra.mxu0 %v5517
    %5611 = vmatpush.msra.mxu0 %v5516
    %5612 = vmatpush.msra.mxu0 %v5515
    %5613 = vmatpush.msra.mxu0 %v5514
    %5614 = vmatpush.msra.mxu0 %v5513
    %5615 = vmatpush.msra.mxu0 %v5512
    %5616 = vmatpush.msra.mxu0 %v5511
    %5617 = vmatpush.msra.mxu0 %v5510
    %5618 = vmatpush.msra.mxu0 %v5509
    %5619 = vmatmul.f32.gmra.mxu0 %v5576
    %v5620 = vpop.f32.mrf.mxu0
    %v5621 = vadd.f32 %v5601, %v5620
    %5622 = vdwg.mxu0
    %5623 = vmatpush.msra.mxu0 %v5540
    %5624 = vmatpush.msra.mxu0 %v5539
    %5625 = vmatpush.msra.mxu0 %v5538
    %5626 = vmatpush.msra.mxu0 %v5537
    %5627 = vmatpush.msra.mxu0 %v5536
    %5628 = vmatpush.msra.mxu0 %v5535
    %5629 = vmatpush.msra.mxu0 %v5534
    %5630 = vmatpush.msra.mxu0 %v5533
    %5631 = vmatpush.msra.mxu0 %v5532
    %5632 = vmatpush.msra.mxu0 %v5531
    %5633 = vmatpush.msra.mxu0 %v5530
    %5634 = vmatpush.msra.mxu0 %v5529
    %5635 = vmatpush.msra.mxu0 %v5528
    %5636 = vmatpush.msra.mxu0 %v5527
    %5637 = vmatpush.msra.mxu0 %v5526
    %5638 = vmatpush.msra.mxu0 %v5525
    %5639 = vmatmul.f32.gmra.mxu0 %v5577
    %v5640 = vpop.f32.mrf.mxu0
    %v5641 = vadd.f32 %v5621, %v5640
    %5642 = vdwg.mxu0
    %5643 = vmatpush.msra.mxu0 %v5556
    %5644 = vmatpush.msra.mxu0 %v5555
    %5645 = vmatpush.msra.mxu0 %v5554
    %5646 = vmatpush.msra.mxu0 %v5553
    %5647 = vmatpush.msra.mxu0 %v5552
    %5648 = vmatpush.msra.mxu0 %v5551
    %5649 = vmatpush.msra.mxu0 %v5550
    %5650 = vmatpush.msra.mxu0 %v5549
    %5651 = vmatpush.msra.mxu0 %v5548
    %5652 = vmatpush.msra.mxu0 %v5547
    %5653 = vmatpush.msra.mxu0 %v5546
    %5654 = vmatpush.msra.mxu0 %v5545
    %5655 = vmatpush.msra.mxu0 %v5544
    %5656 = vmatpush.msra.mxu0 %v5543
    %5657 = vmatpush.msra.mxu0 %v5542
    %5658 = vmatpush.msra.mxu0 %v5541
    %5659 = vmatmul.f32.gmra.mxu0 %v5578
    %v5660 = vpop.f32.mrf.mxu0
    %v5661 = vadd.f32 %v5641, %v5660
    %5662 = vdwg.mxu0
    %5663 = vset.pattern.permute.xlu0 1
    %5664 = vperm.xlu0 %5663, %v5557
    %v5665 = vpop.permute.xlu0 %5664
    %v5667 = vperm.slane %v5558, 1
    %v5668 = vmul.f32 %v5665, %v5667
    %v5669 = vadd.f32 %v5661, %v5668
    %5670 = vset.pattern.permute.xlu0 2
    %5671 = vperm.xlu0 %5670, %v5557
    %v5672 = vpop.permute.xlu0 %5671
    %v5674 = vperm.slane %v5558, 2
    %v5675 = vmul.f32 %v5672, %v5674
    %v5676 = vadd.f32 %v5669, %v5675
    %v5677 = vld [vmem:[%s6] sm:$0x1]
    %v5679 = vperm.slane %v5677, 0
    %v5681 = vadd.f32 %v5676, %v5679
    %vm5682 = vcmask 17408
    %5683 = vst.msk [vmem:[#allocation2] sm:$0x3] %vm5682, %v5681
    // Predicated region
    $region30: #{tpu_custom_call.1} parent=1 // pred_check
      _
    $region31: #{tpu_custom_call.1} parent=1 // pred_check_branch
      %5685 = sbr.rel (0) target = $region33
    $region32: #{tpu_custom_call.1} parent=1 // pred_region
      %5687 = vsyncadd [#allocation3], 0
      %s5689 = sshll.u32 [#allocation2], 4
      %s5690 = int_to_ptr.vmem [resolvable:$true] %s5689
      %s5691 = sshll.u32 %s7, 4
      %s5692 = int_to_ptr.hbm [resolvable:$true] %s5691
      %5694 = dma.vmem_to_hbm [thread:$0]  %s5690, 32, %s5692, [#allocation3]
    $region33: #{tpu_custom_call.1} parent=1 // pred_fallthru
      _
    // Predicated region
    $region34: #{tpu_custom_call.1} parent=1 // pred_check
      _
    $region35: #{tpu_custom_call.1} parent=1 // pred_check_branch
      %5696 = sbr.rel (0) target = $region37
    $region36: #{tpu_custom_call.1} parent=1 // pred_region
      %5698 = dma.done [#allocation3], 32
    $region37: #{tpu_custom_call.1} parent=1 // pred_fallthru
      _
    %5699 = vsyncpa [#allocation3], 1

</llo_original>
